<compile_context>
chip_gen: v7x
topology: tpu7x:2x2x1
jax: 0.10.0
libtpu: 0.0.40
codegen_flags: <defaults>
</compile_context>

<pallas_src>
import functools

import jax
import jax.numpy as jnp
from jax import lax
from jax.experimental import pallas as pl
from jax.experimental.pallas import tpu as pltpu

LANE = 128
_VMEM_CAP = 48 * 1024 * 1024    # stay well under v7x's 64 MiB / TensorCore
_VMEM_FLOOR = 8 * 1024 * 1024


def _round_up(n, m):
    return ((n + m - 1) // m) * m


# ----------------------------------------------------------------------------
# Kernels
# ----------------------------------------------------------------------------
def den_mlp_fused_kernel(x_ref, w1_ref, b1_ref, w2_ref, b2_ref, w3_ref, b3_ref,
                         o_ref, *, precision):
    # x arrives either f32 (tile-aligned fast path) or already in the matmul
    # dtype; weights are pre-packed (in, out) in the matmul dtype, biases f32.
    x = x_ref[...].astype(w1_ref.dtype)                                 # (bm, D_in_p)

    h1 = jnp.dot(x, w1_ref[...], preferred_element_type=jnp.float32,
                 precision=precision) + b1_ref[...]
    h1 = jnp.maximum(h1, 0.0)                                           # f32 (bm, H_p)

    h2 = jnp.dot(h1.astype(w2_ref.dtype), w2_ref[...],
                 preferred_element_type=jnp.float32,
                 precision=precision) + b2_ref[...]
    h2 = jnp.maximum(h2, 0.0)                                           # f32 (bm, H_p)

    o = jnp.dot(h2.astype(w3_ref.dtype), w3_ref[...],
                preferred_element_type=jnp.float32,
                precision=precision) + b3_ref[...]                      # f32 (bm, D_out_p)
    o_ref[...] = o.astype(o_ref.dtype)


def den_mlp_ktiled_kernel(x_ref, w1_ref, b1_ref, w2_ref, b2_ref, w3_ref, b3_ref,
                          o_ref, h2_acc_ref, *, precision):
    # grid = (batch tiles [parallel], H chunks [arbitrary, reduction-last]).
    # Per k step: compute a tk-wide column chunk of relu(x@w1+b1) and
    # accumulate its contribution to the layer-2 pre-activation; finalize on
    # the last chunk.  Keeps only (D_in_p, tk) of w1 and (tk, H_p) of w2
    # resident instead of the full H_p x H_p w2.
    k = pl.program_id(1)

    @pl.when(k == 0)
    def _():
        h2_acc_ref[...] = jnp.zeros_like(h2_acc_ref)

    x = x_ref[...].astype(w1_ref.dtype)                                 # (bm, D_in_p)
    h1_k = jnp.dot(x, w1_ref[...], preferred_element_type=jnp.float32,
                   precision=precision) + b1_ref[...]
    h1_k = jnp.maximum(h1_k, 0.0)                                       # f32 (bm, tk)
    h2_acc_ref[...] += jnp.dot(h1_k.astype(w2_ref.dtype), w2_ref[...],
                               preferred_element_type=jnp.float32,
                               precision=precision)                     # (bm, H_p)

    @pl.when(k == pl.num_programs(1) - 1)
    def _():
        h2 = jnp.maximum(h2_acc_ref[...] + b2_ref[...], 0.0)
        o = jnp.dot(h2.astype(w3_ref.dtype), w3_ref[...],
                    preferred_element_type=jnp.float32,
                    precision=precision) + b3_ref[...]
        o_ref[...] = o.astype(o_ref.dtype)


# ----------------------------------------------------------------------------
# Glue
# ----------------------------------------------------------------------------
def pack_den_params(params, matmul_dtype=jnp.bfloat16):
    """Pre-pack PyTorch-convention weights for the kernel.

    Transpose to (in, out), zero-pad every feature dim to a multiple of 128
    (lane-dense vregs / MXU feeds / unmasked stores) and cast to the MXU dtype.
    Call ONCE per weight update and reuse the result across forward calls.
    """
    H, D_in = params["w1"].shape
    D_out = params["w3"].shape[0]
    D_in_p, H_p, D_out_p = (_round_up(d, LANE) for d in (D_in, H, D_out))

    def pad2(a, r, c):
        return jnp.pad(a, ((0, r - a.shape[0]), (0, c - a.shape[1])))

    packed = {
        "w1": pad2(params["w1"].T, D_in_p, H_p).astype(matmul_dtype),
        "w2": pad2(params["w2"].T, H_p, H_p).astype(matmul_dtype),
        "w3": pad2(params["w3"].T, H_p, D_out_p).astype(matmul_dtype),
        "b1": jnp.pad(params["b1"], (0, H_p - H)).reshape(1, H_p).astype(jnp.float32),
        "b2": jnp.pad(params["b2"], (0, H_p - H)).reshape(1, H_p).astype(jnp.float32),
        "b3": jnp.pad(params["b3"], (0, D_out_p - D_out)).reshape(1, D_out_p).astype(jnp.float32),
    }
    dims = {"d_in": D_in, "h": H, "d_out": D_out}
    return packed, dims


@functools.partial(
    jax.jit, static_argnames=("d_out", "bm", "out_dtype", "force_ktiled", "tk"))
def den_forward_packed(x, packed, *, d_out, bm=None, out_dtype=jnp.float32,
                       force_ktiled=False, tk=None):
    """Pallas forward pass of the DEN-wrapped MLP on pre-packed weights."""
    B, D_in = x.shape
    w1, w2, w3 = packed["w1"], packed["w2"], packed["w3"]
    b1, b2, b3 = packed["b1"], packed["b2"], packed["b3"]
    D_in_p, H_p = w1.shape
    D_out_p = w3.shape[1]
    assert D_in <= D_in_p and d_out <= D_out_p, "x/params mismatch with packed shapes"

    w_itm = w1.dtype.itemsize
    out_itm = jnp.dtype(out_dtype).itemsize
    precision = lax.Precision.HIGHEST if w1.dtype == jnp.float32 else None

    # ---- batch tile: 128-aligned, and >= 2 grid steps once B exceeds a tile
    # so dimension_semantics=("parallel",...) can shard across v7x's 2 TCs.
    # (On 128-MiB-VMEM v5e/v6e a sweep up to bm=1024 gains a bit more.)
    if bm is None:
        bm = min(512, _round_up(max((B + 1) // 2, 16), LANE))
    bm = max(16, _round_up(bm, 8))          # bf16 packs 16 rows per vreg
    grid_m = pl.cdiv(B, bm)
    B_p = grid_m * bm

    # ---- x: skip the separate XLA pad+cast pass when already tile-aligned;
    # the kernel casts to the matmul dtype on the fly (saves a full HBM
    # read+write of x per call).  Otherwise fuse pad+cast once here.
    if B_p == B and D_in_p == D_in:
        x_p = x
    else:
        x_p = jnp.pad(x, ((0, B_p - B), (0, D_in_p - D_in))).astype(w1.dtype)
    x_itm = x_p.dtype.itemsize

    flops = 2 * B_p * (D_in_p * H_p + H_p * H_p + H_p * D_out_p)

    # ---- VMEM accounting (weights single-buffered; no double counting).
    def fused_bytes():
        return (2 * bm * D_in_p * x_itm                    # x tile    (Buffered(2))
                + 2 * bm * D_out_p * out_itm               # out tile  (Buffered(2))
                + (w1.size + w2.size + w3.size) * w_itm    # weights   (Buffered(1))
                + (b1.size + b2.size + b3.size) * 4        # biases    (Buffered(1))
                + 3 * bm * H_p * 4)                        # live f32 h1/h2 + slack

    def ktiled_bytes(tk_):
        return (2 * bm * D_in_p * x_itm                    # x tile
                + 2 * bm * D_out_p * out_itm               # out tile
                + 2 * D_in_p * tk_ * w_itm                 # w1 chunk  (Buffered(2))
                + 2 * tk_ * 4                              # b1 chunk
                + 2 * tk_ * H_p * w_itm                    # w2 chunk  (Buffered(2))
                + (H_p + D_out_p) * 4                      # b2, b3    (Buffered(1))
                + H_p * D_out_p * w_itm                    # w3        (Buffered(1))
                + bm * H_p * 4                             # h2 accumulator scratch
                + bm * tk_ * 4)                            # live f32 h1 chunk

    use_ktiled = force_ktiled or int(1.25 * fused_bytes()) > _VMEM_CAP

    if not use_ktiled:
        bytes_accessed = (x_p.size * x_itm
                          + (w1.size + w2.size + w3.size) * w_itm
                          + (b1.size + b2.size + b3.size) * 4
                          + B_p * D_out_p * out_itm)
        cost = pl.CostEstimate(flops=int(flops), transcendentals=0,
                               bytes_accessed=int(bytes_accessed))
        vmem_limit = int(min(_VMEM_CAP, max(_VMEM_FLOOR, 1.25 * fused_bytes())))

        # Constant-index weight/bias blocks: DMA'd once, single-buffered.
        rep = lambda shape: pl.BlockSpec(shape, lambda i: (0, 0),
                                         pipeline_mode=pl.Buffered(1))

        out_padded = pl.pallas_call(
            functools.partial(den_mlp_fused_kernel, precision=precision),
            out_shape=jax.ShapeDtypeStruct((B_p, D_out_p), out_dtype),
            grid_spec=pltpu.PrefetchScalarGridSpec(
                num_scalar_prefetch=0,
                grid=(grid_m,),
                in_specs=[
                    # TODO(synk): pl.Buffered(3) on x if a v7x trace shows the
                    # one-time weight DMA exposing the first compute step.
                    pl.BlockSpec((bm, D_in_p), lambda i: (i, 0)),   # x, batch-tiled
                    rep((D_in_p, H_p)),                             # w1
                    rep((1, H_p)),                                  # b1
                    rep((H_p, H_p)),                                # w2
                    rep((1, H_p)),                                  # b2
                    rep((H_p, D_out_p)),                            # w3
                    rep((1, D_out_p)),                              # b3
                ],
                out_specs=pl.BlockSpec((bm, D_out_p), lambda i: (i, 0)),
            ),
            compiler_params=pltpu.CompilerParams(
                dimension_semantics=("parallel",),
                vmem_limit_bytes=vmem_limit),
            cost_estimate=cost,
        )(x_p, w1, b1, w2, b2, w3, b3)
    else:
        # Large-H path (DEN after many expansions): stream w1 columns / w2 rows
        # over a reduction-last grid axis, accumulate layer-2 pre-activation in
        # VMEM scratch.  tk must be a 128-multiple divisor of H_p.
        if tk is None:
            tk = LANE
            for c in range(H_p // LANE, 0, -1):
                cand = c * LANE
                if (H_p % cand == 0 and cand <= 512
                        and int(1.25 * ktiled_bytes(cand)) <= _VMEM_CAP):
                    tk = cand
                    break
        assert tk % LANE == 0 and H_p % tk == 0, "tk must be a 128-multiple divisor of H_p"
        grid_k = H_p // tk
        # TODO(synk): for extreme D_out or bm also tile w3 / shrink bm; not
        # needed for typical DEN regression heads.

        bytes_accessed = (x_p.size * x_itm
                          + grid_m * ((w1.size + w2.size) * w_itm + b1.size * 4)
                          + w3.size * w_itm + (b2.size + b3.size) * 4
                          + B_p * D_out_p * out_itm)
        cost = pl.CostEstimate(flops=int(flops), transcendentals=0,
                               bytes_accessed=int(bytes_accessed))
        vmem_limit = int(min(_VMEM_CAP, max(_VMEM_FLOOR, 1.25 * ktiled_bytes(tk))))

        rep2 = lambda shape: pl.BlockSpec(shape, lambda i, k: (0, 0),
                                          pipeline_mode=pl.Buffered(1))

        out_padded = pl.pallas_call(
            functools.partial(den_mlp_ktiled_kernel, precision=precision),
            out_shape=jax.ShapeDtypeStruct((B_p, D_out_p), out_dtype),
            grid_spec=pltpu.PrefetchScalarGridSpec(
                num_scalar_prefetch=0,
                grid=(grid_m, grid_k),
                in_specs=[
                    pl.BlockSpec((bm, D_in_p), lambda i, k: (i, 0)),   # x
                    pl.BlockSpec((D_in_p, tk), lambda i, k: (0, k)),   # w1 chunk
                    pl.BlockSpec((1, tk),      lambda i, k: (0, k)),   # b1 chunk
                    pl.BlockSpec((tk, H_p),    lambda i, k: (k, 0)),   # w2 chunk
                    rep2((1, H_p)),                                    # b2
                    rep2((H_p, D_out_p)),                              # w3
                    rep2((1, D_out_p)),                                # b3
                ],
                out_specs=pl.BlockSpec((bm, D_out_p), lambda i, k: (i, 0)),
                scratch_shapes=[pltpu.VMEM((bm, H_p), jnp.float32)],
            ),
            compiler_params=pltpu.CompilerParams(
                dimension_semantics=("parallel", "arbitrary"),
                vmem_limit_bytes=vmem_limit),
            cost_estimate=cost,
        )(x_p, w1, b1, w2, b2, w3, b3)

    return out_padded[:B, :d_out]


def den_forward(x, params, *, matmul_dtype=jnp.bfloat16, **kwargs):
    """One-shot convenience wrapper (packs weights per call).

    For repeated inference, call pack_den_params() once and reuse the packed
    weights with den_forward_packed() to avoid re-streaming weights every call.
    """
    packed, dims = pack_den_params(params, matmul_dtype=matmul_dtype)
    return den_forward_packed(x, packed, d_out=dims["d_out"], **kwargs)


def den_forward_ref(x, params):
    """Pure-JAX f32 reference matching PyTorch nn.Linear semantics."""
    h1 = jnp.maximum(x @ params["w1"].T + params["b1"], 0.0)
    h2 = jnp.maximum(h1 @ params["w2"].T + params["b2"], 0.0)
    return h2 @ params["w3"].T + params["b3"]


# TODO(synk): DEN.trainFirst / selectiveRetraining / trainNext / dynamicExpansion
# are training-time procedures (optimizers, L1 penalties, backward hooks) and
# are not part of the forward kernel.


if __name__ == "__main__":
    root = jax.random.PRNGKey(0)

    def make_params(key, d_in, h, d_out):
        ks = jax.random.split(key, 6)
        return {
            "w1": 0.1 * jax.random.normal(ks[0], (h, d_in), dtype=jnp.float32),
            "b1": 0.1 * jax.random.normal(ks[1], (h,), dtype=jnp.float32),
            "w2": 0.1 * jax.random.normal(ks[2], (h, h), dtype=jnp.float32),
            "b2": 0.1 * jax.random.normal(ks[3], (h,), dtype=jnp.float32),
            "w3": 0.1 * jax.random.normal(ks[4], (d_out, h), dtype=jnp.float32),
            "b3": 0.1 * jax.random.normal(ks[5], (d_out,), dtype=jnp.float32),
        }

    k_a, k_b = jax.random.split(root)

    # ---- config 1: tiny MLP, fused path ------------------------------------
    B, D_in, H, D_out = 16, 32, 64, 16
    kx, kp = jax.random.split(k_a)
    x = jax.random.normal(kx, (B, D_in), dtype=jnp.float32)
    params = make_params(kp, D_in, H, D_out)
    ref = den_forward_ref(x, params)

    # f32 MXU path (precision=HIGHEST): exact plumbing check (pad/tile/bias/ReLU).
    packed_f32, dims = pack_den_params(params, matmul_dtype=jnp.float32)
    out_f32 = jax.block_until_ready(
        den_forward_packed(x, packed_f32, d_out=dims["d_out"]))
    assert out_f32.shape == (B, D_out)
    assert jnp.allclose(out_f32, ref, atol=1e-5, rtol=1e-5), "f32 fused path mismatch"

    # bf16 MXU fast path: weights packed ONCE and reused across calls.
    packed_bf16, dims = pack_den_params(params)
    out_bf16 = jax.block_until_ready(
        den_forward_packed(x, packed_bf16, d_out=dims["d_out"]))
    assert out_bf16.shape == (B, D_out)
    assert jnp.allclose(out_bf16, ref, atol=3e-2, rtol=3e-2), "bf16 fused path mismatch"

    # ---- config 2: exercise the K-tiled large-H path (forced; tk=128 so the
    # padded H=256 contraction takes 2 accumulation steps) --------------------
    B2, D_in2, H2, D_out2 = 24, 48, 256, 8
    kx2, kp2 = jax.random.split(k_b)
    x2 = jax.random.normal(kx2, (B2, D_in2), dtype=jnp.float32)
    params2 = make_params(kp2, D_in2, H2, D_out2)
    ref2 = den_forward_ref(x2, params2)

    packed2, dims2 = pack_den_params(params2, matmul_dtype=jnp.float32)
    out2 = jax.block_until_ready(
        den_forward_packed(x2, packed2, d_out=dims2["d_out"],
                           force_ktiled=True, tk=128))
    assert out2.shape == (B2, D_out2)
    assert jnp.allclose(out2, ref2, atol=1e-4, rtol=1e-4), "k-tiled path mismatch"

    print("KERNEL_OK")
</pallas_src>

<mosaic_0001>
module attributes {stable_mosaic.version = 11 : i64} {
  func.func @den_mlp_fused_kernel(%arg0: i32, %arg1: memref<128x128xf32, #tpu.memory_space<vmem>>, %arg2: memref<128x128xf32, #tpu.memory_space<vmem>>, %arg3: memref<1x128xf32, #tpu.memory_space<vmem>>, %arg4: memref<128x128xf32, #tpu.memory_space<vmem>>, %arg5: memref<1x128xf32, #tpu.memory_space<vmem>>, %arg6: memref<128x128xf32, #tpu.memory_space<vmem>>, %arg7: memref<1x128xf32, #tpu.memory_space<vmem>>, %arg8: memref<128x128xf32, #tpu.memory_space<vmem>>) attributes {dimension_semantics = [#tpu.dimension_semantics<parallel>], iteration_bounds = array<i64: 1>, scalar_prefetch = 0 : i64, scratch_operands = 0 : i64, tpu.core_type = #tpu.core_type<tc>, window_params = [{transform_indices = @transform_0, window_bounds = array<i64: 128, 128>}, {pipeline_mode = #tpu.pipeline_mode<synchronous>, transform_indices = @transform_1, window_bounds = array<i64: 128, 128>}, {pipeline_mode = #tpu.pipeline_mode<synchronous>, transform_indices = @transform_2, window_bounds = array<i64: 1, 128>}, {pipeline_mode = #tpu.pipeline_mode<synchronous>, transform_indices = @transform_3, window_bounds = array<i64: 128, 128>}, {pipeline_mode = #tpu.pipeline_mode<synchronous>, transform_indices = @transform_4, window_bounds = array<i64: 1, 128>}, {pipeline_mode = #tpu.pipeline_mode<synchronous>, transform_indices = @transform_5, window_bounds = array<i64: 128, 128>}, {pipeline_mode = #tpu.pipeline_mode<synchronous>, transform_indices = @transform_6, window_bounds = array<i64: 1, 128>}, {transform_indices = @transform_7, window_bounds = array<i64: 128, 128>}]} {
    %c0 = arith.constant 0 : index
    %c0_0 = arith.constant 0 : index
    %0 = vector.load %arg1[%c0, %c0_0] : memref<128x128xf32, #tpu.memory_space<vmem>>, vector<128x128xf32>
    %c0_1 = arith.constant 0 : index
    %c0_2 = arith.constant 0 : index
    %1 = vector.load %arg2[%c0_1, %c0_2] : memref<128x128xf32, #tpu.memory_space<vmem>>, vector<128x128xf32>
    %cst = arith.constant dense<0.000000e+00> : vector<128x128xf32>
    %2 = tpu.matmul %0, %1, %cst {dimension_numbers = #tpu.dot_dimension_numbers<[1], [0], [0], [1], [0, 0, 1, 1], [], []>, precision = #tpu.contract_precision<fp32>} : vector<128x128xf32>, vector<128x128xf32>, vector<128x128xf32> -> vector<128x128xf32>
    %c0_3 = arith.constant 0 : index
    %c0_4 = arith.constant 0 : index
    %3 = vector.load %arg3[%c0_3, %c0_4] : memref<1x128xf32, #tpu.memory_space<vmem>>, vector<1x128xf32>
    %4 = vector.broadcast %3 : vector<1x128xf32> to vector<128x128xf32>
    %5 = arith.addf %2, %4 : vector<128x128xf32>
    %cst_5 = arith.constant 0.000000e+00 : f32
    %6 = vector.broadcast %cst_5 : f32 to vector<128x128xf32>
    %7 = arith.maximumf %5, %6 : vector<128x128xf32>
    %c0_6 = arith.constant 0 : index
    %c0_7 = arith.constant 0 : index
    %8 = vector.load %arg4[%c0_6, %c0_7] : memref<128x128xf32, #tpu.memory_space<vmem>>, vector<128x128xf32>
    %cst_8 = arith.constant dense<0.000000e+00> : vector<128x128xf32>
    %9 = tpu.matmul %7, %8, %cst_8 {dimension_numbers = #tpu.dot_dimension_numbers<[1], [0], [0], [1], [0, 0, 1, 1], [], []>, precision = #tpu.contract_precision<fp32>} : vector<128x128xf32>, vector<128x128xf32>, vector<128x128xf32> -> vector<128x128xf32>
    %c0_9 = arith.constant 0 : index
    %c0_10 = arith.constant 0 : index
    %10 = vector.load %arg5[%c0_9, %c0_10] : memref<1x128xf32, #tpu.memory_space<vmem>>, vector<1x128xf32>
    %11 = vector.broadcast %10 : vector<1x128xf32> to vector<128x128xf32>
    %12 = arith.addf %9, %11 : vector<128x128xf32>
    %cst_11 = arith.constant 0.000000e+00 : f32
    %13 = vector.broadcast %cst_11 : f32 to vector<128x128xf32>
    %14 = arith.maximumf %12, %13 : vector<128x128xf32>
    %c0_12 = arith.constant 0 : index
    %c0_13 = arith.constant 0 : index
    %15 = vector.load %arg6[%c0_12, %c0_13] : memref<128x128xf32, #tpu.memory_space<vmem>>, vector<128x128xf32>
    %cst_14 = arith.constant dense<0.000000e+00> : vector<128x128xf32>
    %16 = tpu.matmul %14, %15, %cst_14 {dimension_numbers = #tpu.dot_dimension_numbers<[1], [0], [0], [1], [0, 0, 1, 1], [], []>, precision = #tpu.contract_precision<fp32>} : vector<128x128xf32>, vector<128x128xf32>, vector<128x128xf32> -> vector<128x128xf32>
    %c0_15 = arith.constant 0 : index
    %c0_16 = arith.constant 0 : index
    %17 = vector.load %arg7[%c0_15, %c0_16] : memref<1x128xf32, #tpu.memory_space<vmem>>, vector<1x128xf32>
    %18 = vector.broadcast %17 : vector<1x128xf32> to vector<128x128xf32>
    %19 = arith.addf %16, %18 : vector<128x128xf32>
    %c0_17 = arith.constant 0 : index
    %c0_18 = arith.constant 0 : index
    %20 = vector.load %arg8[%c0_17, %c0_18] : memref<128x128xf32, #tpu.memory_space<vmem>>, vector<128x128xf32>
    tpu.vector_store %arg8[%c0_17, %c0_18], %19 {strides = array<i32>} : memref<128x128xf32, #tpu.memory_space<vmem>>, vector<128x128xf32>,
    return
  }
  func.func @transform_0(%arg0: i32) -> (i32, i32) {
    %c0_i32 = arith.constant 0 : i32
    %c0_i32_0 = arith.constant 0 : i32
    return %arg0, %c0_i32 : i32, i32
  }
  func.func @transform_1(%arg0: i32) -> (i32, i32) {
    %c0_i32 = arith.constant 0 : i32
    %c0_i32_0 = arith.constant 0 : i32
    %c0_i32_1 = arith.constant 0 : i32
    return %c0_i32, %c0_i32_0 : i32, i32
  }
  func.func @transform_2(%arg0: i32) -> (i32, i32) {
    %c0_i32 = arith.constant 0 : i32
    %c0_i32_0 = arith.constant 0 : i32
    %c0_i32_1 = arith.constant 0 : i32
    return %c0_i32, %c0_i32_0 : i32, i32
  }
  func.func @transform_3(%arg0: i32) -> (i32, i32) {
    %c0_i32 = arith.constant 0 : i32
    %c0_i32_0 = arith.constant 0 : i32
    %c0_i32_1 = arith.constant 0 : i32
    return %c0_i32, %c0_i32_0 : i32, i32
  }
  func.func @transform_4(%arg0: i32) -> (i32, i32) {
    %c0_i32 = arith.constant 0 : i32
    %c0_i32_0 = arith.constant 0 : i32
    %c0_i32_1 = arith.constant 0 : i32
    return %c0_i32, %c0_i32_0 : i32, i32
  }
  func.func @transform_5(%arg0: i32) -> (i32, i32) {
    %c0_i32 = arith.constant 0 : i32
    %c0_i32_0 = arith.constant 0 : i32
    %c0_i32_1 = arith.constant 0 : i32
    return %c0_i32, %c0_i32_0 : i32, i32
  }
  func.func @transform_6(%arg0: i32) -> (i32, i32) {
    %c0_i32 = arith.constant 0 : i32
    %c0_i32_0 = arith.constant 0 : i32
    %c0_i32_1 = arith.constant 0 : i32
    return %c0_i32, %c0_i32_0 : i32, i32
  }
  func.func @transform_7(%arg0: i32) -> (i32, i32) {
    %c0_i32 = arith.constant 0 : i32
    %c0_i32_0 = arith.constant 0 : i32
    return %arg0, %c0_i32 : i32, i32
  }
}

</mosaic_0001>

<llo_original>
// kernel: den_forward_packed.1
$region0: #{den_forward_packed.1}
  #allocation0 [shape = 'u32[]', space=smem, size = 0x4, offset = 0x4, fixed_abs, tag = 'smem constant byte address 0x4 - core index']
  #allocation1 [shape = 'u32[144,128]{1,0:T(1,128)}', space=vmem, size = 0x12000, scoped, tag = 'internal scratch']
  %s0 = inlined_call_operand.vmem [shape: f32[128,128], index: 0, kind: input, shape index: {}]
  %s1 = inlined_call_operand.vmem [shape: f32[128,128], index: 1, kind: input, shape index: {}]
  %s2 = inlined_call_operand.vmem [shape: f32[1,128], index: 2, kind: input, shape index: {}]
  %s3 = inlined_call_operand.hbm [shape: f32[128,128], index: 3, kind: input, shape index: {}]
  %s4 = inlined_call_operand.vmem [shape: f32[1,128], index: 4, kind: input, shape index: {}]
  %s5 = inlined_call_operand.hbm [shape: f32[128,128], index: 5, kind: input, shape index: {}]
  %s6 = inlined_call_operand.vmem [shape: f32[1,128], index: 6, kind: input, shape index: {}]
  %s7 = inlined_call_operand.vmem [shape: f32[128,128], index: 7, kind: output, shape index: {}]
  %s8 = sld [smem:[#allocation0]]
  $region46: #{den_forward_packed.1} parent=0
    _
  %s10 = ssub.s32 1, %s8
  %s11 = scalar_select 0, %s10, %s8
  $region1: #{den_forward_packed.1} parent=0
    #allocation2 [shape = 'u8[65536]{0}', space=vmem, size = 0x10000, scoped, tag = 'input window, operand 3, single buffered']
    #allocation3 [shape = 's32[1]{0}', space=sflag, size = 0x4, scoped, tag = 'scoped memory for den_forward_packed.1']
    #allocation4 [shape = 'u8[65536]{0}', space=vmem, size = 0x10000, scoped, tag = 'input window, operand 5, single buffered']
    #allocation5 [shape = 's32[1]{0}', space=sflag, size = 0x4, scoped, tag = 'scoped memory for den_forward_packed.1']
    %12 = vsyncpa [#allocation3], 0
    %13 = vsyncpa [#allocation5], 0
    // Predicated region
    $region2: #{den_forward_packed.1} parent=1 // pred_check
      _
    $region3: #{den_forward_packed.1} parent=1 // pred_check_branch
      %15 = sbr.rel (0) target = $region5
    $region4: #{den_forward_packed.1} parent=1 // pred_region
      _
    $region5: #{den_forward_packed.1} parent=1 // pred_fallthru
      _
    // Predicated region
    $region6: #{den_forward_packed.1} parent=1 // pred_check
      _
    $region7: #{den_forward_packed.1} parent=1 // pred_check_branch
      %17 = sbr.rel (0) target = $region9
    $region8: #{den_forward_packed.1} parent=1 // pred_region
      _
    $region9: #{den_forward_packed.1} parent=1 // pred_fallthru
      _
    // Predicated region
    $region10: #{den_forward_packed.1} parent=1 // pred_check
      _
    $region11: #{den_forward_packed.1} parent=1 // pred_check_branch
      %19 = sbr.rel (0) target = $region13
    $region12: #{den_forward_packed.1} parent=1 // pred_region
      _
    $region13: #{den_forward_packed.1} parent=1 // pred_fallthru
      _
    // Predicated region
    $region14: #{den_forward_packed.1} parent=1 // pred_check
      _
    $region15: #{den_forward_packed.1} parent=1 // pred_check_branch
      %21 = sbr.rel (0) target = $region17
    $region16: #{den_forward_packed.1} parent=1 // pred_region
      %s23 = ssub.s32 2048, 2048
      %24 = vsyncadd [#allocation3], %s23
      %s25 = sshll.u32 [#allocation2], 4
      %s26 = int_to_ptr.vmem [resolvable:$true] %s25
      %31 = dma.hbm_to_vmem [thread:$0]  %s3, 2048, %s26, [#allocation3], 128, 128, 8
    $region17: #{den_forward_packed.1} parent=1 // pred_fallthru
      _
    // Predicated region
    $region18: #{den_forward_packed.1} parent=1 // pred_check
      _
    $region19: #{den_forward_packed.1} parent=1 // pred_check_branch
      %33 = sbr.rel (0) target = $region21
    $region20: #{den_forward_packed.1} parent=1 // pred_region
      _
    $region21: #{den_forward_packed.1} parent=1 // pred_fallthru
      _
    // Predicated region
    $region22: #{den_forward_packed.1} parent=1 // pred_check
      _
    $region23: #{den_forward_packed.1} parent=1 // pred_check_branch
      %35 = sbr.rel (0) target = $region25
    $region24: #{den_forward_packed.1} parent=1 // pred_region
      %s37 = ssub.s32 2048, 2048
      %38 = vsyncadd [#allocation5], %s37
      %s39 = sshll.u32 [#allocation4], 4
      %s40 = int_to_ptr.vmem [resolvable:$true] %s39
      %45 = dma.hbm_to_vmem [thread:$0]  %s5, 2048, %s40, [#allocation5], 128, 128, 8
    $region25: #{den_forward_packed.1} parent=1 // pred_fallthru
      _
    // Predicated region
    $region26: #{den_forward_packed.1} parent=1 // pred_check
      _
    $region27: #{den_forward_packed.1} parent=1 // pred_check_branch
      %47 = sbr.rel (0) target = $region29
    $region28: #{den_forward_packed.1} parent=1 // pred_region
      _
    $region29: #{den_forward_packed.1} parent=1 // pred_fallthru
      _
    // Predicated region
    $region30: #{den_forward_packed.1} parent=1 // pred_check
      _
    $region31: #{den_forward_packed.1} parent=1 // pred_check_branch
      %49 = sbr.rel (0) target = $region33
    $region32: #{den_forward_packed.1} parent=1 // pred_region
      %50 = dma.done [#allocation3], 2048
    $region33: #{den_forward_packed.1} parent=1 // pred_fallthru
      _
    // Predicated region
    $region34: #{den_forward_packed.1} parent=1 // pred_check
      _
    $region35: #{den_forward_packed.1} parent=1 // pred_check_branch
      %52 = sbr.rel (0) target = $region37
    $region36: #{den_forward_packed.1} parent=1 // pred_region
      %53 = dma.done [#allocation5], 2048
    $region37: #{den_forward_packed.1} parent=1 // pred_fallthru
      _
    %v54 = vld [vmem:[%s0] sm:$0xff]
    %v55 = vld [vmem:[%s0 + $0x8] sm:$0xff]
    %v56 = vld [vmem:[%s0 + $0x10] sm:$0xff]
    %v57 = vld [vmem:[%s0 + $0x18] sm:$0xff]
    %v58 = vld [vmem:[%s0 + $0x20] sm:$0xff]
    %v59 = vld [vmem:[%s0 + $0x28] sm:$0xff]
    %v60 = vld [vmem:[%s0 + $0x30] sm:$0xff]
    %v61 = vld [vmem:[%s0 + $0x38] sm:$0xff]
    %v62 = vld [vmem:[%s0 + $0x40] sm:$0xff]
    %v63 = vld [vmem:[%s0 + $0x48] sm:$0xff]
    %v64 = vld [vmem:[%s0 + $0x50] sm:$0xff]
    %v65 = vld [vmem:[%s0 + $0x58] sm:$0xff]
    %v66 = vld [vmem:[%s0 + $0x60] sm:$0xff]
    %v67 = vld [vmem:[%s0 + $0x68] sm:$0xff]
    %v68 = vld [vmem:[%s0 + $0x70] sm:$0xff]
    %v69 = vld [vmem:[%s0 + $0x78] sm:$0xff]
    %v70 = vld [vmem:[%s1] sm:$0xff]
    %v71 = vld [vmem:[%s1 + $0x8] sm:$0xff]
    %v72 = vld [vmem:[%s1 + $0x10] sm:$0xff]
    %v73 = vld [vmem:[%s1 + $0x18] sm:$0xff]
    %v74 = vld [vmem:[%s1 + $0x20] sm:$0xff]
    %v75 = vld [vmem:[%s1 + $0x28] sm:$0xff]
    %v76 = vld [vmem:[%s1 + $0x30] sm:$0xff]
    %v77 = vld [vmem:[%s1 + $0x38] sm:$0xff]
    %v78 = vld [vmem:[%s1 + $0x40] sm:$0xff]
    %v79 = vld [vmem:[%s1 + $0x48] sm:$0xff]
    %v80 = vld [vmem:[%s1 + $0x50] sm:$0xff]
    %v81 = vld [vmem:[%s1 + $0x58] sm:$0xff]
    %v82 = vld [vmem:[%s1 + $0x60] sm:$0xff]
    %v83 = vld [vmem:[%s1 + $0x68] sm:$0xff]
    %v84 = vld [vmem:[%s1 + $0x70] sm:$0xff]
    %v85 = vld [vmem:[%s1 + $0x78] sm:$0xff]
    %v86 = vld [vmem:[%s2] sm:$0x1]
    %v88 = vlaneseq
    %v89 = vshrl.u32 %v88, 7
    %v90 = vsub.s32 0, %v89
    %v91 = vrot.slane %v86, %v90
    %93 = vmatprep.subr.mxu0 0.0
    %v94 = vand.u32 %v70, 4294901760
    %95 = vmatpush1.msra.mxu0 %v94
    %96 = vmatprep.subr.mxu0 0.0
    %v97 = vand.u32 %v71, 4294901760
    %98 = vmatpush1.msra.mxu0 %v97
    %99 = vmatprep.subr.mxu0 0.0
    %v100 = vand.u32 %v72, 4294901760
    %101 = vmatpush1.msra.mxu0 %v100
    %102 = vmatprep.subr.mxu0 0.0
    %v103 = vand.u32 %v73, 4294901760
    %104 = vmatpush1.msra.mxu0 %v103
    %105 = vmatprep.subr.mxu0 0.0
    %v106 = vand.u32 %v74, 4294901760
    %107 = vmatpush1.msra.mxu0 %v106
    %108 = vmatprep.subr.mxu0 0.0
    %v109 = vand.u32 %v75, 4294901760
    %110 = vmatpush1.msra.mxu0 %v109
    %111 = vmatprep.subr.mxu0 0.0
    %v112 = vand.u32 %v76, 4294901760
    %113 = vmatpush1.msra.mxu0 %v112
    %114 = vmatprep.subr.mxu0 0.0
    %v115 = vand.u32 %v77, 4294901760
    %116 = vmatpush1.msra.mxu0 %v115
    %117 = vmatprep.subr.mxu0 0.0
    %v118 = vand.u32 %v78, 4294901760
    %119 = vmatpush1.msra.mxu0 %v118
    %120 = vmatprep.subr.mxu0 0.0
    %v121 = vand.u32 %v79, 4294901760
    %122 = vmatpush1.msra.mxu0 %v121
    %123 = vmatprep.subr.mxu0 0.0
    %v124 = vand.u32 %v80, 4294901760
    %125 = vmatpush1.msra.mxu0 %v124
    %126 = vmatprep.subr.mxu0 0.0
    %v127 = vand.u32 %v81, 4294901760
    %128 = vmatpush1.msra.mxu0 %v127
    %129 = vmatprep.subr.mxu0 0.0
    %v130 = vand.u32 %v82, 4294901760
    %131 = vmatpush1.msra.mxu0 %v130
    %132 = vmatprep.subr.mxu0 0.0
    %v133 = vand.u32 %v83, 4294901760
    %134 = vmatpush1.msra.mxu0 %v133
    %135 = vmatprep.subr.mxu0 0.0
    %v136 = vand.u32 %v84, 4294901760
    %137 = vmatpush1.msra.mxu0 %v136
    %138 = vmatprep.subr.mxu0 0.0
    %v139 = vand.u32 %v85, 4294901760
    %140 = vmatpush1.msra.mxu0 %v139
    %141 = vmatprep.subr.mxu0 0.0
    %142 = vmatpush1.msra.mxu0 0.0
    %143 = vmatprep.subr.mxu0 0.0
    %144 = vmatpush1.msra.mxu0 0.0
    %145 = vmatprep.subr.mxu0 0.0
    %146 = vmatpush1.msra.mxu0 0.0
    %147 = vmatprep.subr.mxu0 0.0
    %148 = vmatpush1.msra.mxu0 0.0
    %149 = vmatprep.subr.mxu0 0.0
    %150 = vmatpush1.msra.mxu0 0.0
    %151 = vmatprep.subr.mxu0 0.0
    %152 = vmatpush1.msra.mxu0 0.0
    %153 = vmatprep.subr.mxu0 0.0
    %154 = vmatpush1.msra.mxu0 0.0
    %155 = vmatprep.subr.mxu0 0.0
    %156 = vmatpush1.msra.mxu0 0.0
    %157 = vmatprep.subr.mxu0 0.0
    %158 = vmatpush1.msra.mxu0 0.0
    %159 = vmatprep.subr.mxu0 0.0
    %160 = vmatpush1.msra.mxu0 0.0
    %161 = vmatprep.subr.mxu0 0.0
    %162 = vmatpush1.msra.mxu0 0.0
    %163 = vmatprep.subr.mxu0 0.0
    %164 = vmatpush1.msra.mxu0 0.0
    %165 = vmatprep.subr.mxu0 0.0
    %166 = vmatpush1.msra.mxu0 0.0
    %167 = vmatprep.subr.mxu0 0.0
    %168 = vmatpush1.msra.mxu0 0.0
    %169 = vmatprep.subr.mxu0 0.0
    %170 = vmatpush1.msra.mxu0 0.0
    %171 = vmatprep.subr.mxu0 0.0
    %172 = vmatpush1.msra.mxu0 0.0
    %173 = vmatprep.mubr.f32.mxu0 0.0
    %v174 = vand.u32 %v54, 4294901760
    %v175 = vsub.f32 %v54, %v174
    %v176 = vand.u32 %v175, 4294901760
    %v177 = vsub.f32 %v175, %v176
    %v178 = vand.u32 %v177, 4294901760
    %179 = vmatmul.mubr.f32.gmra.mrb[0].mxu0 %v178
    %v180 = vpop.f32.mrb[0].mxu0
    %v181 = vadd.f32 %v91, %v180
    %v182 = vpop.f32.mrb[0].mxu0
    %183 = vmatprep.mubr.f32.mxu0 0.0
    %v184 = vand.u32 %v55, 4294901760
    %v185 = vsub.f32 %v55, %v184
    %v186 = vand.u32 %v185, 4294901760
    %v187 = vsub.f32 %v185, %v186
    %v188 = vand.u32 %v187, 4294901760
    %189 = vmatmul.mubr.f32.gmra.mrb[0].mxu0 %v188
    %v190 = vpop.f32.mrb[0].mxu0
    %v191 = vadd.f32 %v91, %v190
    %v192 = vpop.f32.mrb[0].mxu0
    %193 = vmatprep.mubr.f32.mxu0 0.0
    %v194 = vand.u32 %v56, 4294901760
    %v195 = vsub.f32 %v56, %v194
    %v196 = vand.u32 %v195, 4294901760
    %v197 = vsub.f32 %v195, %v196
    %v198 = vand.u32 %v197, 4294901760
    %199 = vmatmul.mubr.f32.gmra.mrb[0].mxu0 %v198
    %v200 = vpop.f32.mrb[0].mxu0
    %v201 = vadd.f32 %v91, %v200
    %v202 = vpop.f32.mrb[0].mxu0
    %203 = vmatprep.mubr.f32.mxu0 0.0
    %v204 = vand.u32 %v57, 4294901760
    %v205 = vsub.f32 %v57, %v204
    %v206 = vand.u32 %v205, 4294901760
    %v207 = vsub.f32 %v205, %v206
    %v208 = vand.u32 %v207, 4294901760
    %209 = vmatmul.mubr.f32.gmra.mrb[0].mxu0 %v208
    %v210 = vpop.f32.mrb[0].mxu0
    %v211 = vadd.f32 %v91, %v210
    %v212 = vpop.f32.mrb[0].mxu0
    %213 = vmatprep.mubr.f32.mxu0 0.0
    %v214 = vand.u32 %v58, 4294901760
    %v215 = vsub.f32 %v58, %v214
    %v216 = vand.u32 %v215, 4294901760
    %v217 = vsub.f32 %v215, %v216
    %v218 = vand.u32 %v217, 4294901760
    %219 = vmatmul.mubr.f32.gmra.mrb[0].mxu0 %v218
    %v220 = vpop.f32.mrb[0].mxu0
    %v221 = vadd.f32 %v91, %v220
    %v222 = vpop.f32.mrb[0].mxu0
    %223 = vmatprep.mubr.f32.mxu0 0.0
    %v224 = vand.u32 %v59, 4294901760
    %v225 = vsub.f32 %v59, %v224
    %v226 = vand.u32 %v225, 4294901760
    %v227 = vsub.f32 %v225, %v226
    %v228 = vand.u32 %v227, 4294901760
    %229 = vmatmul.mubr.f32.gmra.mrb[0].mxu0 %v228
    %v230 = vpop.f32.mrb[0].mxu0
    %v231 = vadd.f32 %v91, %v230
    %v232 = vpop.f32.mrb[0].mxu0
    %233 = vmatprep.mubr.f32.mxu0 0.0
    %v234 = vand.u32 %v60, 4294901760
    %v235 = vsub.f32 %v60, %v234
    %v236 = vand.u32 %v235, 4294901760
    %v237 = vsub.f32 %v235, %v236
    %v238 = vand.u32 %v237, 4294901760
    %239 = vmatmul.mubr.f32.gmra.mrb[0].mxu0 %v238
    %v240 = vpop.f32.mrb[0].mxu0
    %v241 = vadd.f32 %v91, %v240
    %v242 = vpop.f32.mrb[0].mxu0
    %243 = vmatprep.mubr.f32.mxu0 0.0
    %v244 = vand.u32 %v61, 4294901760
    %v245 = vsub.f32 %v61, %v244
    %v246 = vand.u32 %v245, 4294901760
    %v247 = vsub.f32 %v245, %v246
    %v248 = vand.u32 %v247, 4294901760
    %249 = vmatmul.mubr.f32.gmra.mrb[0].mxu0 %v248
    %v250 = vpop.f32.mrb[0].mxu0
    %v251 = vadd.f32 %v91, %v250
    %v252 = vpop.f32.mrb[0].mxu0
    %253 = vmatprep.mubr.f32.mxu0 0.0
    %v254 = vand.u32 %v62, 4294901760
    %v255 = vsub.f32 %v62, %v254
    %v256 = vand.u32 %v255, 4294901760
    %v257 = vsub.f32 %v255, %v256
    %v258 = vand.u32 %v257, 4294901760
    %259 = vmatmul.mubr.f32.gmra.mrb[0].mxu0 %v258
    %v260 = vpop.f32.mrb[0].mxu0
    %v261 = vadd.f32 %v91, %v260
    %v262 = vpop.f32.mrb[0].mxu0
    %263 = vmatprep.mubr.f32.mxu0 0.0
    %v264 = vand.u32 %v63, 4294901760
    %v265 = vsub.f32 %v63, %v264
    %v266 = vand.u32 %v265, 4294901760
    %v267 = vsub.f32 %v265, %v266
    %v268 = vand.u32 %v267, 4294901760
    %269 = vmatmul.mubr.f32.gmra.mrb[0].mxu0 %v268
    %v270 = vpop.f32.mrb[0].mxu0
    %v271 = vadd.f32 %v91, %v270
    %v272 = vpop.f32.mrb[0].mxu0
    %273 = vmatprep.mubr.f32.mxu0 0.0
    %v274 = vand.u32 %v64, 4294901760
    %v275 = vsub.f32 %v64, %v274
    %v276 = vand.u32 %v275, 4294901760
    %v277 = vsub.f32 %v275, %v276
    %v278 = vand.u32 %v277, 4294901760
    %279 = vmatmul.mubr.f32.gmra.mrb[0].mxu0 %v278
    %v280 = vpop.f32.mrb[0].mxu0
    %v281 = vadd.f32 %v91, %v280
    %v282 = vpop.f32.mrb[0].mxu0
    %283 = vmatprep.mubr.f32.mxu0 0.0
    %v284 = vand.u32 %v65, 4294901760
    %v285 = vsub.f32 %v65, %v284
    %v286 = vand.u32 %v285, 4294901760
    %v287 = vsub.f32 %v285, %v286
    %v288 = vand.u32 %v287, 4294901760
    %289 = vmatmul.mubr.f32.gmra.mrb[0].mxu0 %v288
    %v290 = vpop.f32.mrb[0].mxu0
    %v291 = vadd.f32 %v91, %v290
    %v292 = vpop.f32.mrb[0].mxu0
    %293 = vmatprep.mubr.f32.mxu0 0.0
    %v294 = vand.u32 %v66, 4294901760
    %v295 = vsub.f32 %v66, %v294
    %v296 = vand.u32 %v295, 4294901760
    %v297 = vsub.f32 %v295, %v296
    %v298 = vand.u32 %v297, 4294901760
    %299 = vmatmul.mubr.f32.gmra.mrb[0].mxu0 %v298
    %v300 = vpop.f32.mrb[0].mxu0
    %v301 = vadd.f32 %v91, %v300
    %v302 = vpop.f32.mrb[0].mxu0
    %303 = vmatprep.mubr.f32.mxu0 0.0
    %v304 = vand.u32 %v67, 4294901760
    %v305 = vsub.f32 %v67, %v304
    %v306 = vand.u32 %v305, 4294901760
    %v307 = vsub.f32 %v305, %v306
    %v308 = vand.u32 %v307, 4294901760
    %309 = vmatmul.mubr.f32.gmra.mrb[0].mxu0 %v308
    %v310 = vpop.f32.mrb[0].mxu0
    %v311 = vadd.f32 %v91, %v310
    %v312 = vpop.f32.mrb[0].mxu0
    %313 = vmatprep.mubr.f32.mxu0 0.0
    %v314 = vand.u32 %v68, 4294901760
    %v315 = vsub.f32 %v68, %v314
    %v316 = vand.u32 %v315, 4294901760
    %v317 = vsub.f32 %v315, %v316
    %v318 = vand.u32 %v317, 4294901760
    %319 = vmatmul.mubr.f32.gmra.mrb[0].mxu0 %v318
    %v320 = vpop.f32.mrb[0].mxu0
    %v321 = vadd.f32 %v91, %v320
    %v322 = vpop.f32.mrb[0].mxu0
    %323 = vmatprep.mubr.f32.mxu0 0.0
    %v324 = vand.u32 %v69, 4294901760
    %v325 = vsub.f32 %v69, %v324
    %v326 = vand.u32 %v325, 4294901760
    %v327 = vsub.f32 %v325, %v326
    %v328 = vand.u32 %v327, 4294901760
    %329 = vmatmul.mubr.f32.gmra.mrb[0].mxu0 %v328
    %v330 = vpop.f32.mrb[0].mxu0
    %v331 = vadd.f32 %v91, %v330
    %v332 = vpop.f32.mrb[0].mxu0
    %333 = vdwg.mxu0
    %334 = vmatprep.subr.mxu0 0.0
    %v335 = vand.u32 %v70, 4294901760
    %v336 = vsub.f32 %v70, %v335
    %v337 = vand.u32 %v336, 4294901760
    %v338 = vsub.f32 %v336, %v337
    %v339 = vand.u32 %v338, 4294901760
    %340 = vmatpush1.msra.mxu0 %v339
    %341 = vmatprep.subr.mxu0 0.0
    %v342 = vand.u32 %v71, 4294901760
    %v343 = vsub.f32 %v71, %v342
    %v344 = vand.u32 %v343, 4294901760
    %v345 = vsub.f32 %v343, %v344
    %v346 = vand.u32 %v345, 4294901760
    %347 = vmatpush1.msra.mxu0 %v346
    %348 = vmatprep.subr.mxu0 0.0
    %v349 = vand.u32 %v72, 4294901760
    %v350 = vsub.f32 %v72, %v349
    %v351 = vand.u32 %v350, 4294901760
    %v352 = vsub.f32 %v350, %v351
    %v353 = vand.u32 %v352, 4294901760
    %354 = vmatpush1.msra.mxu0 %v353
    %355 = vmatprep.subr.mxu0 0.0
    %v356 = vand.u32 %v73, 4294901760
    %v357 = vsub.f32 %v73, %v356
    %v358 = vand.u32 %v357, 4294901760
    %v359 = vsub.f32 %v357, %v358
    %v360 = vand.u32 %v359, 4294901760
    %361 = vmatpush1.msra.mxu0 %v360
    %362 = vmatprep.subr.mxu0 0.0
    %v363 = vand.u32 %v74, 4294901760
    %v364 = vsub.f32 %v74, %v363
    %v365 = vand.u32 %v364, 4294901760
    %v366 = vsub.f32 %v364, %v365
    %v367 = vand.u32 %v366, 4294901760
    %368 = vmatpush1.msra.mxu0 %v367
    %369 = vmatprep.subr.mxu0 0.0
    %v370 = vand.u32 %v75, 4294901760
    %v371 = vsub.f32 %v75, %v370
    %v372 = vand.u32 %v371, 4294901760
    %v373 = vsub.f32 %v371, %v372
    %v374 = vand.u32 %v373, 4294901760
    %375 = vmatpush1.msra.mxu0 %v374
    %376 = vmatprep.subr.mxu0 0.0
    %v377 = vand.u32 %v76, 4294901760
    %v378 = vsub.f32 %v76, %v377
    %v379 = vand.u32 %v378, 4294901760
    %v380 = vsub.f32 %v378, %v379
    %v381 = vand.u32 %v380, 4294901760
    %382 = vmatpush1.msra.mxu0 %v381
    %383 = vmatprep.subr.mxu0 0.0
    %v384 = vand.u32 %v77, 4294901760
    %v385 = vsub.f32 %v77, %v384
    %v386 = vand.u32 %v385, 4294901760
    %v387 = vsub.f32 %v385, %v386
    %v388 = vand.u32 %v387, 4294901760
    %389 = vmatpush1.msra.mxu0 %v388
    %390 = vmatprep.subr.mxu0 0.0
    %v391 = vand.u32 %v78, 4294901760
    %v392 = vsub.f32 %v78, %v391
    %v393 = vand.u32 %v392, 4294901760
    %v394 = vsub.f32 %v392, %v393
    %v395 = vand.u32 %v394, 4294901760
    %396 = vmatpush1.msra.mxu0 %v395
    %397 = vmatprep.subr.mxu0 0.0
    %v398 = vand.u32 %v79, 4294901760
    %v399 = vsub.f32 %v79, %v398
    %v400 = vand.u32 %v399, 4294901760
    %v401 = vsub.f32 %v399, %v400
    %v402 = vand.u32 %v401, 4294901760
    %403 = vmatpush1.msra.mxu0 %v402
    %404 = vmatprep.subr.mxu0 0.0
    %v405 = vand.u32 %v80, 4294901760
    %v406 = vsub.f32 %v80, %v405
    %v407 = vand.u32 %v406, 4294901760
    %v408 = vsub.f32 %v406, %v407
    %v409 = vand.u32 %v408, 4294901760
    %410 = vmatpush1.msra.mxu0 %v409
    %411 = vmatprep.subr.mxu0 0.0
    %v412 = vand.u32 %v81, 4294901760
    %v413 = vsub.f32 %v81, %v412
    %v414 = vand.u32 %v413, 4294901760
    %v415 = vsub.f32 %v413, %v414
    %v416 = vand.u32 %v415, 4294901760
    %417 = vmatpush1.msra.mxu0 %v416
    %418 = vmatprep.subr.mxu0 0.0
    %v419 = vand.u32 %v82, 4294901760
    %v420 = vsub.f32 %v82, %v419
    %v421 = vand.u32 %v420, 4294901760
    %v422 = vsub.f32 %v420, %v421
    %v423 = vand.u32 %v422, 4294901760
    %424 = vmatpush1.msra.mxu0 %v423
    %425 = vmatprep.subr.mxu0 0.0
    %v426 = vand.u32 %v83, 4294901760
    %v427 = vsub.f32 %v83, %v426
    %v428 = vand.u32 %v427, 4294901760
    %v429 = vsub.f32 %v427, %v428
    %v430 = vand.u32 %v429, 4294901760
    %431 = vmatpush1.msra.mxu0 %v430
    %432 = vmatprep.subr.mxu0 0.0
    %v433 = vand.u32 %v84, 4294901760
    %v434 = vsub.f32 %v84, %v433
    %v435 = vand.u32 %v434, 4294901760
    %v436 = vsub.f32 %v434, %v435
    %v437 = vand.u32 %v436, 4294901760
    %438 = vmatpush1.msra.mxu0 %v437
    %439 = vmatprep.subr.mxu0 0.0
    %v440 = vand.u32 %v85, 4294901760
    %v441 = vsub.f32 %v85, %v440
    %v442 = vand.u32 %v441, 4294901760
    %v443 = vsub.f32 %v441, %v442
    %v444 = vand.u32 %v443, 4294901760
    %445 = vmatpush1.msra.mxu0 %v444
    %446 = vmatprep.subr.mxu0 0.0
    %447 = vmatpush1.msra.mxu0 0.0
    %448 = vmatprep.subr.mxu0 0.0
    %449 = vmatpush1.msra.mxu0 0.0
    %450 = vmatprep.subr.mxu0 0.0
    %451 = vmatpush1.msra.mxu0 0.0
    %452 = vmatprep.subr.mxu0 0.0
    %453 = vmatpush1.msra.mxu0 0.0
    %454 = vmatprep.subr.mxu0 0.0
    %455 = vmatpush1.msra.mxu0 0.0
    %456 = vmatprep.subr.mxu0 0.0
    %457 = vmatpush1.msra.mxu0 0.0
    %458 = vmatprep.subr.mxu0 0.0
    %459 = vmatpush1.msra.mxu0 0.0
    %460 = vmatprep.subr.mxu0 0.0
    %461 = vmatpush1.msra.mxu0 0.0
    %462 = vmatprep.subr.mxu0 0.0
    %463 = vmatpush1.msra.mxu0 0.0
    %464 = vmatprep.subr.mxu0 0.0
    %465 = vmatpush1.msra.mxu0 0.0
    %466 = vmatprep.subr.mxu0 0.0
    %467 = vmatpush1.msra.mxu0 0.0
    %468 = vmatprep.subr.mxu0 0.0
    %469 = vmatpush1.msra.mxu0 0.0
    %470 = vmatprep.subr.mxu0 0.0
    %471 = vmatpush1.msra.mxu0 0.0
    %472 = vmatprep.subr.mxu0 0.0
    %473 = vmatpush1.msra.mxu0 0.0
    %474 = vmatprep.subr.mxu0 0.0
    %475 = vmatpush1.msra.mxu0 0.0
    %476 = vmatprep.subr.mxu0 0.0
    %477 = vmatpush1.msra.mxu0 0.0
    %478 = vmatprep.mubr.f32.mxu0 0.0
    %v479 = vand.u32 %v54, 4294901760
    %480 = vmatmul.mubr.f32.gmra.mrb[0].mxu0 %v479
    %v481 = vpop.f32.mrb[0].mxu0
    %v482 = vadd.f32 %v181, %v481
    %v483 = vpop.f32.mrb[0].mxu0
    %484 = vmatprep.mubr.f32.mxu0 0.0
    %v485 = vand.u32 %v55, 4294901760
    %486 = vmatmul.mubr.f32.gmra.mrb[0].mxu0 %v485
    %v487 = vpop.f32.mrb[0].mxu0
    %v488 = vadd.f32 %v191, %v487
    %v489 = vpop.f32.mrb[0].mxu0
    %490 = vmatprep.mubr.f32.mxu0 0.0
    %v491 = vand.u32 %v56, 4294901760
    %492 = vmatmul.mubr.f32.gmra.mrb[0].mxu0 %v491
    %v493 = vpop.f32.mrb[0].mxu0
    %v494 = vadd.f32 %v201, %v493
    %v495 = vpop.f32.mrb[0].mxu0
    %496 = vmatprep.mubr.f32.mxu0 0.0
    %v497 = vand.u32 %v57, 4294901760
    %498 = vmatmul.mubr.f32.gmra.mrb[0].mxu0 %v497
    %v499 = vpop.f32.mrb[0].mxu0
    %v500 = vadd.f32 %v211, %v499
    %v501 = vpop.f32.mrb[0].mxu0
    %502 = vmatprep.mubr.f32.mxu0 0.0
    %v503 = vand.u32 %v58, 4294901760
    %504 = vmatmul.mubr.f32.gmra.mrb[0].mxu0 %v503
    %v505 = vpop.f32.mrb[0].mxu0
    %v506 = vadd.f32 %v221, %v505
    %v507 = vpop.f32.mrb[0].mxu0
    %508 = vmatprep.mubr.f32.mxu0 0.0
    %v509 = vand.u32 %v59, 4294901760
    %510 = vmatmul.mubr.f32.gmra.mrb[0].mxu0 %v509
    %v511 = vpop.f32.mrb[0].mxu0
    %v512 = vadd.f32 %v231, %v511
    %v513 = vpop.f32.mrb[0].mxu0
    %514 = vmatprep.mubr.f32.mxu0 0.0
    %v515 = vand.u32 %v60, 4294901760
    %516 = vmatmul.mubr.f32.gmra.mrb[0].mxu0 %v515
    %v517 = vpop.f32.mrb[0].mxu0
    %v518 = vadd.f32 %v241, %v517
    %v519 = vpop.f32.mrb[0].mxu0
    %520 = vmatprep.mubr.f32.mxu0 0.0
    %v521 = vand.u32 %v61, 4294901760
    %522 = vmatmul.mubr.f32.gmra.mrb[0].mxu0 %v521
    %v523 = vpop.f32.mrb[0].mxu0
    %v524 = vadd.f32 %v251, %v523
    %v525 = vpop.f32.mrb[0].mxu0
    %526 = vmatprep.mubr.f32.mxu0 0.0
    %v527 = vand.u32 %v62, 4294901760
    %528 = vmatmul.mubr.f32.gmra.mrb[0].mxu0 %v527
    %v529 = vpop.f32.mrb[0].mxu0
    %v530 = vadd.f32 %v261, %v529
    %v531 = vpop.f32.mrb[0].mxu0
    %532 = vmatprep.mubr.f32.mxu0 0.0
    %v533 = vand.u32 %v63, 4294901760
    %534 = vmatmul.mubr.f32.gmra.mrb[0].mxu0 %v533
    %v535 = vpop.f32.mrb[0].mxu0
    %v536 = vadd.f32 %v271, %v535
    %v537 = vpop.f32.mrb[0].mxu0
    %538 = vmatprep.mubr.f32.mxu0 0.0
    %v539 = vand.u32 %v64, 4294901760
    %540 = vmatmul.mubr.f32.gmra.mrb[0].mxu0 %v539
    %v541 = vpop.f32.mrb[0].mxu0
    %v542 = vadd.f32 %v281, %v541
    %v543 = vpop.f32.mrb[0].mxu0
    %544 = vmatprep.mubr.f32.mxu0 0.0
    %v545 = vand.u32 %v65, 4294901760
    %546 = vmatmul.mubr.f32.gmra.mrb[0].mxu0 %v545
    %v547 = vpop.f32.mrb[0].mxu0
    %v548 = vadd.f32 %v291, %v547
    %v549 = vpop.f32.mrb[0].mxu0
    %550 = vmatprep.mubr.f32.mxu0 0.0
    %v551 = vand.u32 %v66, 4294901760
    %552 = vmatmul.mubr.f32.gmra.mrb[0].mxu0 %v551
    %v553 = vpop.f32.mrb[0].mxu0
    %v554 = vadd.f32 %v301, %v553
    %v555 = vpop.f32.mrb[0].mxu0
    %556 = vmatprep.mubr.f32.mxu0 0.0
    %v557 = vand.u32 %v67, 4294901760
    %558 = vmatmul.mubr.f32.gmra.mrb[0].mxu0 %v557
    %v559 = vpop.f32.mrb[0].mxu0
    %v560 = vadd.f32 %v311, %v559
    %v561 = vpop.f32.mrb[0].mxu0
    %562 = vmatprep.mubr.f32.mxu0 0.0
    %v563 = vand.u32 %v68, 4294901760
    %564 = vmatmul.mubr.f32.gmra.mrb[0].mxu0 %v563
    %v565 = vpop.f32.mrb[0].mxu0
    %v566 = vadd.f32 %v321, %v565
    %v567 = vpop.f32.mrb[0].mxu0
    %568 = vmatprep.mubr.f32.mxu0 0.0
    %v569 = vand.u32 %v69, 4294901760
    %570 = vmatmul.mubr.f32.gmra.mrb[0].mxu0 %v569
    %v571 = vpop.f32.mrb[0].mxu0
    %v572 = vadd.f32 %v331, %v571
    %v573 = vpop.f32.mrb[0].mxu0
    %574 = vdwg.mxu0
    %575 = vmatprep.subr.mxu0 0.0
    %v576 = vand.u32 %v70, 4294901760
    %v577 = vsub.f32 %v70, %v576
    %578 = vmatpush1.msra.mxu0 %v577
    %579 = vmatprep.subr.mxu0 0.0
    %v580 = vand.u32 %v71, 4294901760
    %v581 = vsub.f32 %v71, %v580
    %582 = vmatpush1.msra.mxu0 %v581
    %583 = vmatprep.subr.mxu0 0.0
    %v584 = vand.u32 %v72, 4294901760
    %v585 = vsub.f32 %v72, %v584
    %586 = vmatpush1.msra.mxu0 %v585
    %587 = vmatprep.subr.mxu0 0.0
    %v588 = vand.u32 %v73, 4294901760
    %v589 = vsub.f32 %v73, %v588
    %590 = vmatpush1.msra.mxu0 %v589
    %591 = vmatprep.subr.mxu0 0.0
    %v592 = vand.u32 %v74, 4294901760
    %v593 = vsub.f32 %v74, %v592
    %594 = vmatpush1.msra.mxu0 %v593
    %595 = vmatprep.subr.mxu0 0.0
    %v596 = vand.u32 %v75, 4294901760
    %v597 = vsub.f32 %v75, %v596
    %598 = vmatpush1.msra.mxu0 %v597
    %599 = vmatprep.subr.mxu0 0.0
    %v600 = vand.u32 %v76, 4294901760
    %v601 = vsub.f32 %v76, %v600
    %602 = vmatpush1.msra.mxu0 %v601
    %603 = vmatprep.subr.mxu0 0.0
    %v604 = vand.u32 %v77, 4294901760
    %v605 = vsub.f32 %v77, %v604
    %606 = vmatpush1.msra.mxu0 %v605
    %607 = vmatprep.subr.mxu0 0.0
    %v608 = vand.u32 %v78, 4294901760
    %v609 = vsub.f32 %v78, %v608
    %610 = vmatpush1.msra.mxu0 %v609
    %611 = vmatprep.subr.mxu0 0.0
    %v612 = vand.u32 %v79, 4294901760
    %v613 = vsub.f32 %v79, %v612
    %614 = vmatpush1.msra.mxu0 %v613
    %615 = vmatprep.subr.mxu0 0.0
    %v616 = vand.u32 %v80, 4294901760
    %v617 = vsub.f32 %v80, %v616
    %618 = vmatpush1.msra.mxu0 %v617
    %619 = vmatprep.subr.mxu0 0.0
    %v620 = vand.u32 %v81, 4294901760
    %v621 = vsub.f32 %v81, %v620
    %622 = vmatpush1.msra.mxu0 %v621
    %623 = vmatprep.subr.mxu0 0.0
    %v624 = vand.u32 %v82, 4294901760
    %v625 = vsub.f32 %v82, %v624
    %626 = vmatpush1.msra.mxu0 %v625
    %627 = vmatprep.subr.mxu0 0.0
    %v628 = vand.u32 %v83, 4294901760
    %v629 = vsub.f32 %v83, %v628
    %630 = vmatpush1.msra.mxu0 %v629
    %631 = vmatprep.subr.mxu0 0.0
    %v632 = vand.u32 %v84, 4294901760
    %v633 = vsub.f32 %v84, %v632
    %634 = vmatpush1.msra.mxu0 %v633
    %635 = vmatprep.subr.mxu0 0.0
    %v636 = vand.u32 %v85, 4294901760
    %v637 = vsub.f32 %v85, %v636
    %638 = vmatpush1.msra.mxu0 %v637
    %639 = vmatprep.subr.mxu0 0.0
    %640 = vmatpush1.msra.mxu0 0.0
    %641 = vmatprep.subr.mxu0 0.0
    %642 = vmatpush1.msra.mxu0 0.0
    %643 = vmatprep.subr.mxu0 0.0
    %644 = vmatpush1.msra.mxu0 0.0
    %645 = vmatprep.subr.mxu0 0.0
    %646 = vmatpush1.msra.mxu0 0.0
    %647 = vmatprep.subr.mxu0 0.0
    %648 = vmatpush1.msra.mxu0 0.0
    %649 = vmatprep.subr.mxu0 0.0
    %650 = vmatpush1.msra.mxu0 0.0
    %651 = vmatprep.subr.mxu0 0.0
    %652 = vmatpush1.msra.mxu0 0.0
    %653 = vmatprep.subr.mxu0 0.0
    %654 = vmatpush1.msra.mxu0 0.0
    %655 = vmatprep.subr.mxu0 0.0
    %656 = vmatpush1.msra.mxu0 0.0
    %657 = vmatprep.subr.mxu0 0.0
    %658 = vmatpush1.msra.mxu0 0.0
    %659 = vmatprep.subr.mxu0 0.0
    %660 = vmatpush1.msra.mxu0 0.0
    %661 = vmatprep.subr.mxu0 0.0
    %662 = vmatpush1.msra.mxu0 0.0
    %663 = vmatprep.subr.mxu0 0.0
    %664 = vmatpush1.msra.mxu0 0.0
    %665 = vmatprep.subr.mxu0 0.0
    %666 = vmatpush1.msra.mxu0 0.0
    %667 = vmatprep.subr.mxu0 0.0
    %668 = vmatpush1.msra.mxu0 0.0
    %669 = vmatprep.subr.mxu0 0.0
    %670 = vmatpush1.msra.mxu0 0.0
    %671 = vmatprep.mubr.f32.mxu0 0.0
    %v672 = vand.u32 %v54, 4294901760
    %v673 = vsub.f32 %v54, %v672
    %674 = vmatmul.mubr.f32.gmra.mrb[0].mxu0 %v673
    %v675 = vpop.f32.mrb[0].mxu0
    %v676 = vadd.f32 %v482, %v675
    %v677 = vpop.f32.mrb[0].mxu0
    %678 = vmatprep.mubr.f32.mxu0 0.0
    %v679 = vand.u32 %v55, 4294901760
    %v680 = vsub.f32 %v55, %v679
    %681 = vmatmul.mubr.f32.gmra.mrb[0].mxu0 %v680
    %v682 = vpop.f32.mrb[0].mxu0
    %v683 = vadd.f32 %v488, %v682
    %v684 = vpop.f32.mrb[0].mxu0
    %685 = vmatprep.mubr.f32.mxu0 0.0
    %v686 = vand.u32 %v56, 4294901760
    %v687 = vsub.f32 %v56, %v686
    %688 = vmatmul.mubr.f32.gmra.mrb[0].mxu0 %v687
    %v689 = vpop.f32.mrb[0].mxu0
    %v690 = vadd.f32 %v494, %v689
    %v691 = vpop.f32.mrb[0].mxu0
    %692 = vmatprep.mubr.f32.mxu0 0.0
    %v693 = vand.u32 %v57, 4294901760
    %v694 = vsub.f32 %v57, %v693
    %695 = vmatmul.mubr.f32.gmra.mrb[0].mxu0 %v694
    %v696 = vpop.f32.mrb[0].mxu0
    %v697 = vadd.f32 %v500, %v696
    %v698 = vpop.f32.mrb[0].mxu0
    %699 = vmatprep.mubr.f32.mxu0 0.0
    %v700 = vand.u32 %v58, 4294901760
    %v701 = vsub.f32 %v58, %v700
    %702 = vmatmul.mubr.f32.gmra.mrb[0].mxu0 %v701
    %v703 = vpop.f32.mrb[0].mxu0
    %v704 = vadd.f32 %v506, %v703
    %v705 = vpop.f32.mrb[0].mxu0
    %706 = vmatprep.mubr.f32.mxu0 0.0
    %v707 = vand.u32 %v59, 4294901760
    %v708 = vsub.f32 %v59, %v707
    %709 = vmatmul.mubr.f32.gmra.mrb[0].mxu0 %v708
    %v710 = vpop.f32.mrb[0].mxu0
    %v711 = vadd.f32 %v512, %v710
    %v712 = vpop.f32.mrb[0].mxu0
    %713 = vmatprep.mubr.f32.mxu0 0.0
    %v714 = vand.u32 %v60, 4294901760
    %v715 = vsub.f32 %v60, %v714
    %716 = vmatmul.mubr.f32.gmra.mrb[0].mxu0 %v715
    %v717 = vpop.f32.mrb[0].mxu0
    %v718 = vadd.f32 %v518, %v717
    %v719 = vpop.f32.mrb[0].mxu0
    %720 = vmatprep.mubr.f32.mxu0 0.0
    %v721 = vand.u32 %v61, 4294901760
    %v722 = vsub.f32 %v61, %v721
    %723 = vmatmul.mubr.f32.gmra.mrb[0].mxu0 %v722
    %v724 = vpop.f32.mrb[0].mxu0
    %v725 = vadd.f32 %v524, %v724
    %v726 = vpop.f32.mrb[0].mxu0
    %727 = vmatprep.mubr.f32.mxu0 0.0
    %v728 = vand.u32 %v62, 4294901760
    %v729 = vsub.f32 %v62, %v728
    %730 = vmatmul.mubr.f32.gmra.mrb[0].mxu0 %v729
    %v731 = vpop.f32.mrb[0].mxu0
    %v732 = vadd.f32 %v530, %v731
    %v733 = vpop.f32.mrb[0].mxu0
    %734 = vmatprep.mubr.f32.mxu0 0.0
    %v735 = vand.u32 %v63, 4294901760
    %v736 = vsub.f32 %v63, %v735
    %737 = vmatmul.mubr.f32.gmra.mrb[0].mxu0 %v736
    %v738 = vpop.f32.mrb[0].mxu0
    %v739 = vadd.f32 %v536, %v738
    %v740 = vpop.f32.mrb[0].mxu0
    %741 = vmatprep.mubr.f32.mxu0 0.0
    %v742 = vand.u32 %v64, 4294901760
    %v743 = vsub.f32 %v64, %v742
    %744 = vmatmul.mubr.f32.gmra.mrb[0].mxu0 %v743
    %v745 = vpop.f32.mrb[0].mxu0
    %v746 = vadd.f32 %v542, %v745
    %v747 = vpop.f32.mrb[0].mxu0
    %748 = vmatprep.mubr.f32.mxu0 0.0
    %v749 = vand.u32 %v65, 4294901760
    %v750 = vsub.f32 %v65, %v749
    %751 = vmatmul.mubr.f32.gmra.mrb[0].mxu0 %v750
    %v752 = vpop.f32.mrb[0].mxu0
    %v753 = vadd.f32 %v548, %v752
    %v754 = vpop.f32.mrb[0].mxu0
    %755 = vmatprep.mubr.f32.mxu0 0.0
    %v756 = vand.u32 %v66, 4294901760
    %v757 = vsub.f32 %v66, %v756
    %758 = vmatmul.mubr.f32.gmra.mrb[0].mxu0 %v757
    %v759 = vpop.f32.mrb[0].mxu0
    %v760 = vadd.f32 %v554, %v759
    %v761 = vpop.f32.mrb[0].mxu0
    %762 = vmatprep.mubr.f32.mxu0 0.0
    %v763 = vand.u32 %v67, 4294901760
    %v764 = vsub.f32 %v67, %v763
    %765 = vmatmul.mubr.f32.gmra.mrb[0].mxu0 %v764
    %v766 = vpop.f32.mrb[0].mxu0
    %v767 = vadd.f32 %v560, %v766
    %v768 = vpop.f32.mrb[0].mxu0
    %769 = vmatprep.mubr.f32.mxu0 0.0
    %v770 = vand.u32 %v68, 4294901760
    %v771 = vsub.f32 %v68, %v770
    %772 = vmatmul.mubr.f32.gmra.mrb[0].mxu0 %v771
    %v773 = vpop.f32.mrb[0].mxu0
    %v774 = vadd.f32 %v566, %v773
    %v775 = vpop.f32.mrb[0].mxu0
    %776 = vmatprep.mubr.f32.mxu0 0.0
    %v777 = vand.u32 %v69, 4294901760
    %v778 = vsub.f32 %v69, %v777
    %779 = vmatmul.mubr.f32.gmra.mrb[0].mxu0 %v778
    %v780 = vpop.f32.mrb[0].mxu0
    %v781 = vadd.f32 %v572, %v780
    %v782 = vpop.f32.mrb[0].mxu0
    %783 = vdwg.mxu0
    %784 = vmatprep.subr.mxu0 0.0
    %v785 = vand.u32 %v70, 4294901760
    %786 = vmatpush1.msra.mxu0 %v785
    %787 = vmatprep.subr.mxu0 0.0
    %v788 = vand.u32 %v71, 4294901760
    %789 = vmatpush1.msra.mxu0 %v788
    %790 = vmatprep.subr.mxu0 0.0
    %v791 = vand.u32 %v72, 4294901760
    %792 = vmatpush1.msra.mxu0 %v791
    %793 = vmatprep.subr.mxu0 0.0
    %v794 = vand.u32 %v73, 4294901760
    %795 = vmatpush1.msra.mxu0 %v794
    %796 = vmatprep.subr.mxu0 0.0
    %v797 = vand.u32 %v74, 4294901760
    %798 = vmatpush1.msra.mxu0 %v797
    %799 = vmatprep.subr.mxu0 0.0
    %v800 = vand.u32 %v75, 4294901760
    %801 = vmatpush1.msra.mxu0 %v800
    %802 = vmatprep.subr.mxu0 0.0
    %v803 = vand.u32 %v76, 4294901760
    %804 = vmatpush1.msra.mxu0 %v803
    %805 = vmatprep.subr.mxu0 0.0
    %v806 = vand.u32 %v77, 4294901760
    %807 = vmatpush1.msra.mxu0 %v806
    %808 = vmatprep.subr.mxu0 0.0
    %v809 = vand.u32 %v78, 4294901760
    %810 = vmatpush1.msra.mxu0 %v809
    %811 = vmatprep.subr.mxu0 0.0
    %v812 = vand.u32 %v79, 4294901760
    %813 = vmatpush1.msra.mxu0 %v812
    %814 = vmatprep.subr.mxu0 0.0
    %v815 = vand.u32 %v80, 4294901760
    %816 = vmatpush1.msra.mxu0 %v815
    %817 = vmatprep.subr.mxu0 0.0
    %v818 = vand.u32 %v81, 4294901760
    %819 = vmatpush1.msra.mxu0 %v818
    %820 = vmatprep.subr.mxu0 0.0
    %v821 = vand.u32 %v82, 4294901760
    %822 = vmatpush1.msra.mxu0 %v821
    %823 = vmatprep.subr.mxu0 0.0
    %v824 = vand.u32 %v83, 4294901760
    %825 = vmatpush1.msra.mxu0 %v824
    %826 = vmatprep.subr.mxu0 0.0
    %v827 = vand.u32 %v84, 4294901760
    %828 = vmatpush1.msra.mxu0 %v827
    %829 = vmatprep.subr.mxu0 0.0
    %v830 = vand.u32 %v85, 4294901760
    %831 = vmatpush1.msra.mxu0 %v830
    %832 = vmatprep.subr.mxu0 0.0
    %833 = vmatpush1.msra.mxu0 0.0
    %834 = vmatprep.subr.mxu0 0.0
    %835 = vmatpush1.msra.mxu0 0.0
    %836 = vmatprep.subr.mxu0 0.0
    %837 = vmatpush1.msra.mxu0 0.0
    %838 = vmatprep.subr.mxu0 0.0
    %839 = vmatpush1.msra.mxu0 0.0
    %840 = vmatprep.subr.mxu0 0.0
    %841 = vmatpush1.msra.mxu0 0.0
    %842 = vmatprep.subr.mxu0 0.0
    %843 = vmatpush1.msra.mxu0 0.0
    %844 = vmatprep.subr.mxu0 0.0
    %845 = vmatpush1.msra.mxu0 0.0
    %846 = vmatprep.subr.mxu0 0.0
    %847 = vmatpush1.msra.mxu0 0.0
    %848 = vmatprep.subr.mxu0 0.0
    %849 = vmatpush1.msra.mxu0 0.0
    %850 = vmatprep.subr.mxu0 0.0
    %851 = vmatpush1.msra.mxu0 0.0
    %852 = vmatprep.subr.mxu0 0.0
    %853 = vmatpush1.msra.mxu0 0.0
    %854 = vmatprep.subr.mxu0 0.0
    %855 = vmatpush1.msra.mxu0 0.0
    %856 = vmatprep.subr.mxu0 0.0
    %857 = vmatpush1.msra.mxu0 0.0
    %858 = vmatprep.subr.mxu0 0.0
    %859 = vmatpush1.msra.mxu0 0.0
    %860 = vmatprep.subr.mxu0 0.0
    %861 = vmatpush1.msra.mxu0 0.0
    %862 = vmatprep.subr.mxu0 0.0
    %863 = vmatpush1.msra.mxu0 0.0
    %864 = vmatprep.mubr.f32.mxu0 0.0
    %v865 = vand.u32 %v54, 4294901760
    %v866 = vsub.f32 %v54, %v865
    %v867 = vand.u32 %v866, 4294901760
    %868 = vmatmul.mubr.f32.gmra.mrb[0].mxu0 %v867
    %v869 = vpop.f32.mrb[0].mxu0
    %v870 = vadd.f32 %v676, %v869
    %v871 = vpop.f32.mrb[0].mxu0
    %872 = vmatprep.mubr.f32.mxu0 0.0
    %v873 = vand.u32 %v55, 4294901760
    %v874 = vsub.f32 %v55, %v873
    %v875 = vand.u32 %v874, 4294901760
    %876 = vmatmul.mubr.f32.gmra.mrb[0].mxu0 %v875
    %v877 = vpop.f32.mrb[0].mxu0
    %v878 = vadd.f32 %v683, %v877
    %v879 = vpop.f32.mrb[0].mxu0
    %880 = vmatprep.mubr.f32.mxu0 0.0
    %v881 = vand.u32 %v56, 4294901760
    %v882 = vsub.f32 %v56, %v881
    %v883 = vand.u32 %v882, 4294901760
    %884 = vmatmul.mubr.f32.gmra.mrb[0].mxu0 %v883
    %v885 = vpop.f32.mrb[0].mxu0
    %v886 = vadd.f32 %v690, %v885
    %v887 = vpop.f32.mrb[0].mxu0
    %888 = vmatprep.mubr.f32.mxu0 0.0
    %v889 = vand.u32 %v57, 4294901760
    %v890 = vsub.f32 %v57, %v889
    %v891 = vand.u32 %v890, 4294901760
    %892 = vmatmul.mubr.f32.gmra.mrb[0].mxu0 %v891
    %v893 = vpop.f32.mrb[0].mxu0
    %v894 = vadd.f32 %v697, %v893
    %v895 = vpop.f32.mrb[0].mxu0
    %896 = vmatprep.mubr.f32.mxu0 0.0
    %v897 = vand.u32 %v58, 4294901760
    %v898 = vsub.f32 %v58, %v897
    %v899 = vand.u32 %v898, 4294901760
    %900 = vmatmul.mubr.f32.gmra.mrb[0].mxu0 %v899
    %v901 = vpop.f32.mrb[0].mxu0
    %v902 = vadd.f32 %v704, %v901
    %v903 = vpop.f32.mrb[0].mxu0
    %904 = vmatprep.mubr.f32.mxu0 0.0
    %v905 = vand.u32 %v59, 4294901760
    %v906 = vsub.f32 %v59, %v905
    %v907 = vand.u32 %v906, 4294901760
    %908 = vmatmul.mubr.f32.gmra.mrb[0].mxu0 %v907
    %v909 = vpop.f32.mrb[0].mxu0
    %v910 = vadd.f32 %v711, %v909
    %v911 = vpop.f32.mrb[0].mxu0
    %912 = vmatprep.mubr.f32.mxu0 0.0
    %v913 = vand.u32 %v60, 4294901760
    %v914 = vsub.f32 %v60, %v913
    %v915 = vand.u32 %v914, 4294901760
    %916 = vmatmul.mubr.f32.gmra.mrb[0].mxu0 %v915
    %v917 = vpop.f32.mrb[0].mxu0
    %v918 = vadd.f32 %v718, %v917
    %v919 = vpop.f32.mrb[0].mxu0
    %920 = vmatprep.mubr.f32.mxu0 0.0
    %v921 = vand.u32 %v61, 4294901760
    %v922 = vsub.f32 %v61, %v921
    %v923 = vand.u32 %v922, 4294901760
    %924 = vmatmul.mubr.f32.gmra.mrb[0].mxu0 %v923
    %v925 = vpop.f32.mrb[0].mxu0
    %v926 = vadd.f32 %v725, %v925
    %v927 = vpop.f32.mrb[0].mxu0
    %928 = vmatprep.mubr.f32.mxu0 0.0
    %v929 = vand.u32 %v62, 4294901760
    %v930 = vsub.f32 %v62, %v929
    %v931 = vand.u32 %v930, 4294901760
    %932 = vmatmul.mubr.f32.gmra.mrb[0].mxu0 %v931
    %v933 = vpop.f32.mrb[0].mxu0
    %v934 = vadd.f32 %v732, %v933
    %v935 = vpop.f32.mrb[0].mxu0
    %936 = vmatprep.mubr.f32.mxu0 0.0
    %v937 = vand.u32 %v63, 4294901760
    %v938 = vsub.f32 %v63, %v937
    %v939 = vand.u32 %v938, 4294901760
    %940 = vmatmul.mubr.f32.gmra.mrb[0].mxu0 %v939
    %v941 = vpop.f32.mrb[0].mxu0
    %v942 = vadd.f32 %v739, %v941
    %v943 = vpop.f32.mrb[0].mxu0
    %944 = vmatprep.mubr.f32.mxu0 0.0
    %v945 = vand.u32 %v64, 4294901760
    %v946 = vsub.f32 %v64, %v945
    %v947 = vand.u32 %v946, 4294901760
    %948 = vmatmul.mubr.f32.gmra.mrb[0].mxu0 %v947
    %v949 = vpop.f32.mrb[0].mxu0
    %v950 = vadd.f32 %v746, %v949
    %v951 = vpop.f32.mrb[0].mxu0
    %952 = vmatprep.mubr.f32.mxu0 0.0
    %v953 = vand.u32 %v65, 4294901760
    %v954 = vsub.f32 %v65, %v953
    %v955 = vand.u32 %v954, 4294901760
    %956 = vmatmul.mubr.f32.gmra.mrb[0].mxu0 %v955
    %v957 = vpop.f32.mrb[0].mxu0
    %v958 = vadd.f32 %v753, %v957
    %v959 = vpop.f32.mrb[0].mxu0
    %960 = vmatprep.mubr.f32.mxu0 0.0
    %v961 = vand.u32 %v66, 4294901760
    %v962 = vsub.f32 %v66, %v961
    %v963 = vand.u32 %v962, 4294901760
    %964 = vmatmul.mubr.f32.gmra.mrb[0].mxu0 %v963
    %v965 = vpop.f32.mrb[0].mxu0
    %v966 = vadd.f32 %v760, %v965
    %v967 = vpop.f32.mrb[0].mxu0
    %968 = vmatprep.mubr.f32.mxu0 0.0
    %v969 = vand.u32 %v67, 4294901760
    %v970 = vsub.f32 %v67, %v969
    %v971 = vand.u32 %v970, 4294901760
    %972 = vmatmul.mubr.f32.gmra.mrb[0].mxu0 %v971
    %v973 = vpop.f32.mrb[0].mxu0
    %v974 = vadd.f32 %v767, %v973
    %v975 = vpop.f32.mrb[0].mxu0
    %976 = vmatprep.mubr.f32.mxu0 0.0
    %v977 = vand.u32 %v68, 4294901760
    %v978 = vsub.f32 %v68, %v977
    %v979 = vand.u32 %v978, 4294901760
    %980 = vmatmul.mubr.f32.gmra.mrb[0].mxu0 %v979
    %v981 = vpop.f32.mrb[0].mxu0
    %v982 = vadd.f32 %v774, %v981
    %v983 = vpop.f32.mrb[0].mxu0
    %984 = vmatprep.mubr.f32.mxu0 0.0
    %v985 = vand.u32 %v69, 4294901760
    %v986 = vsub.f32 %v69, %v985
    %v987 = vand.u32 %v986, 4294901760
    %988 = vmatmul.mubr.f32.gmra.mrb[0].mxu0 %v987
    %v989 = vpop.f32.mrb[0].mxu0
    %v990 = vadd.f32 %v781, %v989
    %v991 = vpop.f32.mrb[0].mxu0
    %992 = vdwg.mxu0
    %993 = vmatprep.subr.mxu0 0.0
    %v994 = vand.u32 %v70, 4294901760
    %v995 = vsub.f32 %v70, %v994
    %v996 = vand.u32 %v995, 4294901760
    %997 = vmatpush1.msra.mxu0 %v996
    %998 = vmatprep.subr.mxu0 0.0
    %v999 = vand.u32 %v71, 4294901760
    %v1000 = vsub.f32 %v71, %v999
    %v1001 = vand.u32 %v1000, 4294901760
    %1002 = vmatpush1.msra.mxu0 %v1001
    %1003 = vmatprep.subr.mxu0 0.0
    %v1004 = vand.u32 %v72, 4294901760
    %v1005 = vsub.f32 %v72, %v1004
    %v1006 = vand.u32 %v1005, 4294901760
    %1007 = vmatpush1.msra.mxu0 %v1006
    %1008 = vmatprep.subr.mxu0 0.0
    %v1009 = vand.u32 %v73, 4294901760
    %v1010 = vsub.f32 %v73, %v1009
    %v1011 = vand.u32 %v1010, 4294901760
    %1012 = vmatpush1.msra.mxu0 %v1011
    %1013 = vmatprep.subr.mxu0 0.0
    %v1014 = vand.u32 %v74, 4294901760
    %v1015 = vsub.f32 %v74, %v1014
    %v1016 = vand.u32 %v1015, 4294901760
    %1017 = vmatpush1.msra.mxu0 %v1016
    %1018 = vmatprep.subr.mxu0 0.0
    %v1019 = vand.u32 %v75, 4294901760
    %v1020 = vsub.f32 %v75, %v1019
    %v1021 = vand.u32 %v1020, 4294901760
    %1022 = vmatpush1.msra.mxu0 %v1021
    %1023 = vmatprep.subr.mxu0 0.0
    %v1024 = vand.u32 %v76, 4294901760
    %v1025 = vsub.f32 %v76, %v1024
    %v1026 = vand.u32 %v1025, 4294901760
    %1027 = vmatpush1.msra.mxu0 %v1026
    %1028 = vmatprep.subr.mxu0 0.0
    %v1029 = vand.u32 %v77, 4294901760
    %v1030 = vsub.f32 %v77, %v1029
    %v1031 = vand.u32 %v1030, 4294901760
    %1032 = vmatpush1.msra.mxu0 %v1031
    %1033 = vmatprep.subr.mxu0 0.0
    %v1034 = vand.u32 %v78, 4294901760
    %v1035 = vsub.f32 %v78, %v1034
    %v1036 = vand.u32 %v1035, 4294901760
    %1037 = vmatpush1.msra.mxu0 %v1036
    %1038 = vmatprep.subr.mxu0 0.0
    %v1039 = vand.u32 %v79, 4294901760
    %v1040 = vsub.f32 %v79, %v1039
    %v1041 = vand.u32 %v1040, 4294901760
    %1042 = vmatpush1.msra.mxu0 %v1041
    %1043 = vmatprep.subr.mxu0 0.0
    %v1044 = vand.u32 %v80, 4294901760
    %v1045 = vsub.f32 %v80, %v1044
    %v1046 = vand.u32 %v1045, 4294901760
    %1047 = vmatpush1.msra.mxu0 %v1046
    %1048 = vmatprep.subr.mxu0 0.0
    %v1049 = vand.u32 %v81, 4294901760
    %v1050 = vsub.f32 %v81, %v1049
    %v1051 = vand.u32 %v1050, 4294901760
    %1052 = vmatpush1.msra.mxu0 %v1051
    %1053 = vmatprep.subr.mxu0 0.0
    %v1054 = vand.u32 %v82, 4294901760
    %v1055 = vsub.f32 %v82, %v1054
    %v1056 = vand.u32 %v1055, 4294901760
    %1057 = vmatpush1.msra.mxu0 %v1056
    %1058 = vmatprep.subr.mxu0 0.0
    %v1059 = vand.u32 %v83, 4294901760
    %v1060 = vsub.f32 %v83, %v1059
    %v1061 = vand.u32 %v1060, 4294901760
    %1062 = vmatpush1.msra.mxu0 %v1061
    %1063 = vmatprep.subr.mxu0 0.0
    %v1064 = vand.u32 %v84, 4294901760
    %v1065 = vsub.f32 %v84, %v1064
    %v1066 = vand.u32 %v1065, 4294901760
    %1067 = vmatpush1.msra.mxu0 %v1066
    %1068 = vmatprep.subr.mxu0 0.0
    %v1069 = vand.u32 %v85, 4294901760
    %v1070 = vsub.f32 %v85, %v1069
    %v1071 = vand.u32 %v1070, 4294901760
    %1072 = vmatpush1.msra.mxu0 %v1071
    %1073 = vmatprep.subr.mxu0 0.0
    %1074 = vmatpush1.msra.mxu0 0.0
    %1075 = vmatprep.subr.mxu0 0.0
    %1076 = vmatpush1.msra.mxu0 0.0
    %1077 = vmatprep.subr.mxu0 0.0
    %1078 = vmatpush1.msra.mxu0 0.0
    %1079 = vmatprep.subr.mxu0 0.0
    %1080 = vmatpush1.msra.mxu0 0.0
    %1081 = vmatprep.subr.mxu0 0.0
    %1082 = vmatpush1.msra.mxu0 0.0
    %1083 = vmatprep.subr.mxu0 0.0
    %1084 = vmatpush1.msra.mxu0 0.0
    %1085 = vmatprep.subr.mxu0 0.0
    %1086 = vmatpush1.msra.mxu0 0.0
    %1087 = vmatprep.subr.mxu0 0.0
    %1088 = vmatpush1.msra.mxu0 0.0
    %1089 = vmatprep.subr.mxu0 0.0
    %1090 = vmatpush1.msra.mxu0 0.0
    %1091 = vmatprep.subr.mxu0 0.0
    %1092 = vmatpush1.msra.mxu0 0.0
    %1093 = vmatprep.subr.mxu0 0.0
    %1094 = vmatpush1.msra.mxu0 0.0
    %1095 = vmatprep.subr.mxu0 0.0
    %1096 = vmatpush1.msra.mxu0 0.0
    %1097 = vmatprep.subr.mxu0 0.0
    %1098 = vmatpush1.msra.mxu0 0.0
    %1099 = vmatprep.subr.mxu0 0.0
    %1100 = vmatpush1.msra.mxu0 0.0
    %1101 = vmatprep.subr.mxu0 0.0
    %1102 = vmatpush1.msra.mxu0 0.0
    %1103 = vmatprep.subr.mxu0 0.0
    %1104 = vmatpush1.msra.mxu0 0.0
    %1105 = vmatprep.mubr.f32.mxu0 0.0
    %v1106 = vand.u32 %v54, 4294901760
    %1107 = vmatmul.mubr.f32.gmra.mrb[0].mxu0 %v1106
    %v1108 = vpop.f32.mrb[0].mxu0
    %v1109 = vadd.f32 %v870, %v1108
    %v1110 = vpop.f32.mrb[0].mxu0
    %1111 = vmatprep.mubr.f32.mxu0 0.0
    %v1112 = vand.u32 %v55, 4294901760
    %1113 = vmatmul.mubr.f32.gmra.mrb[0].mxu0 %v1112
    %v1114 = vpop.f32.mrb[0].mxu0
    %v1115 = vadd.f32 %v878, %v1114
    %v1116 = vpop.f32.mrb[0].mxu0
    %1117 = vmatprep.mubr.f32.mxu0 0.0
    %v1118 = vand.u32 %v56, 4294901760
    %1119 = vmatmul.mubr.f32.gmra.mrb[0].mxu0 %v1118
    %v1120 = vpop.f32.mrb[0].mxu0
    %v1121 = vadd.f32 %v886, %v1120
    %v1122 = vpop.f32.mrb[0].mxu0
    %1123 = vmatprep.mubr.f32.mxu0 0.0
    %v1124 = vand.u32 %v57, 4294901760
    %1125 = vmatmul.mubr.f32.gmra.mrb[0].mxu0 %v1124
    %v1126 = vpop.f32.mrb[0].mxu0
    %v1127 = vadd.f32 %v894, %v1126
    %v1128 = vpop.f32.mrb[0].mxu0
    %1129 = vmatprep.mubr.f32.mxu0 0.0
    %v1130 = vand.u32 %v58, 4294901760
    %1131 = vmatmul.mubr.f32.gmra.mrb[0].mxu0 %v1130
    %v1132 = vpop.f32.mrb[0].mxu0
    %v1133 = vadd.f32 %v902, %v1132
    %v1134 = vpop.f32.mrb[0].mxu0
    %1135 = vmatprep.mubr.f32.mxu0 0.0
    %v1136 = vand.u32 %v59, 4294901760
    %1137 = vmatmul.mubr.f32.gmra.mrb[0].mxu0 %v1136
    %v1138 = vpop.f32.mrb[0].mxu0
    %v1139 = vadd.f32 %v910, %v1138
    %v1140 = vpop.f32.mrb[0].mxu0
    %1141 = vmatprep.mubr.f32.mxu0 0.0
    %v1142 = vand.u32 %v60, 4294901760
    %1143 = vmatmul.mubr.f32.gmra.mrb[0].mxu0 %v1142
    %v1144 = vpop.f32.mrb[0].mxu0
    %v1145 = vadd.f32 %v918, %v1144
    %v1146 = vpop.f32.mrb[0].mxu0
    %1147 = vmatprep.mubr.f32.mxu0 0.0
    %v1148 = vand.u32 %v61, 4294901760
    %1149 = vmatmul.mubr.f32.gmra.mrb[0].mxu0 %v1148
    %v1150 = vpop.f32.mrb[0].mxu0
    %v1151 = vadd.f32 %v926, %v1150
    %v1152 = vpop.f32.mrb[0].mxu0
    %1153 = vmatprep.mubr.f32.mxu0 0.0
    %v1154 = vand.u32 %v62, 4294901760
    %1155 = vmatmul.mubr.f32.gmra.mrb[0].mxu0 %v1154
    %v1156 = vpop.f32.mrb[0].mxu0
    %v1157 = vadd.f32 %v934, %v1156
    %v1158 = vpop.f32.mrb[0].mxu0
    %1159 = vmatprep.mubr.f32.mxu0 0.0
    %v1160 = vand.u32 %v63, 4294901760
    %1161 = vmatmul.mubr.f32.gmra.mrb[0].mxu0 %v1160
    %v1162 = vpop.f32.mrb[0].mxu0
    %v1163 = vadd.f32 %v942, %v1162
    %v1164 = vpop.f32.mrb[0].mxu0
    %1165 = vmatprep.mubr.f32.mxu0 0.0
    %v1166 = vand.u32 %v64, 4294901760
    %1167 = vmatmul.mubr.f32.gmra.mrb[0].mxu0 %v1166
    %v1168 = vpop.f32.mrb[0].mxu0
    %v1169 = vadd.f32 %v950, %v1168
    %v1170 = vpop.f32.mrb[0].mxu0
    %1171 = vmatprep.mubr.f32.mxu0 0.0
    %v1172 = vand.u32 %v65, 4294901760
    %1173 = vmatmul.mubr.f32.gmra.mrb[0].mxu0 %v1172
    %v1174 = vpop.f32.mrb[0].mxu0
    %v1175 = vadd.f32 %v958, %v1174
    %v1176 = vpop.f32.mrb[0].mxu0
    %1177 = vmatprep.mubr.f32.mxu0 0.0
    %v1178 = vand.u32 %v66, 4294901760
    %1179 = vmatmul.mubr.f32.gmra.mrb[0].mxu0 %v1178
    %v1180 = vpop.f32.mrb[0].mxu0
    %v1181 = vadd.f32 %v966, %v1180
    %v1182 = vpop.f32.mrb[0].mxu0
    %1183 = vmatprep.mubr.f32.mxu0 0.0
    %v1184 = vand.u32 %v67, 4294901760
    %1185 = vmatmul.mubr.f32.gmra.mrb[0].mxu0 %v1184
    %v1186 = vpop.f32.mrb[0].mxu0
    %v1187 = vadd.f32 %v974, %v1186
    %v1188 = vpop.f32.mrb[0].mxu0
    %1189 = vmatprep.mubr.f32.mxu0 0.0
    %v1190 = vand.u32 %v68, 4294901760
    %1191 = vmatmul.mubr.f32.gmra.mrb[0].mxu0 %v1190
    %v1192 = vpop.f32.mrb[0].mxu0
    %v1193 = vadd.f32 %v982, %v1192
    %v1194 = vpop.f32.mrb[0].mxu0
    %1195 = vmatprep.mubr.f32.mxu0 0.0
    %v1196 = vand.u32 %v69, 4294901760
    %1197 = vmatmul.mubr.f32.gmra.mrb[0].mxu0 %v1196
    %v1198 = vpop.f32.mrb[0].mxu0
    %v1199 = vadd.f32 %v990, %v1198
    %v1200 = vpop.f32.mrb[0].mxu0
    %1201 = vdwg.mxu0
    %1202 = vmatprep.subr.mxu0 0.0
    %v1203 = vand.u32 %v70, 4294901760
    %1204 = vmatpush1.msra.mxu0 %v1203
    %1205 = vmatprep.subr.mxu0 0.0
    %v1206 = vand.u32 %v71, 4294901760
    %1207 = vmatpush1.msra.mxu0 %v1206
    %1208 = vmatprep.subr.mxu0 0.0
    %v1209 = vand.u32 %v72, 4294901760
    %1210 = vmatpush1.msra.mxu0 %v1209
    %1211 = vmatprep.subr.mxu0 0.0
    %v1212 = vand.u32 %v73, 4294901760
    %1213 = vmatpush1.msra.mxu0 %v1212
    %1214 = vmatprep.subr.mxu0 0.0
    %v1215 = vand.u32 %v74, 4294901760
    %1216 = vmatpush1.msra.mxu0 %v1215
    %1217 = vmatprep.subr.mxu0 0.0
    %v1218 = vand.u32 %v75, 4294901760
    %1219 = vmatpush1.msra.mxu0 %v1218
    %1220 = vmatprep.subr.mxu0 0.0
    %v1221 = vand.u32 %v76, 4294901760
    %1222 = vmatpush1.msra.mxu0 %v1221
    %1223 = vmatprep.subr.mxu0 0.0
    %v1224 = vand.u32 %v77, 4294901760
    %1225 = vmatpush1.msra.mxu0 %v1224
    %1226 = vmatprep.subr.mxu0 0.0
    %v1227 = vand.u32 %v78, 4294901760
    %1228 = vmatpush1.msra.mxu0 %v1227
    %1229 = vmatprep.subr.mxu0 0.0
    %v1230 = vand.u32 %v79, 4294901760
    %1231 = vmatpush1.msra.mxu0 %v1230
    %1232 = vmatprep.subr.mxu0 0.0
    %v1233 = vand.u32 %v80, 4294901760
    %1234 = vmatpush1.msra.mxu0 %v1233
    %1235 = vmatprep.subr.mxu0 0.0
    %v1236 = vand.u32 %v81, 4294901760
    %1237 = vmatpush1.msra.mxu0 %v1236
    %1238 = vmatprep.subr.mxu0 0.0
    %v1239 = vand.u32 %v82, 4294901760
    %1240 = vmatpush1.msra.mxu0 %v1239
    %1241 = vmatprep.subr.mxu0 0.0
    %v1242 = vand.u32 %v83, 4294901760
    %1243 = vmatpush1.msra.mxu0 %v1242
    %1244 = vmatprep.subr.mxu0 0.0
    %v1245 = vand.u32 %v84, 4294901760
    %1246 = vmatpush1.msra.mxu0 %v1245
    %1247 = vmatprep.subr.mxu0 0.0
    %v1248 = vand.u32 %v85, 4294901760
    %1249 = vmatpush1.msra.mxu0 %v1248
    %1250 = vmatprep.subr.mxu0 0.0
    %1251 = vmatpush1.msra.mxu0 0.0
    %1252 = vmatprep.subr.mxu0 0.0
    %1253 = vmatpush1.msra.mxu0 0.0
    %1254 = vmatprep.subr.mxu0 0.0
    %1255 = vmatpush1.msra.mxu0 0.0
    %1256 = vmatprep.subr.mxu0 0.0
    %1257 = vmatpush1.msra.mxu0 0.0
    %1258 = vmatprep.subr.mxu0 0.0
    %1259 = vmatpush1.msra.mxu0 0.0
    %1260 = vmatprep.subr.mxu0 0.0
    %1261 = vmatpush1.msra.mxu0 0.0
    %1262 = vmatprep.subr.mxu0 0.0
    %1263 = vmatpush1.msra.mxu0 0.0
    %1264 = vmatprep.subr.mxu0 0.0
    %1265 = vmatpush1.msra.mxu0 0.0
    %1266 = vmatprep.subr.mxu0 0.0
    %1267 = vmatpush1.msra.mxu0 0.0
    %1268 = vmatprep.subr.mxu0 0.0
    %1269 = vmatpush1.msra.mxu0 0.0
    %1270 = vmatprep.subr.mxu0 0.0
    %1271 = vmatpush1.msra.mxu0 0.0
    %1272 = vmatprep.subr.mxu0 0.0
    %1273 = vmatpush1.msra.mxu0 0.0
    %1274 = vmatprep.subr.mxu0 0.0
    %1275 = vmatpush1.msra.mxu0 0.0
    %1276 = vmatprep.subr.mxu0 0.0
    %1277 = vmatpush1.msra.mxu0 0.0
    %1278 = vmatprep.subr.mxu0 0.0
    %1279 = vmatpush1.msra.mxu0 0.0
    %1280 = vmatprep.subr.mxu0 0.0
    %1281 = vmatpush1.msra.mxu0 0.0
    %1282 = vmatprep.mubr.f32.mxu0 0.0
    %v1283 = vand.u32 %v54, 4294901760
    %1284 = vmatmul.mubr.f32.gmra.mrb[0].mxu0 %v1283
    %v1285 = vpop.f32.mrb[0].mxu0
    %v1286 = vadd.f32 %v1109, %v1285
    %v1287 = vpop.f32.mrb[0].mxu0
    %1288 = vmatprep.mubr.f32.mxu0 0.0
    %v1289 = vand.u32 %v55, 4294901760
    %1290 = vmatmul.mubr.f32.gmra.mrb[0].mxu0 %v1289
    %v1291 = vpop.f32.mrb[0].mxu0
    %v1292 = vadd.f32 %v1115, %v1291
    %v1293 = vpop.f32.mrb[0].mxu0
    %1294 = vmatprep.mubr.f32.mxu0 0.0
    %v1295 = vand.u32 %v56, 4294901760
    %1296 = vmatmul.mubr.f32.gmra.mrb[0].mxu0 %v1295
    %v1297 = vpop.f32.mrb[0].mxu0
    %v1298 = vadd.f32 %v1121, %v1297
    %v1299 = vpop.f32.mrb[0].mxu0
    %1300 = vmatprep.mubr.f32.mxu0 0.0
    %v1301 = vand.u32 %v57, 4294901760
    %1302 = vmatmul.mubr.f32.gmra.mrb[0].mxu0 %v1301
    %v1303 = vpop.f32.mrb[0].mxu0
    %v1304 = vadd.f32 %v1127, %v1303
    %v1305 = vpop.f32.mrb[0].mxu0
    %1306 = vmatprep.mubr.f32.mxu0 0.0
    %v1307 = vand.u32 %v58, 4294901760
    %1308 = vmatmul.mubr.f32.gmra.mrb[0].mxu0 %v1307
    %v1309 = vpop.f32.mrb[0].mxu0
    %v1310 = vadd.f32 %v1133, %v1309
    %v1311 = vpop.f32.mrb[0].mxu0
    %1312 = vmatprep.mubr.f32.mxu0 0.0
    %v1313 = vand.u32 %v59, 4294901760
    %1314 = vmatmul.mubr.f32.gmra.mrb[0].mxu0 %v1313
    %v1315 = vpop.f32.mrb[0].mxu0
    %v1316 = vadd.f32 %v1139, %v1315
    %v1317 = vpop.f32.mrb[0].mxu0
    %1318 = vmatprep.mubr.f32.mxu0 0.0
    %v1319 = vand.u32 %v60, 4294901760
    %1320 = vmatmul.mubr.f32.gmra.mrb[0].mxu0 %v1319
    %v1321 = vpop.f32.mrb[0].mxu0
    %v1322 = vadd.f32 %v1145, %v1321
    %v1323 = vpop.f32.mrb[0].mxu0
    %1324 = vmatprep.mubr.f32.mxu0 0.0
    %v1325 = vand.u32 %v61, 4294901760
    %1326 = vmatmul.mubr.f32.gmra.mrb[0].mxu0 %v1325
    %v1327 = vpop.f32.mrb[0].mxu0
    %v1328 = vadd.f32 %v1151, %v1327
    %v1329 = vpop.f32.mrb[0].mxu0
    %1330 = vmatprep.mubr.f32.mxu0 0.0
    %v1331 = vand.u32 %v62, 4294901760
    %1332 = vmatmul.mubr.f32.gmra.mrb[0].mxu0 %v1331
    %v1333 = vpop.f32.mrb[0].mxu0
    %v1334 = vadd.f32 %v1157, %v1333
    %v1335 = vpop.f32.mrb[0].mxu0
    %1336 = vmatprep.mubr.f32.mxu0 0.0
    %v1337 = vand.u32 %v63, 4294901760
    %1338 = vmatmul.mubr.f32.gmra.mrb[0].mxu0 %v1337
    %v1339 = vpop.f32.mrb[0].mxu0
    %v1340 = vadd.f32 %v1163, %v1339
    %v1341 = vpop.f32.mrb[0].mxu0
    %1342 = vmatprep.mubr.f32.mxu0 0.0
    %v1343 = vand.u32 %v64, 4294901760
    %1344 = vmatmul.mubr.f32.gmra.mrb[0].mxu0 %v1343
    %v1345 = vpop.f32.mrb[0].mxu0
    %v1346 = vadd.f32 %v1169, %v1345
    %v1347 = vpop.f32.mrb[0].mxu0
    %1348 = vmatprep.mubr.f32.mxu0 0.0
    %v1349 = vand.u32 %v65, 4294901760
    %1350 = vmatmul.mubr.f32.gmra.mrb[0].mxu0 %v1349
    %v1351 = vpop.f32.mrb[0].mxu0
    %v1352 = vadd.f32 %v1175, %v1351
    %v1353 = vpop.f32.mrb[0].mxu0
    %1354 = vmatprep.mubr.f32.mxu0 0.0
    %v1355 = vand.u32 %v66, 4294901760
    %1356 = vmatmul.mubr.f32.gmra.mrb[0].mxu0 %v1355
    %v1357 = vpop.f32.mrb[0].mxu0
    %v1358 = vadd.f32 %v1181, %v1357
    %v1359 = vpop.f32.mrb[0].mxu0
    %1360 = vmatprep.mubr.f32.mxu0 0.0
    %v1361 = vand.u32 %v67, 4294901760
    %1362 = vmatmul.mubr.f32.gmra.mrb[0].mxu0 %v1361
    %v1363 = vpop.f32.mrb[0].mxu0
    %v1364 = vadd.f32 %v1187, %v1363
    %v1365 = vpop.f32.mrb[0].mxu0
    %1366 = vmatprep.mubr.f32.mxu0 0.0
    %v1367 = vand.u32 %v68, 4294901760
    %1368 = vmatmul.mubr.f32.gmra.mrb[0].mxu0 %v1367
    %v1369 = vpop.f32.mrb[0].mxu0
    %v1370 = vadd.f32 %v1193, %v1369
    %v1371 = vpop.f32.mrb[0].mxu0
    %1372 = vmatprep.mubr.f32.mxu0 0.0
    %v1373 = vand.u32 %v69, 4294901760
    %1374 = vmatmul.mubr.f32.gmra.mrb[0].mxu0 %v1373
    %v1375 = vpop.f32.mrb[0].mxu0
    %v1376 = vadd.f32 %v1199, %v1375
    %v1377 = vpop.f32.mrb[0].mxu0
    %1378 = vdwg.mxu0
    %v1379 = vmax.f32 %v1286, 0.0
    %v1380 = vmax.f32 %v1292, 0.0
    %v1381 = vmax.f32 %v1298, 0.0
    %v1382 = vmax.f32 %v1304, 0.0
    %v1383 = vmax.f32 %v1310, 0.0
    %v1384 = vmax.f32 %v1316, 0.0
    %v1385 = vmax.f32 %v1322, 0.0
    %v1386 = vmax.f32 %v1328, 0.0
    %v1387 = vmax.f32 %v1334, 0.0
    %v1388 = vmax.f32 %v1340, 0.0
    %v1389 = vmax.f32 %v1346, 0.0
    %v1390 = vmax.f32 %v1352, 0.0
    %v1391 = vmax.f32 %v1358, 0.0
    %v1392 = vmax.f32 %v1364, 0.0
    %v1393 = vmax.f32 %v1370, 0.0
    %v1394 = vmax.f32 %v1376, 0.0
    %v1395 = vld [vmem:[#allocation2] sm:$0xff]
    %v1396 = vld [vmem:[#allocation2 + $0x8] sm:$0xff]
    %v1397 = vld [vmem:[#allocation2 + $0x10] sm:$0xff]
    %v1398 = vld [vmem:[#allocation2 + $0x18] sm:$0xff]
    %v1399 = vld [vmem:[#allocation2 + $0x20] sm:$0xff]
    %v1400 = vld [vmem:[#allocation2 + $0x28] sm:$0xff]
    %v1401 = vld [vmem:[#allocation2 + $0x30] sm:$0xff]
    %v1402 = vld [vmem:[#allocation2 + $0x38] sm:$0xff]
    %v1403 = vld [vmem:[#allocation2 + $0x40] sm:$0xff]
    %v1404 = vld [vmem:[#allocation2 + $0x48] sm:$0xff]
    %v1405 = vld [vmem:[#allocation2 + $0x50] sm:$0xff]
    %v1406 = vld [vmem:[#allocation2 + $0x58] sm:$0xff]
    %v1407 = vld [vmem:[#allocation2 + $0x60] sm:$0xff]
    %v1408 = vld [vmem:[#allocation2 + $0x68] sm:$0xff]
    %v1409 = vld [vmem:[#allocation2 + $0x70] sm:$0xff]
    %v1410 = vld [vmem:[#allocation2 + $0x78] sm:$0xff]
    %v1411 = vld [vmem:[%s4] sm:$0x1]
    %v1413 = vlaneseq
    %v1414 = vshrl.u32 %v1413, 7
    %v1415 = vsub.s32 0, %v1414
    %v1416 = vrot.slane %v1411, %v1415
    %1418 = vmatprep.subr.mxu0 0.0
    %v1419 = vand.u32 %v1395, 4294901760
    %1420 = vmatpush1.msra.mxu0 %v1419
    %1421 = vmatprep.subr.mxu0 0.0
    %v1422 = vand.u32 %v1396, 4294901760
    %1423 = vmatpush1.msra.mxu0 %v1422
    %1424 = vmatprep.subr.mxu0 0.0
    %v1425 = vand.u32 %v1397, 4294901760
    %1426 = vmatpush1.msra.mxu0 %v1425
    %1427 = vmatprep.subr.mxu0 0.0
    %v1428 = vand.u32 %v1398, 4294901760
    %1429 = vmatpush1.msra.mxu0 %v1428
    %1430 = vmatprep.subr.mxu0 0.0
    %v1431 = vand.u32 %v1399, 4294901760
    %1432 = vmatpush1.msra.mxu0 %v1431
    %1433 = vmatprep.subr.mxu0 0.0
    %v1434 = vand.u32 %v1400, 4294901760
    %1435 = vmatpush1.msra.mxu0 %v1434
    %1436 = vmatprep.subr.mxu0 0.0
    %v1437 = vand.u32 %v1401, 4294901760
    %1438 = vmatpush1.msra.mxu0 %v1437
    %1439 = vmatprep.subr.mxu0 0.0
    %v1440 = vand.u32 %v1402, 4294901760
    %1441 = vmatpush1.msra.mxu0 %v1440
    %1442 = vmatprep.subr.mxu0 0.0
    %v1443 = vand.u32 %v1403, 4294901760
    %1444 = vmatpush1.msra.mxu0 %v1443
    %1445 = vmatprep.subr.mxu0 0.0
    %v1446 = vand.u32 %v1404, 4294901760
    %1447 = vmatpush1.msra.mxu0 %v1446
    %1448 = vmatprep.subr.mxu0 0.0
    %v1449 = vand.u32 %v1405, 4294901760
    %1450 = vmatpush1.msra.mxu0 %v1449
    %1451 = vmatprep.subr.mxu0 0.0
    %v1452 = vand.u32 %v1406, 4294901760
    %1453 = vmatpush1.msra.mxu0 %v1452
    %1454 = vmatprep.subr.mxu0 0.0
    %v1455 = vand.u32 %v1407, 4294901760
    %1456 = vmatpush1.msra.mxu0 %v1455
    %1457 = vmatprep.subr.mxu0 0.0
    %v1458 = vand.u32 %v1408, 4294901760
    %1459 = vmatpush1.msra.mxu0 %v1458
    %1460 = vmatprep.subr.mxu0 0.0
    %v1461 = vand.u32 %v1409, 4294901760
    %1462 = vmatpush1.msra.mxu0 %v1461
    %1463 = vmatprep.subr.mxu0 0.0
    %v1464 = vand.u32 %v1410, 4294901760
    %1465 = vmatpush1.msra.mxu0 %v1464
    %1466 = vmatprep.subr.mxu0 0.0
    %1467 = vmatpush1.msra.mxu0 0.0
    %1468 = vmatprep.subr.mxu0 0.0
    %1469 = vmatpush1.msra.mxu0 0.0
    %1470 = vmatprep.subr.mxu0 0.0
    %1471 = vmatpush1.msra.mxu0 0.0
    %1472 = vmatprep.subr.mxu0 0.0
    %1473 = vmatpush1.msra.mxu0 0.0
    %1474 = vmatprep.subr.mxu0 0.0
    %1475 = vmatpush1.msra.mxu0 0.0
    %1476 = vmatprep.subr.mxu0 0.0
    %1477 = vmatpush1.msra.mxu0 0.0
    %1478 = vmatprep.subr.mxu0 0.0
    %1479 = vmatpush1.msra.mxu0 0.0
    %1480 = vmatprep.subr.mxu0 0.0
    %1481 = vmatpush1.msra.mxu0 0.0
    %1482 = vmatprep.subr.mxu0 0.0
    %1483 = vmatpush1.msra.mxu0 0.0
    %1484 = vmatprep.subr.mxu0 0.0
    %1485 = vmatpush1.msra.mxu0 0.0
    %1486 = vmatprep.subr.mxu0 0.0
    %1487 = vmatpush1.msra.mxu0 0.0
    %1488 = vmatprep.subr.mxu0 0.0
    %1489 = vmatpush1.msra.mxu0 0.0
    %1490 = vmatprep.subr.mxu0 0.0
    %1491 = vmatpush1.msra.mxu0 0.0
    %1492 = vmatprep.subr.mxu0 0.0
    %1493 = vmatpush1.msra.mxu0 0.0
    %1494 = vmatprep.subr.mxu0 0.0
    %1495 = vmatpush1.msra.mxu0 0.0
    %1496 = vmatprep.subr.mxu0 0.0
    %1497 = vmatpush1.msra.mxu0 0.0
    %1498 = vmatprep.mubr.f32.mxu0 0.0
    %v1499 = vand.u32 %v1379, 4294901760
    %v1500 = vsub.f32 %v1379, %v1499
    %v1501 = vand.u32 %v1500, 4294901760
    %v1502 = vsub.f32 %v1500, %v1501
    %v1503 = vand.u32 %v1502, 4294901760
    %1504 = vmatmul.mubr.f32.gmra.mrb[0].mxu0 %v1503
    %v1505 = vpop.f32.mrb[0].mxu0
    %v1506 = vadd.f32 %v1416, %v1505
    %v1507 = vpop.f32.mrb[0].mxu0
    %1508 = vmatprep.mubr.f32.mxu0 0.0
    %v1509 = vand.u32 %v1380, 4294901760
    %v1510 = vsub.f32 %v1380, %v1509
    %v1511 = vand.u32 %v1510, 4294901760
    %v1512 = vsub.f32 %v1510, %v1511
    %v1513 = vand.u32 %v1512, 4294901760
    %1514 = vmatmul.mubr.f32.gmra.mrb[0].mxu0 %v1513
    %v1515 = vpop.f32.mrb[0].mxu0
    %v1516 = vadd.f32 %v1416, %v1515
    %v1517 = vpop.f32.mrb[0].mxu0
    %1518 = vmatprep.mubr.f32.mxu0 0.0
    %v1519 = vand.u32 %v1381, 4294901760
    %v1520 = vsub.f32 %v1381, %v1519
    %v1521 = vand.u32 %v1520, 4294901760
    %v1522 = vsub.f32 %v1520, %v1521
    %v1523 = vand.u32 %v1522, 4294901760
    %1524 = vmatmul.mubr.f32.gmra.mrb[0].mxu0 %v1523
    %v1525 = vpop.f32.mrb[0].mxu0
    %v1526 = vadd.f32 %v1416, %v1525
    %v1527 = vpop.f32.mrb[0].mxu0
    %1528 = vmatprep.mubr.f32.mxu0 0.0
    %v1529 = vand.u32 %v1382, 4294901760
    %v1530 = vsub.f32 %v1382, %v1529
    %v1531 = vand.u32 %v1530, 4294901760
    %v1532 = vsub.f32 %v1530, %v1531
    %v1533 = vand.u32 %v1532, 4294901760
    %1534 = vmatmul.mubr.f32.gmra.mrb[0].mxu0 %v1533
    %v1535 = vpop.f32.mrb[0].mxu0
    %v1536 = vadd.f32 %v1416, %v1535
    %v1537 = vpop.f32.mrb[0].mxu0
    %1538 = vmatprep.mubr.f32.mxu0 0.0
    %v1539 = vand.u32 %v1383, 4294901760
    %v1540 = vsub.f32 %v1383, %v1539
    %v1541 = vand.u32 %v1540, 4294901760
    %v1542 = vsub.f32 %v1540, %v1541
    %v1543 = vand.u32 %v1542, 4294901760
    %1544 = vmatmul.mubr.f32.gmra.mrb[0].mxu0 %v1543
    %v1545 = vpop.f32.mrb[0].mxu0
    %v1546 = vadd.f32 %v1416, %v1545
    %v1547 = vpop.f32.mrb[0].mxu0
    %1548 = vmatprep.mubr.f32.mxu0 0.0
    %v1549 = vand.u32 %v1384, 4294901760
    %v1550 = vsub.f32 %v1384, %v1549
    %v1551 = vand.u32 %v1550, 4294901760
    %v1552 = vsub.f32 %v1550, %v1551
    %v1553 = vand.u32 %v1552, 4294901760
    %1554 = vmatmul.mubr.f32.gmra.mrb[0].mxu0 %v1553
    %v1555 = vpop.f32.mrb[0].mxu0
    %v1556 = vadd.f32 %v1416, %v1555
    %v1557 = vpop.f32.mrb[0].mxu0
    %1558 = vmatprep.mubr.f32.mxu0 0.0
    %v1559 = vand.u32 %v1385, 4294901760
    %v1560 = vsub.f32 %v1385, %v1559
    %v1561 = vand.u32 %v1560, 4294901760
    %v1562 = vsub.f32 %v1560, %v1561
    %v1563 = vand.u32 %v1562, 4294901760
    %1564 = vmatmul.mubr.f32.gmra.mrb[0].mxu0 %v1563
    %v1565 = vpop.f32.mrb[0].mxu0
    %v1566 = vadd.f32 %v1416, %v1565
    %v1567 = vpop.f32.mrb[0].mxu0
    %1568 = vmatprep.mubr.f32.mxu0 0.0
    %v1569 = vand.u32 %v1386, 4294901760
    %v1570 = vsub.f32 %v1386, %v1569
    %v1571 = vand.u32 %v1570, 4294901760
    %v1572 = vsub.f32 %v1570, %v1571
    %v1573 = vand.u32 %v1572, 4294901760
    %1574 = vmatmul.mubr.f32.gmra.mrb[0].mxu0 %v1573
    %v1575 = vpop.f32.mrb[0].mxu0
    %v1576 = vadd.f32 %v1416, %v1575
    %v1577 = vpop.f32.mrb[0].mxu0
    %1578 = vmatprep.mubr.f32.mxu0 0.0
    %v1579 = vand.u32 %v1387, 4294901760
    %v1580 = vsub.f32 %v1387, %v1579
    %v1581 = vand.u32 %v1580, 4294901760
    %v1582 = vsub.f32 %v1580, %v1581
    %v1583 = vand.u32 %v1582, 4294901760
    %1584 = vmatmul.mubr.f32.gmra.mrb[0].mxu0 %v1583
    %v1585 = vpop.f32.mrb[0].mxu0
    %v1586 = vadd.f32 %v1416, %v1585
    %v1587 = vpop.f32.mrb[0].mxu0
    %1588 = vmatprep.mubr.f32.mxu0 0.0
    %v1589 = vand.u32 %v1388, 4294901760
    %v1590 = vsub.f32 %v1388, %v1589
    %v1591 = vand.u32 %v1590, 4294901760
    %v1592 = vsub.f32 %v1590, %v1591
    %v1593 = vand.u32 %v1592, 4294901760
    %1594 = vmatmul.mubr.f32.gmra.mrb[0].mxu0 %v1593
    %v1595 = vpop.f32.mrb[0].mxu0
    %v1596 = vadd.f32 %v1416, %v1595
    %v1597 = vpop.f32.mrb[0].mxu0
    %1598 = vmatprep.mubr.f32.mxu0 0.0
    %v1599 = vand.u32 %v1389, 4294901760
    %v1600 = vsub.f32 %v1389, %v1599
    %v1601 = vand.u32 %v1600, 4294901760
    %v1602 = vsub.f32 %v1600, %v1601
    %v1603 = vand.u32 %v1602, 4294901760
    %1604 = vmatmul.mubr.f32.gmra.mrb[0].mxu0 %v1603
    %v1605 = vpop.f32.mrb[0].mxu0
    %v1606 = vadd.f32 %v1416, %v1605
    %v1607 = vpop.f32.mrb[0].mxu0
    %1608 = vmatprep.mubr.f32.mxu0 0.0
    %v1609 = vand.u32 %v1390, 4294901760
    %v1610 = vsub.f32 %v1390, %v1609
    %v1611 = vand.u32 %v1610, 4294901760
    %v1612 = vsub.f32 %v1610, %v1611
    %v1613 = vand.u32 %v1612, 4294901760
    %1614 = vmatmul.mubr.f32.gmra.mrb[0].mxu0 %v1613
    %v1615 = vpop.f32.mrb[0].mxu0
    %v1616 = vadd.f32 %v1416, %v1615
    %v1617 = vpop.f32.mrb[0].mxu0
    %1618 = vmatprep.mubr.f32.mxu0 0.0
    %v1619 = vand.u32 %v1391, 4294901760
    %v1620 = vsub.f32 %v1391, %v1619
    %v1621 = vand.u32 %v1620, 4294901760
    %v1622 = vsub.f32 %v1620, %v1621
    %v1623 = vand.u32 %v1622, 4294901760
    %1624 = vmatmul.mubr.f32.gmra.mrb[0].mxu0 %v1623
    %v1625 = vpop.f32.mrb[0].mxu0
    %v1626 = vadd.f32 %v1416, %v1625
    %v1627 = vpop.f32.mrb[0].mxu0
    %1628 = vmatprep.mubr.f32.mxu0 0.0
    %v1629 = vand.u32 %v1392, 4294901760
    %v1630 = vsub.f32 %v1392, %v1629
    %v1631 = vand.u32 %v1630, 4294901760
    %v1632 = vsub.f32 %v1630, %v1631
    %v1633 = vand.u32 %v1632, 4294901760
    %1634 = vmatmul.mubr.f32.gmra.mrb[0].mxu0 %v1633
    %v1635 = vpop.f32.mrb[0].mxu0
    %v1636 = vadd.f32 %v1416, %v1635
    %v1637 = vpop.f32.mrb[0].mxu0
    %1638 = vmatprep.mubr.f32.mxu0 0.0
    %v1639 = vand.u32 %v1393, 4294901760
    %v1640 = vsub.f32 %v1393, %v1639
    %v1641 = vand.u32 %v1640, 4294901760
    %v1642 = vsub.f32 %v1640, %v1641
    %v1643 = vand.u32 %v1642, 4294901760
    %1644 = vmatmul.mubr.f32.gmra.mrb[0].mxu0 %v1643
    %v1645 = vpop.f32.mrb[0].mxu0
    %v1646 = vadd.f32 %v1416, %v1645
    %v1647 = vpop.f32.mrb[0].mxu0
    %1648 = vmatprep.mubr.f32.mxu0 0.0
    %v1649 = vand.u32 %v1394, 4294901760
    %v1650 = vsub.f32 %v1394, %v1649
    %v1651 = vand.u32 %v1650, 4294901760
    %v1652 = vsub.f32 %v1650, %v1651
    %v1653 = vand.u32 %v1652, 4294901760
    %1654 = vmatmul.mubr.f32.gmra.mrb[0].mxu0 %v1653
    %v1655 = vpop.f32.mrb[0].mxu0
    %v1656 = vadd.f32 %v1416, %v1655
    %v1657 = vpop.f32.mrb[0].mxu0
    %1658 = vdwg.mxu0
    %1659 = vmatprep.subr.mxu0 0.0
    %v1660 = vand.u32 %v1395, 4294901760
    %v1661 = vsub.f32 %v1395, %v1660
    %v1662 = vand.u32 %v1661, 4294901760
    %v1663 = vsub.f32 %v1661, %v1662
    %v1664 = vand.u32 %v1663, 4294901760
    %1665 = vmatpush1.msra.mxu0 %v1664
    %1666 = vmatprep.subr.mxu0 0.0
    %v1667 = vand.u32 %v1396, 4294901760
    %v1668 = vsub.f32 %v1396, %v1667
    %v1669 = vand.u32 %v1668, 4294901760
    %v1670 = vsub.f32 %v1668, %v1669
    %v1671 = vand.u32 %v1670, 4294901760
    %1672 = vmatpush1.msra.mxu0 %v1671
    %1673 = vmatprep.subr.mxu0 0.0
    %v1674 = vand.u32 %v1397, 4294901760
    %v1675 = vsub.f32 %v1397, %v1674
    %v1676 = vand.u32 %v1675, 4294901760
    %v1677 = vsub.f32 %v1675, %v1676
    %v1678 = vand.u32 %v1677, 4294901760
    %1679 = vmatpush1.msra.mxu0 %v1678
    %1680 = vmatprep.subr.mxu0 0.0
    %v1681 = vand.u32 %v1398, 4294901760
    %v1682 = vsub.f32 %v1398, %v1681
    %v1683 = vand.u32 %v1682, 4294901760
    %v1684 = vsub.f32 %v1682, %v1683
    %v1685 = vand.u32 %v1684, 4294901760
    %1686 = vmatpush1.msra.mxu0 %v1685
    %1687 = vmatprep.subr.mxu0 0.0
    %v1688 = vand.u32 %v1399, 4294901760
    %v1689 = vsub.f32 %v1399, %v1688
    %v1690 = vand.u32 %v1689, 4294901760
    %v1691 = vsub.f32 %v1689, %v1690
    %v1692 = vand.u32 %v1691, 4294901760
    %1693 = vmatpush1.msra.mxu0 %v1692
    %1694 = vmatprep.subr.mxu0 0.0
    %v1695 = vand.u32 %v1400, 4294901760
    %v1696 = vsub.f32 %v1400, %v1695
    %v1697 = vand.u32 %v1696, 4294901760
    %v1698 = vsub.f32 %v1696, %v1697
    %v1699 = vand.u32 %v1698, 4294901760
    %1700 = vmatpush1.msra.mxu0 %v1699
    %1701 = vmatprep.subr.mxu0 0.0
    %v1702 = vand.u32 %v1401, 4294901760
    %v1703 = vsub.f32 %v1401, %v1702
    %v1704 = vand.u32 %v1703, 4294901760
    %v1705 = vsub.f32 %v1703, %v1704
    %v1706 = vand.u32 %v1705, 4294901760
    %1707 = vmatpush1.msra.mxu0 %v1706
    %1708 = vmatprep.subr.mxu0 0.0
    %v1709 = vand.u32 %v1402, 4294901760
    %v1710 = vsub.f32 %v1402, %v1709
    %v1711 = vand.u32 %v1710, 4294901760
    %v1712 = vsub.f32 %v1710, %v1711
    %v1713 = vand.u32 %v1712, 4294901760
    %1714 = vmatpush1.msra.mxu0 %v1713
    %1715 = vmatprep.subr.mxu0 0.0
    %v1716 = vand.u32 %v1403, 4294901760
    %v1717 = vsub.f32 %v1403, %v1716
    %v1718 = vand.u32 %v1717, 4294901760
    %v1719 = vsub.f32 %v1717, %v1718
    %v1720 = vand.u32 %v1719, 4294901760
    %1721 = vmatpush1.msra.mxu0 %v1720
    %1722 = vmatprep.subr.mxu0 0.0
    %v1723 = vand.u32 %v1404, 4294901760
    %v1724 = vsub.f32 %v1404, %v1723
    %v1725 = vand.u32 %v1724, 4294901760
    %v1726 = vsub.f32 %v1724, %v1725
    %v1727 = vand.u32 %v1726, 4294901760
    %1728 = vmatpush1.msra.mxu0 %v1727
    %1729 = vmatprep.subr.mxu0 0.0
    %v1730 = vand.u32 %v1405, 4294901760
    %v1731 = vsub.f32 %v1405, %v1730
    %v1732 = vand.u32 %v1731, 4294901760
    %v1733 = vsub.f32 %v1731, %v1732
    %v1734 = vand.u32 %v1733, 4294901760
    %1735 = vmatpush1.msra.mxu0 %v1734
    %1736 = vmatprep.subr.mxu0 0.0
    %v1737 = vand.u32 %v1406, 4294901760
    %v1738 = vsub.f32 %v1406, %v1737
    %v1739 = vand.u32 %v1738, 4294901760
    %v1740 = vsub.f32 %v1738, %v1739
    %v1741 = vand.u32 %v1740, 4294901760
    %1742 = vmatpush1.msra.mxu0 %v1741
    %1743 = vmatprep.subr.mxu0 0.0
    %v1744 = vand.u32 %v1407, 4294901760
    %v1745 = vsub.f32 %v1407, %v1744
    %v1746 = vand.u32 %v1745, 4294901760
    %v1747 = vsub.f32 %v1745, %v1746
    %v1748 = vand.u32 %v1747, 4294901760
    %1749 = vmatpush1.msra.mxu0 %v1748
    %1750 = vmatprep.subr.mxu0 0.0
    %v1751 = vand.u32 %v1408, 4294901760
    %v1752 = vsub.f32 %v1408, %v1751
    %v1753 = vand.u32 %v1752, 4294901760
    %v1754 = vsub.f32 %v1752, %v1753
    %v1755 = vand.u32 %v1754, 4294901760
    %1756 = vmatpush1.msra.mxu0 %v1755
    %1757 = vmatprep.subr.mxu0 0.0
    %v1758 = vand.u32 %v1409, 4294901760
    %v1759 = vsub.f32 %v1409, %v1758
    %v1760 = vand.u32 %v1759, 4294901760
    %v1761 = vsub.f32 %v1759, %v1760
    %v1762 = vand.u32 %v1761, 4294901760
    %1763 = vmatpush1.msra.mxu0 %v1762
    %1764 = vmatprep.subr.mxu0 0.0
    %v1765 = vand.u32 %v1410, 4294901760
    %v1766 = vsub.f32 %v1410, %v1765
    %v1767 = vand.u32 %v1766, 4294901760
    %v1768 = vsub.f32 %v1766, %v1767
    %v1769 = vand.u32 %v1768, 4294901760
    %1770 = vmatpush1.msra.mxu0 %v1769
    %1771 = vmatprep.subr.mxu0 0.0
    %1772 = vmatpush1.msra.mxu0 0.0
    %1773 = vmatprep.subr.mxu0 0.0
    %1774 = vmatpush1.msra.mxu0 0.0
    %1775 = vmatprep.subr.mxu0 0.0
    %1776 = vmatpush1.msra.mxu0 0.0
    %1777 = vmatprep.subr.mxu0 0.0
    %1778 = vmatpush1.msra.mxu0 0.0
    %1779 = vmatprep.subr.mxu0 0.0
    %1780 = vmatpush1.msra.mxu0 0.0
    %1781 = vmatprep.subr.mxu0 0.0
    %1782 = vmatpush1.msra.mxu0 0.0
    %1783 = vmatprep.subr.mxu0 0.0
    %1784 = vmatpush1.msra.mxu0 0.0
    %1785 = vmatprep.subr.mxu0 0.0
    %1786 = vmatpush1.msra.mxu0 0.0
    %1787 = vmatprep.subr.mxu0 0.0
    %1788 = vmatpush1.msra.mxu0 0.0
    %1789 = vmatprep.subr.mxu0 0.0
    %1790 = vmatpush1.msra.mxu0 0.0
    %1791 = vmatprep.subr.mxu0 0.0
    %1792 = vmatpush1.msra.mxu0 0.0
    %1793 = vmatprep.subr.mxu0 0.0
    %1794 = vmatpush1.msra.mxu0 0.0
    %1795 = vmatprep.subr.mxu0 0.0
    %1796 = vmatpush1.msra.mxu0 0.0
    %1797 = vmatprep.subr.mxu0 0.0
    %1798 = vmatpush1.msra.mxu0 0.0
    %1799 = vmatprep.subr.mxu0 0.0
    %1800 = vmatpush1.msra.mxu0 0.0
    %1801 = vmatprep.subr.mxu0 0.0
    %1802 = vmatpush1.msra.mxu0 0.0
    %1803 = vmatprep.mubr.f32.mxu0 0.0
    %v1804 = vand.u32 %v1379, 4294901760
    %1805 = vmatmul.mubr.f32.gmra.mrb[0].mxu0 %v1804
    %v1806 = vpop.f32.mrb[0].mxu0
    %v1807 = vadd.f32 %v1506, %v1806
    %v1808 = vpop.f32.mrb[0].mxu0
    %1809 = vmatprep.mubr.f32.mxu0 0.0
    %v1810 = vand.u32 %v1380, 4294901760
    %1811 = vmatmul.mubr.f32.gmra.mrb[0].mxu0 %v1810
    %v1812 = vpop.f32.mrb[0].mxu0
    %v1813 = vadd.f32 %v1516, %v1812
    %v1814 = vpop.f32.mrb[0].mxu0
    %1815 = vmatprep.mubr.f32.mxu0 0.0
    %v1816 = vand.u32 %v1381, 4294901760
    %1817 = vmatmul.mubr.f32.gmra.mrb[0].mxu0 %v1816
    %v1818 = vpop.f32.mrb[0].mxu0
    %v1819 = vadd.f32 %v1526, %v1818
    %v1820 = vpop.f32.mrb[0].mxu0
    %1821 = vmatprep.mubr.f32.mxu0 0.0
    %v1822 = vand.u32 %v1382, 4294901760
    %1823 = vmatmul.mubr.f32.gmra.mrb[0].mxu0 %v1822
    %v1824 = vpop.f32.mrb[0].mxu0
    %v1825 = vadd.f32 %v1536, %v1824
    %v1826 = vpop.f32.mrb[0].mxu0
    %1827 = vmatprep.mubr.f32.mxu0 0.0
    %v1828 = vand.u32 %v1383, 4294901760
    %1829 = vmatmul.mubr.f32.gmra.mrb[0].mxu0 %v1828
    %v1830 = vpop.f32.mrb[0].mxu0
    %v1831 = vadd.f32 %v1546, %v1830
    %v1832 = vpop.f32.mrb[0].mxu0
    %1833 = vmatprep.mubr.f32.mxu0 0.0
    %v1834 = vand.u32 %v1384, 4294901760
    %1835 = vmatmul.mubr.f32.gmra.mrb[0].mxu0 %v1834
    %v1836 = vpop.f32.mrb[0].mxu0
    %v1837 = vadd.f32 %v1556, %v1836
    %v1838 = vpop.f32.mrb[0].mxu0
    %1839 = vmatprep.mubr.f32.mxu0 0.0
    %v1840 = vand.u32 %v1385, 4294901760
    %1841 = vmatmul.mubr.f32.gmra.mrb[0].mxu0 %v1840
    %v1842 = vpop.f32.mrb[0].mxu0
    %v1843 = vadd.f32 %v1566, %v1842
    %v1844 = vpop.f32.mrb[0].mxu0
    %1845 = vmatprep.mubr.f32.mxu0 0.0
    %v1846 = vand.u32 %v1386, 4294901760
    %1847 = vmatmul.mubr.f32.gmra.mrb[0].mxu0 %v1846
    %v1848 = vpop.f32.mrb[0].mxu0
    %v1849 = vadd.f32 %v1576, %v1848
    %v1850 = vpop.f32.mrb[0].mxu0
    %1851 = vmatprep.mubr.f32.mxu0 0.0
    %v1852 = vand.u32 %v1387, 4294901760
    %1853 = vmatmul.mubr.f32.gmra.mrb[0].mxu0 %v1852
    %v1854 = vpop.f32.mrb[0].mxu0
    %v1855 = vadd.f32 %v1586, %v1854
    %v1856 = vpop.f32.mrb[0].mxu0
    %1857 = vmatprep.mubr.f32.mxu0 0.0
    %v1858 = vand.u32 %v1388, 4294901760
    %1859 = vmatmul.mubr.f32.gmra.mrb[0].mxu0 %v1858
    %v1860 = vpop.f32.mrb[0].mxu0
    %v1861 = vadd.f32 %v1596, %v1860
    %v1862 = vpop.f32.mrb[0].mxu0
    %1863 = vmatprep.mubr.f32.mxu0 0.0
    %v1864 = vand.u32 %v1389, 4294901760
    %1865 = vmatmul.mubr.f32.gmra.mrb[0].mxu0 %v1864
    %v1866 = vpop.f32.mrb[0].mxu0
    %v1867 = vadd.f32 %v1606, %v1866
    %v1868 = vpop.f32.mrb[0].mxu0
    %1869 = vmatprep.mubr.f32.mxu0 0.0
    %v1870 = vand.u32 %v1390, 4294901760
    %1871 = vmatmul.mubr.f32.gmra.mrb[0].mxu0 %v1870
    %v1872 = vpop.f32.mrb[0].mxu0
    %v1873 = vadd.f32 %v1616, %v1872
    %v1874 = vpop.f32.mrb[0].mxu0
    %1875 = vmatprep.mubr.f32.mxu0 0.0
    %v1876 = vand.u32 %v1391, 4294901760
    %1877 = vmatmul.mubr.f32.gmra.mrb[0].mxu0 %v1876
    %v1878 = vpop.f32.mrb[0].mxu0
    %v1879 = vadd.f32 %v1626, %v1878
    %v1880 = vpop.f32.mrb[0].mxu0
    %1881 = vmatprep.mubr.f32.mxu0 0.0
    %v1882 = vand.u32 %v1392, 4294901760
    %1883 = vmatmul.mubr.f32.gmra.mrb[0].mxu0 %v1882
    %v1884 = vpop.f32.mrb[0].mxu0
    %v1885 = vadd.f32 %v1636, %v1884
    %v1886 = vpop.f32.mrb[0].mxu0
    %1887 = vmatprep.mubr.f32.mxu0 0.0
    %v1888 = vand.u32 %v1393, 4294901760
    %1889 = vmatmul.mubr.f32.gmra.mrb[0].mxu0 %v1888
    %v1890 = vpop.f32.mrb[0].mxu0
    %v1891 = vadd.f32 %v1646, %v1890
    %v1892 = vpop.f32.mrb[0].mxu0
    %1893 = vmatprep.mubr.f32.mxu0 0.0
    %v1894 = vand.u32 %v1394, 4294901760
    %1895 = vmatmul.mubr.f32.gmra.mrb[0].mxu0 %v1894
    %v1896 = vpop.f32.mrb[0].mxu0
    %v1897 = vadd.f32 %v1656, %v1896
    %v1898 = vpop.f32.mrb[0].mxu0
    %1899 = vdwg.mxu0
    %1900 = vmatprep.subr.mxu0 0.0
    %v1901 = vand.u32 %v1395, 4294901760
    %v1902 = vsub.f32 %v1395, %v1901
    %1903 = vmatpush1.msra.mxu0 %v1902
    %1904 = vmatprep.subr.mxu0 0.0
    %v1905 = vand.u32 %v1396, 4294901760
    %v1906 = vsub.f32 %v1396, %v1905
    %1907 = vmatpush1.msra.mxu0 %v1906
    %1908 = vmatprep.subr.mxu0 0.0
    %v1909 = vand.u32 %v1397, 4294901760
    %v1910 = vsub.f32 %v1397, %v1909
    %1911 = vmatpush1.msra.mxu0 %v1910
    %1912 = vmatprep.subr.mxu0 0.0
    %v1913 = vand.u32 %v1398, 4294901760
    %v1914 = vsub.f32 %v1398, %v1913
    %1915 = vmatpush1.msra.mxu0 %v1914
    %1916 = vmatprep.subr.mxu0 0.0
    %v1917 = vand.u32 %v1399, 4294901760
    %v1918 = vsub.f32 %v1399, %v1917
    %1919 = vmatpush1.msra.mxu0 %v1918
    %1920 = vmatprep.subr.mxu0 0.0
    %v1921 = vand.u32 %v1400, 4294901760
    %v1922 = vsub.f32 %v1400, %v1921
    %1923 = vmatpush1.msra.mxu0 %v1922
    %1924 = vmatprep.subr.mxu0 0.0
    %v1925 = vand.u32 %v1401, 4294901760
    %v1926 = vsub.f32 %v1401, %v1925
    %1927 = vmatpush1.msra.mxu0 %v1926
    %1928 = vmatprep.subr.mxu0 0.0
    %v1929 = vand.u32 %v1402, 4294901760
    %v1930 = vsub.f32 %v1402, %v1929
    %1931 = vmatpush1.msra.mxu0 %v1930
    %1932 = vmatprep.subr.mxu0 0.0
    %v1933 = vand.u32 %v1403, 4294901760
    %v1934 = vsub.f32 %v1403, %v1933
    %1935 = vmatpush1.msra.mxu0 %v1934
    %1936 = vmatprep.subr.mxu0 0.0
    %v1937 = vand.u32 %v1404, 4294901760
    %v1938 = vsub.f32 %v1404, %v1937
    %1939 = vmatpush1.msra.mxu0 %v1938
    %1940 = vmatprep.subr.mxu0 0.0
    %v1941 = vand.u32 %v1405, 4294901760
    %v1942 = vsub.f32 %v1405, %v1941
    %1943 = vmatpush1.msra.mxu0 %v1942
    %1944 = vmatprep.subr.mxu0 0.0
    %v1945 = vand.u32 %v1406, 4294901760
    %v1946 = vsub.f32 %v1406, %v1945
    %1947 = vmatpush1.msra.mxu0 %v1946
    %1948 = vmatprep.subr.mxu0 0.0
    %v1949 = vand.u32 %v1407, 4294901760
    %v1950 = vsub.f32 %v1407, %v1949
    %1951 = vmatpush1.msra.mxu0 %v1950
    %1952 = vmatprep.subr.mxu0 0.0
    %v1953 = vand.u32 %v1408, 4294901760
    %v1954 = vsub.f32 %v1408, %v1953
    %1955 = vmatpush1.msra.mxu0 %v1954
    %1956 = vmatprep.subr.mxu0 0.0
    %v1957 = vand.u32 %v1409, 4294901760
    %v1958 = vsub.f32 %v1409, %v1957
    %1959 = vmatpush1.msra.mxu0 %v1958
    %1960 = vmatprep.subr.mxu0 0.0
    %v1961 = vand.u32 %v1410, 4294901760
    %v1962 = vsub.f32 %v1410, %v1961
    %1963 = vmatpush1.msra.mxu0 %v1962
    %1964 = vmatprep.subr.mxu0 0.0
    %1965 = vmatpush1.msra.mxu0 0.0
    %1966 = vmatprep.subr.mxu0 0.0
    %1967 = vmatpush1.msra.mxu0 0.0
    %1968 = vmatprep.subr.mxu0 0.0
    %1969 = vmatpush1.msra.mxu0 0.0
    %1970 = vmatprep.subr.mxu0 0.0
    %1971 = vmatpush1.msra.mxu0 0.0
    %1972 = vmatprep.subr.mxu0 0.0
    %1973 = vmatpush1.msra.mxu0 0.0
    %1974 = vmatprep.subr.mxu0 0.0
    %1975 = vmatpush1.msra.mxu0 0.0
    %1976 = vmatprep.subr.mxu0 0.0
    %1977 = vmatpush1.msra.mxu0 0.0
    %1978 = vmatprep.subr.mxu0 0.0
    %1979 = vmatpush1.msra.mxu0 0.0
    %1980 = vmatprep.subr.mxu0 0.0
    %1981 = vmatpush1.msra.mxu0 0.0
    %1982 = vmatprep.subr.mxu0 0.0
    %1983 = vmatpush1.msra.mxu0 0.0
    %1984 = vmatprep.subr.mxu0 0.0
    %1985 = vmatpush1.msra.mxu0 0.0
    %1986 = vmatprep.subr.mxu0 0.0
    %1987 = vmatpush1.msra.mxu0 0.0
    %1988 = vmatprep.subr.mxu0 0.0
    %1989 = vmatpush1.msra.mxu0 0.0
    %1990 = vmatprep.subr.mxu0 0.0
    %1991 = vmatpush1.msra.mxu0 0.0
    %1992 = vmatprep.subr.mxu0 0.0
    %1993 = vmatpush1.msra.mxu0 0.0
    %1994 = vmatprep.subr.mxu0 0.0
    %1995 = vmatpush1.msra.mxu0 0.0
    %1996 = vmatprep.mubr.f32.mxu0 0.0
    %v1997 = vand.u32 %v1379, 4294901760
    %v1998 = vsub.f32 %v1379, %v1997
    %1999 = vmatmul.mubr.f32.gmra.mrb[0].mxu0 %v1998
    %v2000 = vpop.f32.mrb[0].mxu0
    %v2001 = vadd.f32 %v1807, %v2000
    %v2002 = vpop.f32.mrb[0].mxu0
    %2003 = vmatprep.mubr.f32.mxu0 0.0
    %v2004 = vand.u32 %v1380, 4294901760
    %v2005 = vsub.f32 %v1380, %v2004
    %2006 = vmatmul.mubr.f32.gmra.mrb[0].mxu0 %v2005
    %v2007 = vpop.f32.mrb[0].mxu0
    %v2008 = vadd.f32 %v1813, %v2007
    %v2009 = vpop.f32.mrb[0].mxu0
    %2010 = vmatprep.mubr.f32.mxu0 0.0
    %v2011 = vand.u32 %v1381, 4294901760
    %v2012 = vsub.f32 %v1381, %v2011
    %2013 = vmatmul.mubr.f32.gmra.mrb[0].mxu0 %v2012
    %v2014 = vpop.f32.mrb[0].mxu0
    %v2015 = vadd.f32 %v1819, %v2014
    %v2016 = vpop.f32.mrb[0].mxu0
    %2017 = vmatprep.mubr.f32.mxu0 0.0
    %v2018 = vand.u32 %v1382, 4294901760
    %v2019 = vsub.f32 %v1382, %v2018
    %2020 = vmatmul.mubr.f32.gmra.mrb[0].mxu0 %v2019
    %v2021 = vpop.f32.mrb[0].mxu0
    %v2022 = vadd.f32 %v1825, %v2021
    %v2023 = vpop.f32.mrb[0].mxu0
    %2024 = vmatprep.mubr.f32.mxu0 0.0
    %v2025 = vand.u32 %v1383, 4294901760
    %v2026 = vsub.f32 %v1383, %v2025
    %2027 = vmatmul.mubr.f32.gmra.mrb[0].mxu0 %v2026
    %v2028 = vpop.f32.mrb[0].mxu0
    %v2029 = vadd.f32 %v1831, %v2028
    %v2030 = vpop.f32.mrb[0].mxu0
    %2031 = vmatprep.mubr.f32.mxu0 0.0
    %v2032 = vand.u32 %v1384, 4294901760
    %v2033 = vsub.f32 %v1384, %v2032
    %2034 = vmatmul.mubr.f32.gmra.mrb[0].mxu0 %v2033
    %v2035 = vpop.f32.mrb[0].mxu0
    %v2036 = vadd.f32 %v1837, %v2035
    %v2037 = vpop.f32.mrb[0].mxu0
    %2038 = vmatprep.mubr.f32.mxu0 0.0
    %v2039 = vand.u32 %v1385, 4294901760
    %v2040 = vsub.f32 %v1385, %v2039
    %2041 = vmatmul.mubr.f32.gmra.mrb[0].mxu0 %v2040
    %v2042 = vpop.f32.mrb[0].mxu0
    %v2043 = vadd.f32 %v1843, %v2042
    %v2044 = vpop.f32.mrb[0].mxu0
    %2045 = vmatprep.mubr.f32.mxu0 0.0
    %v2046 = vand.u32 %v1386, 4294901760
    %v2047 = vsub.f32 %v1386, %v2046
    %2048 = vmatmul.mubr.f32.gmra.mrb[0].mxu0 %v2047
    %v2049 = vpop.f32.mrb[0].mxu0
    %v2050 = vadd.f32 %v1849, %v2049
    %v2051 = vpop.f32.mrb[0].mxu0
    %2052 = vmatprep.mubr.f32.mxu0 0.0
    %v2053 = vand.u32 %v1387, 4294901760
    %v2054 = vsub.f32 %v1387, %v2053
    %2055 = vmatmul.mubr.f32.gmra.mrb[0].mxu0 %v2054
    %v2056 = vpop.f32.mrb[0].mxu0
    %v2057 = vadd.f32 %v1855, %v2056
    %v2058 = vpop.f32.mrb[0].mxu0
    %2059 = vmatprep.mubr.f32.mxu0 0.0
    %v2060 = vand.u32 %v1388, 4294901760
    %v2061 = vsub.f32 %v1388, %v2060
    %2062 = vmatmul.mubr.f32.gmra.mrb[0].mxu0 %v2061
    %v2063 = vpop.f32.mrb[0].mxu0
    %v2064 = vadd.f32 %v1861, %v2063
    %v2065 = vpop.f32.mrb[0].mxu0
    %2066 = vmatprep.mubr.f32.mxu0 0.0
    %v2067 = vand.u32 %v1389, 4294901760
    %v2068 = vsub.f32 %v1389, %v2067
    %2069 = vmatmul.mubr.f32.gmra.mrb[0].mxu0 %v2068
    %v2070 = vpop.f32.mrb[0].mxu0
    %v2071 = vadd.f32 %v1867, %v2070
    %v2072 = vpop.f32.mrb[0].mxu0
    %2073 = vmatprep.mubr.f32.mxu0 0.0
    %v2074 = vand.u32 %v1390, 4294901760
    %v2075 = vsub.f32 %v1390, %v2074
    %2076 = vmatmul.mubr.f32.gmra.mrb[0].mxu0 %v2075
    %v2077 = vpop.f32.mrb[0].mxu0
    %v2078 = vadd.f32 %v1873, %v2077
    %v2079 = vpop.f32.mrb[0].mxu0
    %2080 = vmatprep.mubr.f32.mxu0 0.0
    %v2081 = vand.u32 %v1391, 4294901760
    %v2082 = vsub.f32 %v1391, %v2081
    %2083 = vmatmul.mubr.f32.gmra.mrb[0].mxu0 %v2082
    %v2084 = vpop.f32.mrb[0].mxu0
    %v2085 = vadd.f32 %v1879, %v2084
    %v2086 = vpop.f32.mrb[0].mxu0
    %2087 = vmatprep.mubr.f32.mxu0 0.0
    %v2088 = vand.u32 %v1392, 4294901760
    %v2089 = vsub.f32 %v1392, %v2088
    %2090 = vmatmul.mubr.f32.gmra.mrb[0].mxu0 %v2089
    %v2091 = vpop.f32.mrb[0].mxu0
    %v2092 = vadd.f32 %v1885, %v2091
    %v2093 = vpop.f32.mrb[0].mxu0
    %2094 = vmatprep.mubr.f32.mxu0 0.0
    %v2095 = vand.u32 %v1393, 4294901760
    %v2096 = vsub.f32 %v1393, %v2095
    %2097 = vmatmul.mubr.f32.gmra.mrb[0].mxu0 %v2096
    %v2098 = vpop.f32.mrb[0].mxu0
    %v2099 = vadd.f32 %v1891, %v2098
    %v2100 = vpop.f32.mrb[0].mxu0
    %2101 = vmatprep.mubr.f32.mxu0 0.0
    %v2102 = vand.u32 %v1394, 4294901760
    %v2103 = vsub.f32 %v1394, %v2102
    %2104 = vmatmul.mubr.f32.gmra.mrb[0].mxu0 %v2103
    %v2105 = vpop.f32.mrb[0].mxu0
    %v2106 = vadd.f32 %v1897, %v2105
    %v2107 = vpop.f32.mrb[0].mxu0
    %2108 = vdwg.mxu0
    %2109 = vmatprep.subr.mxu0 0.0
    %v2110 = vand.u32 %v1395, 4294901760
    %2111 = vmatpush1.msra.mxu0 %v2110
    %2112 = vmatprep.subr.mxu0 0.0
    %v2113 = vand.u32 %v1396, 4294901760
    %2114 = vmatpush1.msra.mxu0 %v2113
    %2115 = vmatprep.subr.mxu0 0.0
    %v2116 = vand.u32 %v1397, 4294901760
    %2117 = vmatpush1.msra.mxu0 %v2116
    %2118 = vmatprep.subr.mxu0 0.0
    %v2119 = vand.u32 %v1398, 4294901760
    %2120 = vmatpush1.msra.mxu0 %v2119
    %2121 = vmatprep.subr.mxu0 0.0
    %v2122 = vand.u32 %v1399, 4294901760
    %2123 = vmatpush1.msra.mxu0 %v2122
    %2124 = vmatprep.subr.mxu0 0.0
    %v2125 = vand.u32 %v1400, 4294901760
    %2126 = vmatpush1.msra.mxu0 %v2125
    %2127 = vmatprep.subr.mxu0 0.0
    %v2128 = vand.u32 %v1401, 4294901760
    %2129 = vmatpush1.msra.mxu0 %v2128
    %2130 = vmatprep.subr.mxu0 0.0
    %v2131 = vand.u32 %v1402, 4294901760
    %2132 = vmatpush1.msra.mxu0 %v2131
    %2133 = vmatprep.subr.mxu0 0.0
    %v2134 = vand.u32 %v1403, 4294901760
    %2135 = vmatpush1.msra.mxu0 %v2134
    %2136 = vmatprep.subr.mxu0 0.0
    %v2137 = vand.u32 %v1404, 4294901760
    %2138 = vmatpush1.msra.mxu0 %v2137
    %2139 = vmatprep.subr.mxu0 0.0
    %v2140 = vand.u32 %v1405, 4294901760
    %2141 = vmatpush1.msra.mxu0 %v2140
    %2142 = vmatprep.subr.mxu0 0.0
    %v2143 = vand.u32 %v1406, 4294901760
    %2144 = vmatpush1.msra.mxu0 %v2143
    %2145 = vmatprep.subr.mxu0 0.0
    %v2146 = vand.u32 %v1407, 4294901760
    %2147 = vmatpush1.msra.mxu0 %v2146
    %2148 = vmatprep.subr.mxu0 0.0
    %v2149 = vand.u32 %v1408, 4294901760
    %2150 = vmatpush1.msra.mxu0 %v2149
    %2151 = vmatprep.subr.mxu0 0.0
    %v2152 = vand.u32 %v1409, 4294901760
    %2153 = vmatpush1.msra.mxu0 %v2152
    %2154 = vmatprep.subr.mxu0 0.0
    %v2155 = vand.u32 %v1410, 4294901760
    %2156 = vmatpush1.msra.mxu0 %v2155
    %2157 = vmatprep.subr.mxu0 0.0
    %2158 = vmatpush1.msra.mxu0 0.0
    %2159 = vmatprep.subr.mxu0 0.0
    %2160 = vmatpush1.msra.mxu0 0.0
    %2161 = vmatprep.subr.mxu0 0.0
    %2162 = vmatpush1.msra.mxu0 0.0
    %2163 = vmatprep.subr.mxu0 0.0
    %2164 = vmatpush1.msra.mxu0 0.0
    %2165 = vmatprep.subr.mxu0 0.0
    %2166 = vmatpush1.msra.mxu0 0.0
    %2167 = vmatprep.subr.mxu0 0.0
    %2168 = vmatpush1.msra.mxu0 0.0
    %2169 = vmatprep.subr.mxu0 0.0
    %2170 = vmatpush1.msra.mxu0 0.0
    %2171 = vmatprep.subr.mxu0 0.0
    %2172 = vmatpush1.msra.mxu0 0.0
    %2173 = vmatprep.subr.mxu0 0.0
    %2174 = vmatpush1.msra.mxu0 0.0
    %2175 = vmatprep.subr.mxu0 0.0
    %2176 = vmatpush1.msra.mxu0 0.0
    %2177 = vmatprep.subr.mxu0 0.0
    %2178 = vmatpush1.msra.mxu0 0.0
    %2179 = vmatprep.subr.mxu0 0.0
    %2180 = vmatpush1.msra.mxu0 0.0
    %2181 = vmatprep.subr.mxu0 0.0
    %2182 = vmatpush1.msra.mxu0 0.0
    %2183 = vmatprep.subr.mxu0 0.0
    %2184 = vmatpush1.msra.mxu0 0.0
    %2185 = vmatprep.subr.mxu0 0.0
    %2186 = vmatpush1.msra.mxu0 0.0
    %2187 = vmatprep.subr.mxu0 0.0
    %2188 = vmatpush1.msra.mxu0 0.0
    %2189 = vmatprep.mubr.f32.mxu0 0.0
    %v2190 = vand.u32 %v1379, 4294901760
    %v2191 = vsub.f32 %v1379, %v2190
    %v2192 = vand.u32 %v2191, 4294901760
    %2193 = vmatmul.mubr.f32.gmra.mrb[0].mxu0 %v2192
    %v2194 = vpop.f32.mrb[0].mxu0
    %v2195 = vadd.f32 %v2001, %v2194
    %v2196 = vpop.f32.mrb[0].mxu0
    %2197 = vmatprep.mubr.f32.mxu0 0.0
    %v2198 = vand.u32 %v1380, 4294901760
    %v2199 = vsub.f32 %v1380, %v2198
    %v2200 = vand.u32 %v2199, 4294901760
    %2201 = vmatmul.mubr.f32.gmra.mrb[0].mxu0 %v2200
    %v2202 = vpop.f32.mrb[0].mxu0
    %v2203 = vadd.f32 %v2008, %v2202
    %v2204 = vpop.f32.mrb[0].mxu0
    %2205 = vmatprep.mubr.f32.mxu0 0.0
    %v2206 = vand.u32 %v1381, 4294901760
    %v2207 = vsub.f32 %v1381, %v2206
    %v2208 = vand.u32 %v2207, 4294901760
    %2209 = vmatmul.mubr.f32.gmra.mrb[0].mxu0 %v2208
    %v2210 = vpop.f32.mrb[0].mxu0
    %v2211 = vadd.f32 %v2015, %v2210
    %v2212 = vpop.f32.mrb[0].mxu0
    %2213 = vmatprep.mubr.f32.mxu0 0.0
    %v2214 = vand.u32 %v1382, 4294901760
    %v2215 = vsub.f32 %v1382, %v2214
    %v2216 = vand.u32 %v2215, 4294901760
    %2217 = vmatmul.mubr.f32.gmra.mrb[0].mxu0 %v2216
    %v2218 = vpop.f32.mrb[0].mxu0
    %v2219 = vadd.f32 %v2022, %v2218
    %v2220 = vpop.f32.mrb[0].mxu0
    %2221 = vmatprep.mubr.f32.mxu0 0.0
    %v2222 = vand.u32 %v1383, 4294901760
    %v2223 = vsub.f32 %v1383, %v2222
    %v2224 = vand.u32 %v2223, 4294901760
    %2225 = vmatmul.mubr.f32.gmra.mrb[0].mxu0 %v2224
    %v2226 = vpop.f32.mrb[0].mxu0
    %v2227 = vadd.f32 %v2029, %v2226
    %v2228 = vpop.f32.mrb[0].mxu0
    %2229 = vmatprep.mubr.f32.mxu0 0.0
    %v2230 = vand.u32 %v1384, 4294901760
    %v2231 = vsub.f32 %v1384, %v2230
    %v2232 = vand.u32 %v2231, 4294901760
    %2233 = vmatmul.mubr.f32.gmra.mrb[0].mxu0 %v2232
    %v2234 = vpop.f32.mrb[0].mxu0
    %v2235 = vadd.f32 %v2036, %v2234
    %v2236 = vpop.f32.mrb[0].mxu0
    %2237 = vmatprep.mubr.f32.mxu0 0.0
    %v2238 = vand.u32 %v1385, 4294901760
    %v2239 = vsub.f32 %v1385, %v2238
    %v2240 = vand.u32 %v2239, 4294901760
    %2241 = vmatmul.mubr.f32.gmra.mrb[0].mxu0 %v2240
    %v2242 = vpop.f32.mrb[0].mxu0
    %v2243 = vadd.f32 %v2043, %v2242
    %v2244 = vpop.f32.mrb[0].mxu0
    %2245 = vmatprep.mubr.f32.mxu0 0.0
    %v2246 = vand.u32 %v1386, 4294901760
    %v2247 = vsub.f32 %v1386, %v2246
    %v2248 = vand.u32 %v2247, 4294901760
    %2249 = vmatmul.mubr.f32.gmra.mrb[0].mxu0 %v2248
    %v2250 = vpop.f32.mrb[0].mxu0
    %v2251 = vadd.f32 %v2050, %v2250
    %v2252 = vpop.f32.mrb[0].mxu0
    %2253 = vmatprep.mubr.f32.mxu0 0.0
    %v2254 = vand.u32 %v1387, 4294901760
    %v2255 = vsub.f32 %v1387, %v2254
    %v2256 = vand.u32 %v2255, 4294901760
    %2257 = vmatmul.mubr.f32.gmra.mrb[0].mxu0 %v2256
    %v2258 = vpop.f32.mrb[0].mxu0
    %v2259 = vadd.f32 %v2057, %v2258
    %v2260 = vpop.f32.mrb[0].mxu0
    %2261 = vmatprep.mubr.f32.mxu0 0.0
    %v2262 = vand.u32 %v1388, 4294901760
    %v2263 = vsub.f32 %v1388, %v2262
    %v2264 = vand.u32 %v2263, 4294901760
    %2265 = vmatmul.mubr.f32.gmra.mrb[0].mxu0 %v2264
    %v2266 = vpop.f32.mrb[0].mxu0
    %v2267 = vadd.f32 %v2064, %v2266
    %v2268 = vpop.f32.mrb[0].mxu0
    %2269 = vmatprep.mubr.f32.mxu0 0.0
    %v2270 = vand.u32 %v1389, 4294901760
    %v2271 = vsub.f32 %v1389, %v2270
    %v2272 = vand.u32 %v2271, 4294901760
    %2273 = vmatmul.mubr.f32.gmra.mrb[0].mxu0 %v2272
    %v2274 = vpop.f32.mrb[0].mxu0
    %v2275 = vadd.f32 %v2071, %v2274
    %v2276 = vpop.f32.mrb[0].mxu0
    %2277 = vmatprep.mubr.f32.mxu0 0.0
    %v2278 = vand.u32 %v1390, 4294901760
    %v2279 = vsub.f32 %v1390, %v2278
    %v2280 = vand.u32 %v2279, 4294901760
    %2281 = vmatmul.mubr.f32.gmra.mrb[0].mxu0 %v2280
    %v2282 = vpop.f32.mrb[0].mxu0
    %v2283 = vadd.f32 %v2078, %v2282
    %v2284 = vpop.f32.mrb[0].mxu0
    %2285 = vmatprep.mubr.f32.mxu0 0.0
    %v2286 = vand.u32 %v1391, 4294901760
    %v2287 = vsub.f32 %v1391, %v2286
    %v2288 = vand.u32 %v2287, 4294901760
    %2289 = vmatmul.mubr.f32.gmra.mrb[0].mxu0 %v2288
    %v2290 = vpop.f32.mrb[0].mxu0
    %v2291 = vadd.f32 %v2085, %v2290
    %v2292 = vpop.f32.mrb[0].mxu0
    %2293 = vmatprep.mubr.f32.mxu0 0.0
    %v2294 = vand.u32 %v1392, 4294901760
    %v2295 = vsub.f32 %v1392, %v2294
    %v2296 = vand.u32 %v2295, 4294901760
    %2297 = vmatmul.mubr.f32.gmra.mrb[0].mxu0 %v2296
    %v2298 = vpop.f32.mrb[0].mxu0
    %v2299 = vadd.f32 %v2092, %v2298
    %v2300 = vpop.f32.mrb[0].mxu0
    %2301 = vmatprep.mubr.f32.mxu0 0.0
    %v2302 = vand.u32 %v1393, 4294901760
    %v2303 = vsub.f32 %v1393, %v2302
    %v2304 = vand.u32 %v2303, 4294901760
    %2305 = vmatmul.mubr.f32.gmra.mrb[0].mxu0 %v2304
    %v2306 = vpop.f32.mrb[0].mxu0
    %v2307 = vadd.f32 %v2099, %v2306
    %v2308 = vpop.f32.mrb[0].mxu0
    %2309 = vmatprep.mubr.f32.mxu0 0.0
    %v2310 = vand.u32 %v1394, 4294901760
    %v2311 = vsub.f32 %v1394, %v2310
    %v2312 = vand.u32 %v2311, 4294901760
    %2313 = vmatmul.mubr.f32.gmra.mrb[0].mxu0 %v2312
    %v2314 = vpop.f32.mrb[0].mxu0
    %v2315 = vadd.f32 %v2106, %v2314
    %v2316 = vpop.f32.mrb[0].mxu0
    %2317 = vdwg.mxu0
    %2318 = vmatprep.subr.mxu0 0.0
    %v2319 = vand.u32 %v1395, 4294901760
    %v2320 = vsub.f32 %v1395, %v2319
    %v2321 = vand.u32 %v2320, 4294901760
    %2322 = vmatpush1.msra.mxu0 %v2321
    %2323 = vmatprep.subr.mxu0 0.0
    %v2324 = vand.u32 %v1396, 4294901760
    %v2325 = vsub.f32 %v1396, %v2324
    %v2326 = vand.u32 %v2325, 4294901760
    %2327 = vmatpush1.msra.mxu0 %v2326
    %2328 = vmatprep.subr.mxu0 0.0
    %v2329 = vand.u32 %v1397, 4294901760
    %v2330 = vsub.f32 %v1397, %v2329
    %v2331 = vand.u32 %v2330, 4294901760
    %2332 = vmatpush1.msra.mxu0 %v2331
    %2333 = vmatprep.subr.mxu0 0.0
    %v2334 = vand.u32 %v1398, 4294901760
    %v2335 = vsub.f32 %v1398, %v2334
    %v2336 = vand.u32 %v2335, 4294901760
    %2337 = vmatpush1.msra.mxu0 %v2336
    %2338 = vmatprep.subr.mxu0 0.0
    %v2339 = vand.u32 %v1399, 4294901760
    %v2340 = vsub.f32 %v1399, %v2339
    %v2341 = vand.u32 %v2340, 4294901760
    %2342 = vmatpush1.msra.mxu0 %v2341
    %2343 = vmatprep.subr.mxu0 0.0
    %v2344 = vand.u32 %v1400, 4294901760
    %v2345 = vsub.f32 %v1400, %v2344
    %v2346 = vand.u32 %v2345, 4294901760
    %2347 = vmatpush1.msra.mxu0 %v2346
    %2348 = vmatprep.subr.mxu0 0.0
    %v2349 = vand.u32 %v1401, 4294901760
    %v2350 = vsub.f32 %v1401, %v2349
    %v2351 = vand.u32 %v2350, 4294901760
    %2352 = vmatpush1.msra.mxu0 %v2351
    %2353 = vmatprep.subr.mxu0 0.0
    %v2354 = vand.u32 %v1402, 4294901760
    %v2355 = vsub.f32 %v1402, %v2354
    %v2356 = vand.u32 %v2355, 4294901760
    %2357 = vmatpush1.msra.mxu0 %v2356
    %2358 = vmatprep.subr.mxu0 0.0
    %v2359 = vand.u32 %v1403, 4294901760
    %v2360 = vsub.f32 %v1403, %v2359
    %v2361 = vand.u32 %v2360, 4294901760
    %2362 = vmatpush1.msra.mxu0 %v2361
    %2363 = vmatprep.subr.mxu0 0.0
    %v2364 = vand.u32 %v1404, 4294901760
    %v2365 = vsub.f32 %v1404, %v2364
    %v2366 = vand.u32 %v2365, 4294901760
    %2367 = vmatpush1.msra.mxu0 %v2366
    %2368 = vmatprep.subr.mxu0 0.0
    %v2369 = vand.u32 %v1405, 4294901760
    %v2370 = vsub.f32 %v1405, %v2369
    %v2371 = vand.u32 %v2370, 4294901760
    %2372 = vmatpush1.msra.mxu0 %v2371
    %2373 = vmatprep.subr.mxu0 0.0
    %v2374 = vand.u32 %v1406, 4294901760
    %v2375 = vsub.f32 %v1406, %v2374
    %v2376 = vand.u32 %v2375, 4294901760
    %2377 = vmatpush1.msra.mxu0 %v2376
    %2378 = vmatprep.subr.mxu0 0.0
    %v2379 = vand.u32 %v1407, 4294901760
    %v2380 = vsub.f32 %v1407, %v2379
    %v2381 = vand.u32 %v2380, 4294901760
    %2382 = vmatpush1.msra.mxu0 %v2381
    %2383 = vmatprep.subr.mxu0 0.0
    %v2384 = vand.u32 %v1408, 4294901760
    %v2385 = vsub.f32 %v1408, %v2384
    %v2386 = vand.u32 %v2385, 4294901760
    %2387 = vmatpush1.msra.mxu0 %v2386
    %2388 = vmatprep.subr.mxu0 0.0
    %v2389 = vand.u32 %v1409, 4294901760
    %v2390 = vsub.f32 %v1409, %v2389
    %v2391 = vand.u32 %v2390, 4294901760
    %2392 = vmatpush1.msra.mxu0 %v2391
    %2393 = vmatprep.subr.mxu0 0.0
    %v2394 = vand.u32 %v1410, 4294901760
    %v2395 = vsub.f32 %v1410, %v2394
    %v2396 = vand.u32 %v2395, 4294901760
    %2397 = vmatpush1.msra.mxu0 %v2396
    %2398 = vmatprep.subr.mxu0 0.0
    %2399 = vmatpush1.msra.mxu0 0.0
    %2400 = vmatprep.subr.mxu0 0.0
    %2401 = vmatpush1.msra.mxu0 0.0
    %2402 = vmatprep.subr.mxu0 0.0
    %2403 = vmatpush1.msra.mxu0 0.0
    %2404 = vmatprep.subr.mxu0 0.0
    %2405 = vmatpush1.msra.mxu0 0.0
    %2406 = vmatprep.subr.mxu0 0.0
    %2407 = vmatpush1.msra.mxu0 0.0
    %2408 = vmatprep.subr.mxu0 0.0
    %2409 = vmatpush1.msra.mxu0 0.0
    %2410 = vmatprep.subr.mxu0 0.0
    %2411 = vmatpush1.msra.mxu0 0.0
    %2412 = vmatprep.subr.mxu0 0.0
    %2413 = vmatpush1.msra.mxu0 0.0
    %2414 = vmatprep.subr.mxu0 0.0
    %2415 = vmatpush1.msra.mxu0 0.0
    %2416 = vmatprep.subr.mxu0 0.0
    %2417 = vmatpush1.msra.mxu0 0.0
    %2418 = vmatprep.subr.mxu0 0.0
    %2419 = vmatpush1.msra.mxu0 0.0
    %2420 = vmatprep.subr.mxu0 0.0
    %2421 = vmatpush1.msra.mxu0 0.0
    %2422 = vmatprep.subr.mxu0 0.0
    %2423 = vmatpush1.msra.mxu0 0.0
    %2424 = vmatprep.subr.mxu0 0.0
    %2425 = vmatpush1.msra.mxu0 0.0
    %2426 = vmatprep.subr.mxu0 0.0
    %2427 = vmatpush1.msra.mxu0 0.0
    %2428 = vmatprep.subr.mxu0 0.0
    %2429 = vmatpush1.msra.mxu0 0.0
    %2430 = vmatprep.mubr.f32.mxu0 0.0
    %v2431 = vand.u32 %v1379, 4294901760
    %2432 = vmatmul.mubr.f32.gmra.mrb[0].mxu0 %v2431
    %v2433 = vpop.f32.mrb[0].mxu0
    %v2434 = vadd.f32 %v2195, %v2433
    %v2435 = vpop.f32.mrb[0].mxu0
    %2436 = vmatprep.mubr.f32.mxu0 0.0
    %v2437 = vand.u32 %v1380, 4294901760
    %2438 = vmatmul.mubr.f32.gmra.mrb[0].mxu0 %v2437
    %v2439 = vpop.f32.mrb[0].mxu0
    %v2440 = vadd.f32 %v2203, %v2439
    %v2441 = vpop.f32.mrb[0].mxu0
    %2442 = vmatprep.mubr.f32.mxu0 0.0
    %v2443 = vand.u32 %v1381, 4294901760
    %2444 = vmatmul.mubr.f32.gmra.mrb[0].mxu0 %v2443
    %v2445 = vpop.f32.mrb[0].mxu0
    %v2446 = vadd.f32 %v2211, %v2445
    %v2447 = vpop.f32.mrb[0].mxu0
    %2448 = vmatprep.mubr.f32.mxu0 0.0
    %v2449 = vand.u32 %v1382, 4294901760
    %2450 = vmatmul.mubr.f32.gmra.mrb[0].mxu0 %v2449
    %v2451 = vpop.f32.mrb[0].mxu0
    %v2452 = vadd.f32 %v2219, %v2451
    %v2453 = vpop.f32.mrb[0].mxu0
    %2454 = vmatprep.mubr.f32.mxu0 0.0
    %v2455 = vand.u32 %v1383, 4294901760
    %2456 = vmatmul.mubr.f32.gmra.mrb[0].mxu0 %v2455
    %v2457 = vpop.f32.mrb[0].mxu0
    %v2458 = vadd.f32 %v2227, %v2457
    %v2459 = vpop.f32.mrb[0].mxu0
    %2460 = vmatprep.mubr.f32.mxu0 0.0
    %v2461 = vand.u32 %v1384, 4294901760
    %2462 = vmatmul.mubr.f32.gmra.mrb[0].mxu0 %v2461
    %v2463 = vpop.f32.mrb[0].mxu0
    %v2464 = vadd.f32 %v2235, %v2463
    %v2465 = vpop.f32.mrb[0].mxu0
    %2466 = vmatprep.mubr.f32.mxu0 0.0
    %v2467 = vand.u32 %v1385, 4294901760
    %2468 = vmatmul.mubr.f32.gmra.mrb[0].mxu0 %v2467
    %v2469 = vpop.f32.mrb[0].mxu0
    %v2470 = vadd.f32 %v2243, %v2469
    %v2471 = vpop.f32.mrb[0].mxu0
    %2472 = vmatprep.mubr.f32.mxu0 0.0
    %v2473 = vand.u32 %v1386, 4294901760
    %2474 = vmatmul.mubr.f32.gmra.mrb[0].mxu0 %v2473
    %v2475 = vpop.f32.mrb[0].mxu0
    %v2476 = vadd.f32 %v2251, %v2475
    %v2477 = vpop.f32.mrb[0].mxu0
    %2478 = vmatprep.mubr.f32.mxu0 0.0
    %v2479 = vand.u32 %v1387, 4294901760
    %2480 = vmatmul.mubr.f32.gmra.mrb[0].mxu0 %v2479
    %v2481 = vpop.f32.mrb[0].mxu0
    %v2482 = vadd.f32 %v2259, %v2481
    %v2483 = vpop.f32.mrb[0].mxu0
    %2484 = vmatprep.mubr.f32.mxu0 0.0
    %v2485 = vand.u32 %v1388, 4294901760
    %2486 = vmatmul.mubr.f32.gmra.mrb[0].mxu0 %v2485
    %v2487 = vpop.f32.mrb[0].mxu0
    %v2488 = vadd.f32 %v2267, %v2487
    %v2489 = vpop.f32.mrb[0].mxu0
    %2490 = vmatprep.mubr.f32.mxu0 0.0
    %v2491 = vand.u32 %v1389, 4294901760
    %2492 = vmatmul.mubr.f32.gmra.mrb[0].mxu0 %v2491
    %v2493 = vpop.f32.mrb[0].mxu0
    %v2494 = vadd.f32 %v2275, %v2493
    %v2495 = vpop.f32.mrb[0].mxu0
    %2496 = vmatprep.mubr.f32.mxu0 0.0
    %v2497 = vand.u32 %v1390, 4294901760
    %2498 = vmatmul.mubr.f32.gmra.mrb[0].mxu0 %v2497
    %v2499 = vpop.f32.mrb[0].mxu0
    %v2500 = vadd.f32 %v2283, %v2499
    %v2501 = vpop.f32.mrb[0].mxu0
    %2502 = vmatprep.mubr.f32.mxu0 0.0
    %v2503 = vand.u32 %v1391, 4294901760
    %2504 = vmatmul.mubr.f32.gmra.mrb[0].mxu0 %v2503
    %v2505 = vpop.f32.mrb[0].mxu0
    %v2506 = vadd.f32 %v2291, %v2505
    %v2507 = vpop.f32.mrb[0].mxu0
    %2508 = vmatprep.mubr.f32.mxu0 0.0
    %v2509 = vand.u32 %v1392, 4294901760
    %2510 = vmatmul.mubr.f32.gmra.mrb[0].mxu0 %v2509
    %v2511 = vpop.f32.mrb[0].mxu0
    %v2512 = vadd.f32 %v2299, %v2511
    %v2513 = vpop.f32.mrb[0].mxu0
    %2514 = vmatprep.mubr.f32.mxu0 0.0
    %v2515 = vand.u32 %v1393, 4294901760
    %2516 = vmatmul.mubr.f32.gmra.mrb[0].mxu0 %v2515
    %v2517 = vpop.f32.mrb[0].mxu0
    %v2518 = vadd.f32 %v2307, %v2517
    %v2519 = vpop.f32.mrb[0].mxu0
    %2520 = vmatprep.mubr.f32.mxu0 0.0
    %v2521 = vand.u32 %v1394, 4294901760
    %2522 = vmatmul.mubr.f32.gmra.mrb[0].mxu0 %v2521
    %v2523 = vpop.f32.mrb[0].mxu0
    %v2524 = vadd.f32 %v2315, %v2523
    %v2525 = vpop.f32.mrb[0].mxu0
    %2526 = vdwg.mxu0
    %2527 = vmatprep.subr.mxu0 0.0
    %v2528 = vand.u32 %v1395, 4294901760
    %2529 = vmatpush1.msra.mxu0 %v2528
    %2530 = vmatprep.subr.mxu0 0.0
    %v2531 = vand.u32 %v1396, 4294901760
    %2532 = vmatpush1.msra.mxu0 %v2531
    %2533 = vmatprep.subr.mxu0 0.0
    %v2534 = vand.u32 %v1397, 4294901760
    %2535 = vmatpush1.msra.mxu0 %v2534
    %2536 = vmatprep.subr.mxu0 0.0
    %v2537 = vand.u32 %v1398, 4294901760
    %2538 = vmatpush1.msra.mxu0 %v2537
    %2539 = vmatprep.subr.mxu0 0.0
    %v2540 = vand.u32 %v1399, 4294901760
    %2541 = vmatpush1.msra.mxu0 %v2540
    %2542 = vmatprep.subr.mxu0 0.0
    %v2543 = vand.u32 %v1400, 4294901760
    %2544 = vmatpush1.msra.mxu0 %v2543
    %2545 = vmatprep.subr.mxu0 0.0
    %v2546 = vand.u32 %v1401, 4294901760
    %2547 = vmatpush1.msra.mxu0 %v2546
    %2548 = vmatprep.subr.mxu0 0.0
    %v2549 = vand.u32 %v1402, 4294901760
    %2550 = vmatpush1.msra.mxu0 %v2549
    %2551 = vmatprep.subr.mxu0 0.0
    %v2552 = vand.u32 %v1403, 4294901760
    %2553 = vmatpush1.msra.mxu0 %v2552
    %2554 = vmatprep.subr.mxu0 0.0
    %v2555 = vand.u32 %v1404, 4294901760
    %2556 = vmatpush1.msra.mxu0 %v2555
    %2557 = vmatprep.subr.mxu0 0.0
    %v2558 = vand.u32 %v1405, 4294901760
    %2559 = vmatpush1.msra.mxu0 %v2558
    %2560 = vmatprep.subr.mxu0 0.0
    %v2561 = vand.u32 %v1406, 4294901760
    %2562 = vmatpush1.msra.mxu0 %v2561
    %2563 = vmatprep.subr.mxu0 0.0
    %v2564 = vand.u32 %v1407, 4294901760
    %2565 = vmatpush1.msra.mxu0 %v2564
    %2566 = vmatprep.subr.mxu0 0.0
    %v2567 = vand.u32 %v1408, 4294901760
    %2568 = vmatpush1.msra.mxu0 %v2567
    %2569 = vmatprep.subr.mxu0 0.0
    %v2570 = vand.u32 %v1409, 4294901760
    %2571 = vmatpush1.msra.mxu0 %v2570
    %2572 = vmatprep.subr.mxu0 0.0
    %v2573 = vand.u32 %v1410, 4294901760
    %2574 = vmatpush1.msra.mxu0 %v2573
    %2575 = vmatprep.subr.mxu0 0.0
    %2576 = vmatpush1.msra.mxu0 0.0
    %2577 = vmatprep.subr.mxu0 0.0
    %2578 = vmatpush1.msra.mxu0 0.0
    %2579 = vmatprep.subr.mxu0 0.0
    %2580 = vmatpush1.msra.mxu0 0.0
    %2581 = vmatprep.subr.mxu0 0.0
    %2582 = vmatpush1.msra.mxu0 0.0
    %2583 = vmatprep.subr.mxu0 0.0
    %2584 = vmatpush1.msra.mxu0 0.0
    %2585 = vmatprep.subr.mxu0 0.0
    %2586 = vmatpush1.msra.mxu0 0.0
    %2587 = vmatprep.subr.mxu0 0.0
    %2588 = vmatpush1.msra.mxu0 0.0
    %2589 = vmatprep.subr.mxu0 0.0
    %2590 = vmatpush1.msra.mxu0 0.0
    %2591 = vmatprep.subr.mxu0 0.0
    %2592 = vmatpush1.msra.mxu0 0.0
    %2593 = vmatprep.subr.mxu0 0.0
    %2594 = vmatpush1.msra.mxu0 0.0
    %2595 = vmatprep.subr.mxu0 0.0
    %2596 = vmatpush1.msra.mxu0 0.0
    %2597 = vmatprep.subr.mxu0 0.0
    %2598 = vmatpush1.msra.mxu0 0.0
    %2599 = vmatprep.subr.mxu0 0.0
    %2600 = vmatpush1.msra.mxu0 0.0
    %2601 = vmatprep.subr.mxu0 0.0
    %2602 = vmatpush1.msra.mxu0 0.0
    %2603 = vmatprep.subr.mxu0 0.0
    %2604 = vmatpush1.msra.mxu0 0.0
    %2605 = vmatprep.subr.mxu0 0.0
    %2606 = vmatpush1.msra.mxu0 0.0
    %2607 = vmatprep.mubr.f32.mxu0 0.0
    %v2608 = vand.u32 %v1379, 4294901760
    %2609 = vmatmul.mubr.f32.gmra.mrb[0].mxu0 %v2608
    %v2610 = vpop.f32.mrb[0].mxu0
    %v2611 = vadd.f32 %v2434, %v2610
    %v2612 = vpop.f32.mrb[0].mxu0
    %2613 = vmatprep.mubr.f32.mxu0 0.0
    %v2614 = vand.u32 %v1380, 4294901760
    %2615 = vmatmul.mubr.f32.gmra.mrb[0].mxu0 %v2614
    %v2616 = vpop.f32.mrb[0].mxu0
    %v2617 = vadd.f32 %v2440, %v2616
    %v2618 = vpop.f32.mrb[0].mxu0
    %2619 = vmatprep.mubr.f32.mxu0 0.0
    %v2620 = vand.u32 %v1381, 4294901760
    %2621 = vmatmul.mubr.f32.gmra.mrb[0].mxu0 %v2620
    %v2622 = vpop.f32.mrb[0].mxu0
    %v2623 = vadd.f32 %v2446, %v2622
    %v2624 = vpop.f32.mrb[0].mxu0
    %2625 = vmatprep.mubr.f32.mxu0 0.0
    %v2626 = vand.u32 %v1382, 4294901760
    %2627 = vmatmul.mubr.f32.gmra.mrb[0].mxu0 %v2626
    %v2628 = vpop.f32.mrb[0].mxu0
    %v2629 = vadd.f32 %v2452, %v2628
    %v2630 = vpop.f32.mrb[0].mxu0
    %2631 = vmatprep.mubr.f32.mxu0 0.0
    %v2632 = vand.u32 %v1383, 4294901760
    %2633 = vmatmul.mubr.f32.gmra.mrb[0].mxu0 %v2632
    %v2634 = vpop.f32.mrb[0].mxu0
    %v2635 = vadd.f32 %v2458, %v2634
    %v2636 = vpop.f32.mrb[0].mxu0
    %2637 = vmatprep.mubr.f32.mxu0 0.0
    %v2638 = vand.u32 %v1384, 4294901760
    %2639 = vmatmul.mubr.f32.gmra.mrb[0].mxu0 %v2638
    %v2640 = vpop.f32.mrb[0].mxu0
    %v2641 = vadd.f32 %v2464, %v2640
    %v2642 = vpop.f32.mrb[0].mxu0
    %2643 = vmatprep.mubr.f32.mxu0 0.0
    %v2644 = vand.u32 %v1385, 4294901760
    %2645 = vmatmul.mubr.f32.gmra.mrb[0].mxu0 %v2644
    %v2646 = vpop.f32.mrb[0].mxu0
    %v2647 = vadd.f32 %v2470, %v2646
    %v2648 = vpop.f32.mrb[0].mxu0
    %2649 = vmatprep.mubr.f32.mxu0 0.0
    %v2650 = vand.u32 %v1386, 4294901760
    %2651 = vmatmul.mubr.f32.gmra.mrb[0].mxu0 %v2650
    %v2652 = vpop.f32.mrb[0].mxu0
    %v2653 = vadd.f32 %v2476, %v2652
    %v2654 = vpop.f32.mrb[0].mxu0
    %2655 = vmatprep.mubr.f32.mxu0 0.0
    %v2656 = vand.u32 %v1387, 4294901760
    %2657 = vmatmul.mubr.f32.gmra.mrb[0].mxu0 %v2656
    %v2658 = vpop.f32.mrb[0].mxu0
    %v2659 = vadd.f32 %v2482, %v2658
    %v2660 = vpop.f32.mrb[0].mxu0
    %2661 = vmatprep.mubr.f32.mxu0 0.0
    %v2662 = vand.u32 %v1388, 4294901760
    %2663 = vmatmul.mubr.f32.gmra.mrb[0].mxu0 %v2662
    %v2664 = vpop.f32.mrb[0].mxu0
    %v2665 = vadd.f32 %v2488, %v2664
    %v2666 = vpop.f32.mrb[0].mxu0
    %2667 = vmatprep.mubr.f32.mxu0 0.0
    %v2668 = vand.u32 %v1389, 4294901760
    %2669 = vmatmul.mubr.f32.gmra.mrb[0].mxu0 %v2668
    %v2670 = vpop.f32.mrb[0].mxu0
    %v2671 = vadd.f32 %v2494, %v2670
    %v2672 = vpop.f32.mrb[0].mxu0
    %2673 = vmatprep.mubr.f32.mxu0 0.0
    %v2674 = vand.u32 %v1390, 4294901760
    %2675 = vmatmul.mubr.f32.gmra.mrb[0].mxu0 %v2674
    %v2676 = vpop.f32.mrb[0].mxu0
    %v2677 = vadd.f32 %v2500, %v2676
    %v2678 = vpop.f32.mrb[0].mxu0
    %2679 = vmatprep.mubr.f32.mxu0 0.0
    %v2680 = vand.u32 %v1391, 4294901760
    %2681 = vmatmul.mubr.f32.gmra.mrb[0].mxu0 %v2680
    %v2682 = vpop.f32.mrb[0].mxu0
    %v2683 = vadd.f32 %v2506, %v2682
    %v2684 = vpop.f32.mrb[0].mxu0
    %2685 = vmatprep.mubr.f32.mxu0 0.0
    %v2686 = vand.u32 %v1392, 4294901760
    %2687 = vmatmul.mubr.f32.gmra.mrb[0].mxu0 %v2686
    %v2688 = vpop.f32.mrb[0].mxu0
    %v2689 = vadd.f32 %v2512, %v2688
    %v2690 = vpop.f32.mrb[0].mxu0
    %2691 = vmatprep.mubr.f32.mxu0 0.0
    %v2692 = vand.u32 %v1393, 4294901760
    %2693 = vmatmul.mubr.f32.gmra.mrb[0].mxu0 %v2692
    %v2694 = vpop.f32.mrb[0].mxu0
    %v2695 = vadd.f32 %v2518, %v2694
    %v2696 = vpop.f32.mrb[0].mxu0
    %2697 = vmatprep.mubr.f32.mxu0 0.0
    %v2698 = vand.u32 %v1394, 4294901760
    %2699 = vmatmul.mubr.f32.gmra.mrb[0].mxu0 %v2698
    %v2700 = vpop.f32.mrb[0].mxu0
    %v2701 = vadd.f32 %v2524, %v2700
    %v2702 = vpop.f32.mrb[0].mxu0
    %2703 = vdwg.mxu0
    %v2704 = vmax.f32 %v2611, 0.0
    %v2705 = vmax.f32 %v2617, 0.0
    %v2706 = vmax.f32 %v2623, 0.0
    %v2707 = vmax.f32 %v2629, 0.0
    %v2708 = vmax.f32 %v2635, 0.0
    %v2709 = vmax.f32 %v2641, 0.0
    %v2710 = vmax.f32 %v2647, 0.0
    %v2711 = vmax.f32 %v2653, 0.0
    %v2712 = vmax.f32 %v2659, 0.0
    %v2713 = vmax.f32 %v2665, 0.0
    %v2714 = vmax.f32 %v2671, 0.0
    %v2715 = vmax.f32 %v2677, 0.0
    %v2716 = vmax.f32 %v2683, 0.0
    %v2717 = vmax.f32 %v2689, 0.0
    %v2718 = vmax.f32 %v2695, 0.0
    %v2719 = vmax.f32 %v2701, 0.0
    %v2720 = vld [vmem:[#allocation4] sm:$0xff]
    %v2721 = vld [vmem:[#allocation4 + $0x8] sm:$0xff]
    %v2722 = vld [vmem:[#allocation4 + $0x10] sm:$0xff]
    %v2723 = vld [vmem:[#allocation4 + $0x18] sm:$0xff]
    %v2724 = vld [vmem:[#allocation4 + $0x20] sm:$0xff]
    %v2725 = vld [vmem:[#allocation4 + $0x28] sm:$0xff]
    %v2726 = vld [vmem:[#allocation4 + $0x30] sm:$0xff]
    %v2727 = vld [vmem:[#allocation4 + $0x38] sm:$0xff]
    %v2728 = vld [vmem:[#allocation4 + $0x40] sm:$0xff]
    %v2729 = vld [vmem:[#allocation4 + $0x48] sm:$0xff]
    %v2730 = vld [vmem:[#allocation4 + $0x50] sm:$0xff]
    %v2731 = vld [vmem:[#allocation4 + $0x58] sm:$0xff]
    %v2732 = vld [vmem:[#allocation4 + $0x60] sm:$0xff]
    %v2733 = vld [vmem:[#allocation4 + $0x68] sm:$0xff]
    %v2734 = vld [vmem:[#allocation4 + $0x70] sm:$0xff]
    %v2735 = vld [vmem:[#allocation4 + $0x78] sm:$0xff]
    %v2736 = vld [vmem:[%s6] sm:$0x1]
    %v2738 = vlaneseq
    %v2739 = vshrl.u32 %v2738, 7
    %v2740 = vsub.s32 0, %v2739
    %v2741 = vrot.slane %v2736, %v2740
    %2743 = vmatprep.subr.mxu0 0.0
    %v2744 = vand.u32 %v2720, 4294901760
    %2745 = vmatpush1.msra.mxu0 %v2744
    %2746 = vmatprep.subr.mxu0 0.0
    %v2747 = vand.u32 %v2721, 4294901760
    %2748 = vmatpush1.msra.mxu0 %v2747
    %2749 = vmatprep.subr.mxu0 0.0
    %v2750 = vand.u32 %v2722, 4294901760
    %2751 = vmatpush1.msra.mxu0 %v2750
    %2752 = vmatprep.subr.mxu0 0.0
    %v2753 = vand.u32 %v2723, 4294901760
    %2754 = vmatpush1.msra.mxu0 %v2753
    %2755 = vmatprep.subr.mxu0 0.0
    %v2756 = vand.u32 %v2724, 4294901760
    %2757 = vmatpush1.msra.mxu0 %v2756
    %2758 = vmatprep.subr.mxu0 0.0
    %v2759 = vand.u32 %v2725, 4294901760
    %2760 = vmatpush1.msra.mxu0 %v2759
    %2761 = vmatprep.subr.mxu0 0.0
    %v2762 = vand.u32 %v2726, 4294901760
    %2763 = vmatpush1.msra.mxu0 %v2762
    %2764 = vmatprep.subr.mxu0 0.0
    %v2765 = vand.u32 %v2727, 4294901760
    %2766 = vmatpush1.msra.mxu0 %v2765
    %2767 = vmatprep.subr.mxu0 0.0
    %v2768 = vand.u32 %v2728, 4294901760
    %2769 = vmatpush1.msra.mxu0 %v2768
    %2770 = vmatprep.subr.mxu0 0.0
    %v2771 = vand.u32 %v2729, 4294901760
    %2772 = vmatpush1.msra.mxu0 %v2771
    %2773 = vmatprep.subr.mxu0 0.0
    %v2774 = vand.u32 %v2730, 4294901760
    %2775 = vmatpush1.msra.mxu0 %v2774
    %2776 = vmatprep.subr.mxu0 0.0
    %v2777 = vand.u32 %v2731, 4294901760
    %2778 = vmatpush1.msra.mxu0 %v2777
    %2779 = vmatprep.subr.mxu0 0.0
    %v2780 = vand.u32 %v2732, 4294901760
    %2781 = vmatpush1.msra.mxu0 %v2780
    %2782 = vmatprep.subr.mxu0 0.0
    %v2783 = vand.u32 %v2733, 4294901760
    %2784 = vmatpush1.msra.mxu0 %v2783
    %2785 = vmatprep.subr.mxu0 0.0
    %v2786 = vand.u32 %v2734, 4294901760
    %2787 = vmatpush1.msra.mxu0 %v2786
    %2788 = vmatprep.subr.mxu0 0.0
    %v2789 = vand.u32 %v2735, 4294901760
    %2790 = vmatpush1.msra.mxu0 %v2789
    %2791 = vmatprep.subr.mxu0 0.0
    %2792 = vmatpush1.msra.mxu0 0.0
    %2793 = vmatprep.subr.mxu0 0.0
    %2794 = vmatpush1.msra.mxu0 0.0
    %2795 = vmatprep.subr.mxu0 0.0
    %2796 = vmatpush1.msra.mxu0 0.0
    %2797 = vmatprep.subr.mxu0 0.0
    %2798 = vmatpush1.msra.mxu0 0.0
    %2799 = vmatprep.subr.mxu0 0.0
    %2800 = vmatpush1.msra.mxu0 0.0
    %2801 = vmatprep.subr.mxu0 0.0
    %2802 = vmatpush1.msra.mxu0 0.0
    %2803 = vmatprep.subr.mxu0 0.0
    %2804 = vmatpush1.msra.mxu0 0.0
    %2805 = vmatprep.subr.mxu0 0.0
    %2806 = vmatpush1.msra.mxu0 0.0
    %2807 = vmatprep.subr.mxu0 0.0
    %2808 = vmatpush1.msra.mxu0 0.0
    %2809 = vmatprep.subr.mxu0 0.0
    %2810 = vmatpush1.msra.mxu0 0.0
    %2811 = vmatprep.subr.mxu0 0.0
    %2812 = vmatpush1.msra.mxu0 0.0
    %2813 = vmatprep.subr.mxu0 0.0
    %2814 = vmatpush1.msra.mxu0 0.0
    %2815 = vmatprep.subr.mxu0 0.0
    %2816 = vmatpush1.msra.mxu0 0.0
    %2817 = vmatprep.subr.mxu0 0.0
    %2818 = vmatpush1.msra.mxu0 0.0
    %2819 = vmatprep.subr.mxu0 0.0
    %2820 = vmatpush1.msra.mxu0 0.0
    %2821 = vmatprep.subr.mxu0 0.0
    %2822 = vmatpush1.msra.mxu0 0.0
    %2823 = vmatprep.mubr.f32.mxu0 0.0
    %v2824 = vand.u32 %v2704, 4294901760
    %v2825 = vsub.f32 %v2704, %v2824
    %v2826 = vand.u32 %v2825, 4294901760
    %v2827 = vsub.f32 %v2825, %v2826
    %v2828 = vand.u32 %v2827, 4294901760
    %2829 = vmatmul.mubr.f32.gmra.mrb[0].mxu0 %v2828
    %v2830 = vpop.f32.mrb[0].mxu0
    %v2831 = vadd.f32 %v2741, %v2830
    %v2832 = vpop.f32.mrb[0].mxu0
    %2833 = vmatprep.mubr.f32.mxu0 0.0
    %v2834 = vand.u32 %v2705, 4294901760
    %v2835 = vsub.f32 %v2705, %v2834
    %v2836 = vand.u32 %v2835, 4294901760
    %v2837 = vsub.f32 %v2835, %v2836
    %v2838 = vand.u32 %v2837, 4294901760
    %2839 = vmatmul.mubr.f32.gmra.mrb[0].mxu0 %v2838
    %v2840 = vpop.f32.mrb[0].mxu0
    %v2841 = vadd.f32 %v2741, %v2840
    %v2842 = vpop.f32.mrb[0].mxu0
    %2843 = vmatprep.mubr.f32.mxu0 0.0
    %v2844 = vand.u32 %v2706, 4294901760
    %v2845 = vsub.f32 %v2706, %v2844
    %v2846 = vand.u32 %v2845, 4294901760
    %v2847 = vsub.f32 %v2845, %v2846
    %v2848 = vand.u32 %v2847, 4294901760
    %2849 = vmatmul.mubr.f32.gmra.mrb[0].mxu0 %v2848
    %v2850 = vpop.f32.mrb[0].mxu0
    %v2851 = vadd.f32 %v2741, %v2850
    %v2852 = vpop.f32.mrb[0].mxu0
    %2853 = vmatprep.mubr.f32.mxu0 0.0
    %v2854 = vand.u32 %v2707, 4294901760
    %v2855 = vsub.f32 %v2707, %v2854
    %v2856 = vand.u32 %v2855, 4294901760
    %v2857 = vsub.f32 %v2855, %v2856
    %v2858 = vand.u32 %v2857, 4294901760
    %2859 = vmatmul.mubr.f32.gmra.mrb[0].mxu0 %v2858
    %v2860 = vpop.f32.mrb[0].mxu0
    %v2861 = vadd.f32 %v2741, %v2860
    %v2862 = vpop.f32.mrb[0].mxu0
    %2863 = vmatprep.mubr.f32.mxu0 0.0
    %v2864 = vand.u32 %v2708, 4294901760
    %v2865 = vsub.f32 %v2708, %v2864
    %v2866 = vand.u32 %v2865, 4294901760
    %v2867 = vsub.f32 %v2865, %v2866
    %v2868 = vand.u32 %v2867, 4294901760
    %2869 = vmatmul.mubr.f32.gmra.mrb[0].mxu0 %v2868
    %v2870 = vpop.f32.mrb[0].mxu0
    %v2871 = vadd.f32 %v2741, %v2870
    %v2872 = vpop.f32.mrb[0].mxu0
    %2873 = vmatprep.mubr.f32.mxu0 0.0
    %v2874 = vand.u32 %v2709, 4294901760
    %v2875 = vsub.f32 %v2709, %v2874
    %v2876 = vand.u32 %v2875, 4294901760
    %v2877 = vsub.f32 %v2875, %v2876
    %v2878 = vand.u32 %v2877, 4294901760
    %2879 = vmatmul.mubr.f32.gmra.mrb[0].mxu0 %v2878
    %v2880 = vpop.f32.mrb[0].mxu0
    %v2881 = vadd.f32 %v2741, %v2880
    %v2882 = vpop.f32.mrb[0].mxu0
    %2883 = vmatprep.mubr.f32.mxu0 0.0
    %v2884 = vand.u32 %v2710, 4294901760
    %v2885 = vsub.f32 %v2710, %v2884
    %v2886 = vand.u32 %v2885, 4294901760
    %v2887 = vsub.f32 %v2885, %v2886
    %v2888 = vand.u32 %v2887, 4294901760
    %2889 = vmatmul.mubr.f32.gmra.mrb[0].mxu0 %v2888
    %v2890 = vpop.f32.mrb[0].mxu0
    %v2891 = vadd.f32 %v2741, %v2890
    %v2892 = vpop.f32.mrb[0].mxu0
    %2893 = vmatprep.mubr.f32.mxu0 0.0
    %v2894 = vand.u32 %v2711, 4294901760
    %v2895 = vsub.f32 %v2711, %v2894
    %v2896 = vand.u32 %v2895, 4294901760
    %v2897 = vsub.f32 %v2895, %v2896
    %v2898 = vand.u32 %v2897, 4294901760
    %2899 = vmatmul.mubr.f32.gmra.mrb[0].mxu0 %v2898
    %v2900 = vpop.f32.mrb[0].mxu0
    %v2901 = vadd.f32 %v2741, %v2900
    %v2902 = vpop.f32.mrb[0].mxu0
    %2903 = vmatprep.mubr.f32.mxu0 0.0
    %v2904 = vand.u32 %v2712, 4294901760
    %v2905 = vsub.f32 %v2712, %v2904
    %v2906 = vand.u32 %v2905, 4294901760
    %v2907 = vsub.f32 %v2905, %v2906
    %v2908 = vand.u32 %v2907, 4294901760
    %2909 = vmatmul.mubr.f32.gmra.mrb[0].mxu0 %v2908
    %v2910 = vpop.f32.mrb[0].mxu0
    %v2911 = vadd.f32 %v2741, %v2910
    %v2912 = vpop.f32.mrb[0].mxu0
    %2913 = vmatprep.mubr.f32.mxu0 0.0
    %v2914 = vand.u32 %v2713, 4294901760
    %v2915 = vsub.f32 %v2713, %v2914
    %v2916 = vand.u32 %v2915, 4294901760
    %v2917 = vsub.f32 %v2915, %v2916
    %v2918 = vand.u32 %v2917, 4294901760
    %2919 = vmatmul.mubr.f32.gmra.mrb[0].mxu0 %v2918
    %v2920 = vpop.f32.mrb[0].mxu0
    %v2921 = vadd.f32 %v2741, %v2920
    %v2922 = vpop.f32.mrb[0].mxu0
    %2923 = vmatprep.mubr.f32.mxu0 0.0
    %v2924 = vand.u32 %v2714, 4294901760
    %v2925 = vsub.f32 %v2714, %v2924
    %v2926 = vand.u32 %v2925, 4294901760
    %v2927 = vsub.f32 %v2925, %v2926
    %v2928 = vand.u32 %v2927, 4294901760
    %2929 = vmatmul.mubr.f32.gmra.mrb[0].mxu0 %v2928
    %v2930 = vpop.f32.mrb[0].mxu0
    %v2931 = vadd.f32 %v2741, %v2930
    %v2932 = vpop.f32.mrb[0].mxu0
    %2933 = vmatprep.mubr.f32.mxu0 0.0
    %v2934 = vand.u32 %v2715, 4294901760
    %v2935 = vsub.f32 %v2715, %v2934
    %v2936 = vand.u32 %v2935, 4294901760
    %v2937 = vsub.f32 %v2935, %v2936
    %v2938 = vand.u32 %v2937, 4294901760
    %2939 = vmatmul.mubr.f32.gmra.mrb[0].mxu0 %v2938
    %v2940 = vpop.f32.mrb[0].mxu0
    %v2941 = vadd.f32 %v2741, %v2940
    %v2942 = vpop.f32.mrb[0].mxu0
    %2943 = vmatprep.mubr.f32.mxu0 0.0
    %v2944 = vand.u32 %v2716, 4294901760
    %v2945 = vsub.f32 %v2716, %v2944
    %v2946 = vand.u32 %v2945, 4294901760
    %v2947 = vsub.f32 %v2945, %v2946
    %v2948 = vand.u32 %v2947, 4294901760
    %2949 = vmatmul.mubr.f32.gmra.mrb[0].mxu0 %v2948
    %v2950 = vpop.f32.mrb[0].mxu0
    %v2951 = vadd.f32 %v2741, %v2950
    %v2952 = vpop.f32.mrb[0].mxu0
    %2953 = vmatprep.mubr.f32.mxu0 0.0
    %v2954 = vand.u32 %v2717, 4294901760
    %v2955 = vsub.f32 %v2717, %v2954
    %v2956 = vand.u32 %v2955, 4294901760
    %v2957 = vsub.f32 %v2955, %v2956
    %v2958 = vand.u32 %v2957, 4294901760
    %2959 = vmatmul.mubr.f32.gmra.mrb[0].mxu0 %v2958
    %v2960 = vpop.f32.mrb[0].mxu0
    %v2961 = vadd.f32 %v2741, %v2960
    %v2962 = vpop.f32.mrb[0].mxu0
    %2963 = vmatprep.mubr.f32.mxu0 0.0
    %v2964 = vand.u32 %v2718, 4294901760
    %v2965 = vsub.f32 %v2718, %v2964
    %v2966 = vand.u32 %v2965, 4294901760
    %v2967 = vsub.f32 %v2965, %v2966
    %v2968 = vand.u32 %v2967, 4294901760
    %2969 = vmatmul.mubr.f32.gmra.mrb[0].mxu0 %v2968
    %v2970 = vpop.f32.mrb[0].mxu0
    %v2971 = vadd.f32 %v2741, %v2970
    %v2972 = vpop.f32.mrb[0].mxu0
    %2973 = vmatprep.mubr.f32.mxu0 0.0
    %v2974 = vand.u32 %v2719, 4294901760
    %v2975 = vsub.f32 %v2719, %v2974
    %v2976 = vand.u32 %v2975, 4294901760
    %v2977 = vsub.f32 %v2975, %v2976
    %v2978 = vand.u32 %v2977, 4294901760
    %2979 = vmatmul.mubr.f32.gmra.mrb[0].mxu0 %v2978
    %v2980 = vpop.f32.mrb[0].mxu0
    %v2981 = vadd.f32 %v2741, %v2980
    %v2982 = vpop.f32.mrb[0].mxu0
    %2983 = vdwg.mxu0
    %2984 = vmatprep.subr.mxu0 0.0
    %v2985 = vand.u32 %v2720, 4294901760
    %v2986 = vsub.f32 %v2720, %v2985
    %v2987 = vand.u32 %v2986, 4294901760
    %v2988 = vsub.f32 %v2986, %v2987
    %v2989 = vand.u32 %v2988, 4294901760
    %2990 = vmatpush1.msra.mxu0 %v2989
    %2991 = vmatprep.subr.mxu0 0.0
    %v2992 = vand.u32 %v2721, 4294901760
    %v2993 = vsub.f32 %v2721, %v2992
    %v2994 = vand.u32 %v2993, 4294901760
    %v2995 = vsub.f32 %v2993, %v2994
    %v2996 = vand.u32 %v2995, 4294901760
    %2997 = vmatpush1.msra.mxu0 %v2996
    %2998 = vmatprep.subr.mxu0 0.0
    %v2999 = vand.u32 %v2722, 4294901760
    %v3000 = vsub.f32 %v2722, %v2999
    %v3001 = vand.u32 %v3000, 4294901760
    %v3002 = vsub.f32 %v3000, %v3001
    %v3003 = vand.u32 %v3002, 4294901760
    %3004 = vmatpush1.msra.mxu0 %v3003
    %3005 = vmatprep.subr.mxu0 0.0
    %v3006 = vand.u32 %v2723, 4294901760
    %v3007 = vsub.f32 %v2723, %v3006
    %v3008 = vand.u32 %v3007, 4294901760
    %v3009 = vsub.f32 %v3007, %v3008
    %v3010 = vand.u32 %v3009, 4294901760
    %3011 = vmatpush1.msra.mxu0 %v3010
    %3012 = vmatprep.subr.mxu0 0.0
    %v3013 = vand.u32 %v2724, 4294901760
    %v3014 = vsub.f32 %v2724, %v3013
    %v3015 = vand.u32 %v3014, 4294901760
    %v3016 = vsub.f32 %v3014, %v3015
    %v3017 = vand.u32 %v3016, 4294901760
    %3018 = vmatpush1.msra.mxu0 %v3017
    %3019 = vmatprep.subr.mxu0 0.0
    %v3020 = vand.u32 %v2725, 4294901760
    %v3021 = vsub.f32 %v2725, %v3020
    %v3022 = vand.u32 %v3021, 4294901760
    %v3023 = vsub.f32 %v3021, %v3022
    %v3024 = vand.u32 %v3023, 4294901760
    %3025 = vmatpush1.msra.mxu0 %v3024
    %3026 = vmatprep.subr.mxu0 0.0
    %v3027 = vand.u32 %v2726, 4294901760
    %v3028 = vsub.f32 %v2726, %v3027
    %v3029 = vand.u32 %v3028, 4294901760
    %v3030 = vsub.f32 %v3028, %v3029
    %v3031 = vand.u32 %v3030, 4294901760
    %3032 = vmatpush1.msra.mxu0 %v3031
    %3033 = vmatprep.subr.mxu0 0.0
    %v3034 = vand.u32 %v2727, 4294901760
    %v3035 = vsub.f32 %v2727, %v3034
    %v3036 = vand.u32 %v3035, 4294901760
    %v3037 = vsub.f32 %v3035, %v3036
    %v3038 = vand.u32 %v3037, 4294901760
    %3039 = vmatpush1.msra.mxu0 %v3038
    %3040 = vmatprep.subr.mxu0 0.0
    %v3041 = vand.u32 %v2728, 4294901760
    %v3042 = vsub.f32 %v2728, %v3041
    %v3043 = vand.u32 %v3042, 4294901760
    %v3044 = vsub.f32 %v3042, %v3043
    %v3045 = vand.u32 %v3044, 4294901760
    %3046 = vmatpush1.msra.mxu0 %v3045
    %3047 = vmatprep.subr.mxu0 0.0
    %v3048 = vand.u32 %v2729, 4294901760
    %v3049 = vsub.f32 %v2729, %v3048
    %v3050 = vand.u32 %v3049, 4294901760
    %v3051 = vsub.f32 %v3049, %v3050
    %v3052 = vand.u32 %v3051, 4294901760
    %3053 = vmatpush1.msra.mxu0 %v3052
    %3054 = vmatprep.subr.mxu0 0.0
    %v3055 = vand.u32 %v2730, 4294901760
    %v3056 = vsub.f32 %v2730, %v3055
    %v3057 = vand.u32 %v3056, 4294901760
    %v3058 = vsub.f32 %v3056, %v3057
    %v3059 = vand.u32 %v3058, 4294901760
    %3060 = vmatpush1.msra.mxu0 %v3059
    %3061 = vmatprep.subr.mxu0 0.0
    %v3062 = vand.u32 %v2731, 4294901760
    %v3063 = vsub.f32 %v2731, %v3062
    %v3064 = vand.u32 %v3063, 4294901760
    %v3065 = vsub.f32 %v3063, %v3064
    %v3066 = vand.u32 %v3065, 4294901760
    %3067 = vmatpush1.msra.mxu0 %v3066
    %3068 = vmatprep.subr.mxu0 0.0
    %v3069 = vand.u32 %v2732, 4294901760
    %v3070 = vsub.f32 %v2732, %v3069
    %v3071 = vand.u32 %v3070, 4294901760
    %v3072 = vsub.f32 %v3070, %v3071
    %v3073 = vand.u32 %v3072, 4294901760
    %3074 = vmatpush1.msra.mxu0 %v3073
    %3075 = vmatprep.subr.mxu0 0.0
    %v3076 = vand.u32 %v2733, 4294901760
    %v3077 = vsub.f32 %v2733, %v3076
    %v3078 = vand.u32 %v3077, 4294901760
    %v3079 = vsub.f32 %v3077, %v3078
    %v3080 = vand.u32 %v3079, 4294901760
    %3081 = vmatpush1.msra.mxu0 %v3080
    %3082 = vmatprep.subr.mxu0 0.0
    %v3083 = vand.u32 %v2734, 4294901760
    %v3084 = vsub.f32 %v2734, %v3083
    %v3085 = vand.u32 %v3084, 4294901760
    %v3086 = vsub.f32 %v3084, %v3085
    %v3087 = vand.u32 %v3086, 4294901760
    %3088 = vmatpush1.msra.mxu0 %v3087
    %3089 = vmatprep.subr.mxu0 0.0
    %v3090 = vand.u32 %v2735, 4294901760
    %v3091 = vsub.f32 %v2735, %v3090
    %v3092 = vand.u32 %v3091, 4294901760
    %v3093 = vsub.f32 %v3091, %v3092
    %v3094 = vand.u32 %v3093, 4294901760
    %3095 = vmatpush1.msra.mxu0 %v3094
    %3096 = vmatprep.subr.mxu0 0.0
    %3097 = vmatpush1.msra.mxu0 0.0
    %3098 = vmatprep.subr.mxu0 0.0
    %3099 = vmatpush1.msra.mxu0 0.0
    %3100 = vmatprep.subr.mxu0 0.0
    %3101 = vmatpush1.msra.mxu0 0.0
    %3102 = vmatprep.subr.mxu0 0.0
    %3103 = vmatpush1.msra.mxu0 0.0
    %3104 = vmatprep.subr.mxu0 0.0
    %3105 = vmatpush1.msra.mxu0 0.0
    %3106 = vmatprep.subr.mxu0 0.0
    %3107 = vmatpush1.msra.mxu0 0.0
    %3108 = vmatprep.subr.mxu0 0.0
    %3109 = vmatpush1.msra.mxu0 0.0
    %3110 = vmatprep.subr.mxu0 0.0
    %3111 = vmatpush1.msra.mxu0 0.0
    %3112 = vmatprep.subr.mxu0 0.0
    %3113 = vmatpush1.msra.mxu0 0.0
    %3114 = vmatprep.subr.mxu0 0.0
    %3115 = vmatpush1.msra.mxu0 0.0
    %3116 = vmatprep.subr.mxu0 0.0
    %3117 = vmatpush1.msra.mxu0 0.0
    %3118 = vmatprep.subr.mxu0 0.0
    %3119 = vmatpush1.msra.mxu0 0.0
    %3120 = vmatprep.subr.mxu0 0.0
    %3121 = vmatpush1.msra.mxu0 0.0
    %3122 = vmatprep.subr.mxu0 0.0
    %3123 = vmatpush1.msra.mxu0 0.0
    %3124 = vmatprep.subr.mxu0 0.0
    %3125 = vmatpush1.msra.mxu0 0.0
    %3126 = vmatprep.subr.mxu0 0.0
    %3127 = vmatpush1.msra.mxu0 0.0
    %3128 = vmatprep.mubr.f32.mxu0 0.0
    %v3129 = vand.u32 %v2704, 4294901760
    %3130 = vmatmul.mubr.f32.gmra.mrb[0].mxu0 %v3129
    %v3131 = vpop.f32.mrb[0].mxu0
    %v3132 = vadd.f32 %v2831, %v3131
    %v3133 = vpop.f32.mrb[0].mxu0
    %3134 = vmatprep.mubr.f32.mxu0 0.0
    %v3135 = vand.u32 %v2705, 4294901760
    %3136 = vmatmul.mubr.f32.gmra.mrb[0].mxu0 %v3135
    %v3137 = vpop.f32.mrb[0].mxu0
    %v3138 = vadd.f32 %v2841, %v3137
    %v3139 = vpop.f32.mrb[0].mxu0
    %3140 = vmatprep.mubr.f32.mxu0 0.0
    %v3141 = vand.u32 %v2706, 4294901760
    %3142 = vmatmul.mubr.f32.gmra.mrb[0].mxu0 %v3141
    %v3143 = vpop.f32.mrb[0].mxu0
    %v3144 = vadd.f32 %v2851, %v3143
    %v3145 = vpop.f32.mrb[0].mxu0
    %3146 = vmatprep.mubr.f32.mxu0 0.0
    %v3147 = vand.u32 %v2707, 4294901760
    %3148 = vmatmul.mubr.f32.gmra.mrb[0].mxu0 %v3147
    %v3149 = vpop.f32.mrb[0].mxu0
    %v3150 = vadd.f32 %v2861, %v3149
    %v3151 = vpop.f32.mrb[0].mxu0
    %3152 = vmatprep.mubr.f32.mxu0 0.0
    %v3153 = vand.u32 %v2708, 4294901760
    %3154 = vmatmul.mubr.f32.gmra.mrb[0].mxu0 %v3153
    %v3155 = vpop.f32.mrb[0].mxu0
    %v3156 = vadd.f32 %v2871, %v3155
    %v3157 = vpop.f32.mrb[0].mxu0
    %3158 = vmatprep.mubr.f32.mxu0 0.0
    %v3159 = vand.u32 %v2709, 4294901760
    %3160 = vmatmul.mubr.f32.gmra.mrb[0].mxu0 %v3159
    %v3161 = vpop.f32.mrb[0].mxu0
    %v3162 = vadd.f32 %v2881, %v3161
    %v3163 = vpop.f32.mrb[0].mxu0
    %3164 = vmatprep.mubr.f32.mxu0 0.0
    %v3165 = vand.u32 %v2710, 4294901760
    %3166 = vmatmul.mubr.f32.gmra.mrb[0].mxu0 %v3165
    %v3167 = vpop.f32.mrb[0].mxu0
    %v3168 = vadd.f32 %v2891, %v3167
    %v3169 = vpop.f32.mrb[0].mxu0
    %3170 = vmatprep.mubr.f32.mxu0 0.0
    %v3171 = vand.u32 %v2711, 4294901760
    %3172 = vmatmul.mubr.f32.gmra.mrb[0].mxu0 %v3171
    %v3173 = vpop.f32.mrb[0].mxu0
    %v3174 = vadd.f32 %v2901, %v3173
    %v3175 = vpop.f32.mrb[0].mxu0
    %3176 = vmatprep.mubr.f32.mxu0 0.0
    %v3177 = vand.u32 %v2712, 4294901760
    %3178 = vmatmul.mubr.f32.gmra.mrb[0].mxu0 %v3177
    %v3179 = vpop.f32.mrb[0].mxu0
    %v3180 = vadd.f32 %v2911, %v3179
    %v3181 = vpop.f32.mrb[0].mxu0
    %3182 = vmatprep.mubr.f32.mxu0 0.0
    %v3183 = vand.u32 %v2713, 4294901760
    %3184 = vmatmul.mubr.f32.gmra.mrb[0].mxu0 %v3183
    %v3185 = vpop.f32.mrb[0].mxu0
    %v3186 = vadd.f32 %v2921, %v3185
    %v3187 = vpop.f32.mrb[0].mxu0
    %3188 = vmatprep.mubr.f32.mxu0 0.0
    %v3189 = vand.u32 %v2714, 4294901760
    %3190 = vmatmul.mubr.f32.gmra.mrb[0].mxu0 %v3189
    %v3191 = vpop.f32.mrb[0].mxu0
    %v3192 = vadd.f32 %v2931, %v3191
    %v3193 = vpop.f32.mrb[0].mxu0
    %3194 = vmatprep.mubr.f32.mxu0 0.0
    %v3195 = vand.u32 %v2715, 4294901760
    %3196 = vmatmul.mubr.f32.gmra.mrb[0].mxu0 %v3195
    %v3197 = vpop.f32.mrb[0].mxu0
    %v3198 = vadd.f32 %v2941, %v3197
    %v3199 = vpop.f32.mrb[0].mxu0
    %3200 = vmatprep.mubr.f32.mxu0 0.0
    %v3201 = vand.u32 %v2716, 4294901760
    %3202 = vmatmul.mubr.f32.gmra.mrb[0].mxu0 %v3201
    %v3203 = vpop.f32.mrb[0].mxu0
    %v3204 = vadd.f32 %v2951, %v3203
    %v3205 = vpop.f32.mrb[0].mxu0
    %3206 = vmatprep.mubr.f32.mxu0 0.0
    %v3207 = vand.u32 %v2717, 4294901760
    %3208 = vmatmul.mubr.f32.gmra.mrb[0].mxu0 %v3207
    %v3209 = vpop.f32.mrb[0].mxu0
    %v3210 = vadd.f32 %v2961, %v3209
    %v3211 = vpop.f32.mrb[0].mxu0
    %3212 = vmatprep.mubr.f32.mxu0 0.0
    %v3213 = vand.u32 %v2718, 4294901760
    %3214 = vmatmul.mubr.f32.gmra.mrb[0].mxu0 %v3213
    %v3215 = vpop.f32.mrb[0].mxu0
    %v3216 = vadd.f32 %v2971, %v3215
    %v3217 = vpop.f32.mrb[0].mxu0
    %3218 = vmatprep.mubr.f32.mxu0 0.0
    %v3219 = vand.u32 %v2719, 4294901760
    %3220 = vmatmul.mubr.f32.gmra.mrb[0].mxu0 %v3219
    %v3221 = vpop.f32.mrb[0].mxu0
    %v3222 = vadd.f32 %v2981, %v3221
    %v3223 = vpop.f32.mrb[0].mxu0
    %3224 = vdwg.mxu0
    %3225 = vmatprep.subr.mxu0 0.0
    %v3226 = vand.u32 %v2720, 4294901760
    %v3227 = vsub.f32 %v2720, %v3226
    %3228 = vmatpush1.msra.mxu0 %v3227
    %3229 = vmatprep.subr.mxu0 0.0
    %v3230 = vand.u32 %v2721, 4294901760
    %v3231 = vsub.f32 %v2721, %v3230
    %3232 = vmatpush1.msra.mxu0 %v3231
    %3233 = vmatprep.subr.mxu0 0.0
    %v3234 = vand.u32 %v2722, 4294901760
    %v3235 = vsub.f32 %v2722, %v3234
    %3236 = vmatpush1.msra.mxu0 %v3235
    %3237 = vmatprep.subr.mxu0 0.0
    %v3238 = vand.u32 %v2723, 4294901760
    %v3239 = vsub.f32 %v2723, %v3238
    %3240 = vmatpush1.msra.mxu0 %v3239
    %3241 = vmatprep.subr.mxu0 0.0
    %v3242 = vand.u32 %v2724, 4294901760
    %v3243 = vsub.f32 %v2724, %v3242
    %3244 = vmatpush1.msra.mxu0 %v3243
    %3245 = vmatprep.subr.mxu0 0.0
    %v3246 = vand.u32 %v2725, 4294901760
    %v3247 = vsub.f32 %v2725, %v3246
    %3248 = vmatpush1.msra.mxu0 %v3247
    %3249 = vmatprep.subr.mxu0 0.0
    %v3250 = vand.u32 %v2726, 4294901760
    %v3251 = vsub.f32 %v2726, %v3250
    %3252 = vmatpush1.msra.mxu0 %v3251
    %3253 = vmatprep.subr.mxu0 0.0
    %v3254 = vand.u32 %v2727, 4294901760
    %v3255 = vsub.f32 %v2727, %v3254
    %3256 = vmatpush1.msra.mxu0 %v3255
    %3257 = vmatprep.subr.mxu0 0.0
    %v3258 = vand.u32 %v2728, 4294901760
    %v3259 = vsub.f32 %v2728, %v3258
    %3260 = vmatpush1.msra.mxu0 %v3259
    %3261 = vmatprep.subr.mxu0 0.0
    %v3262 = vand.u32 %v2729, 4294901760
    %v3263 = vsub.f32 %v2729, %v3262
    %3264 = vmatpush1.msra.mxu0 %v3263
    %3265 = vmatprep.subr.mxu0 0.0
    %v3266 = vand.u32 %v2730, 4294901760
    %v3267 = vsub.f32 %v2730, %v3266
    %3268 = vmatpush1.msra.mxu0 %v3267
    %3269 = vmatprep.subr.mxu0 0.0
    %v3270 = vand.u32 %v2731, 4294901760
    %v3271 = vsub.f32 %v2731, %v3270
    %3272 = vmatpush1.msra.mxu0 %v3271
    %3273 = vmatprep.subr.mxu0 0.0
    %v3274 = vand.u32 %v2732, 4294901760
    %v3275 = vsub.f32 %v2732, %v3274
    %3276 = vmatpush1.msra.mxu0 %v3275
    %3277 = vmatprep.subr.mxu0 0.0
    %v3278 = vand.u32 %v2733, 4294901760
    %v3279 = vsub.f32 %v2733, %v3278
    %3280 = vmatpush1.msra.mxu0 %v3279
    %3281 = vmatprep.subr.mxu0 0.0
    %v3282 = vand.u32 %v2734, 4294901760
    %v3283 = vsub.f32 %v2734, %v3282
    %3284 = vmatpush1.msra.mxu0 %v3283
    %3285 = vmatprep.subr.mxu0 0.0
    %v3286 = vand.u32 %v2735, 4294901760
    %v3287 = vsub.f32 %v2735, %v3286
    %3288 = vmatpush1.msra.mxu0 %v3287
    %3289 = vmatprep.subr.mxu0 0.0
    %3290 = vmatpush1.msra.mxu0 0.0
    %3291 = vmatprep.subr.mxu0 0.0
    %3292 = vmatpush1.msra.mxu0 0.0
    %3293 = vmatprep.subr.mxu0 0.0
    %3294 = vmatpush1.msra.mxu0 0.0
    %3295 = vmatprep.subr.mxu0 0.0
    %3296 = vmatpush1.msra.mxu0 0.0
    %3297 = vmatprep.subr.mxu0 0.0
    %3298 = vmatpush1.msra.mxu0 0.0
    %3299 = vmatprep.subr.mxu0 0.0
    %3300 = vmatpush1.msra.mxu0 0.0
    %3301 = vmatprep.subr.mxu0 0.0
    %3302 = vmatpush1.msra.mxu0 0.0
    %3303 = vmatprep.subr.mxu0 0.0
    %3304 = vmatpush1.msra.mxu0 0.0
    %3305 = vmatprep.subr.mxu0 0.0
    %3306 = vmatpush1.msra.mxu0 0.0
    %3307 = vmatprep.subr.mxu0 0.0
    %3308 = vmatpush1.msra.mxu0 0.0
    %3309 = vmatprep.subr.mxu0 0.0
    %3310 = vmatpush1.msra.mxu0 0.0
    %3311 = vmatprep.subr.mxu0 0.0
    %3312 = vmatpush1.msra.mxu0 0.0
    %3313 = vmatprep.subr.mxu0 0.0
    %3314 = vmatpush1.msra.mxu0 0.0
    %3315 = vmatprep.subr.mxu0 0.0
    %3316 = vmatpush1.msra.mxu0 0.0
    %3317 = vmatprep.subr.mxu0 0.0
    %3318 = vmatpush1.msra.mxu0 0.0
    %3319 = vmatprep.subr.mxu0 0.0
    %3320 = vmatpush1.msra.mxu0 0.0
    %3321 = vmatprep.mubr.f32.mxu0 0.0
    %v3322 = vand.u32 %v2704, 4294901760
    %v3323 = vsub.f32 %v2704, %v3322
    %3324 = vmatmul.mubr.f32.gmra.mrb[0].mxu0 %v3323
    %v3325 = vpop.f32.mrb[0].mxu0
    %v3326 = vadd.f32 %v3132, %v3325
    %v3327 = vpop.f32.mrb[0].mxu0
    %3328 = vmatprep.mubr.f32.mxu0 0.0
    %v3329 = vand.u32 %v2705, 4294901760
    %v3330 = vsub.f32 %v2705, %v3329
    %3331 = vmatmul.mubr.f32.gmra.mrb[0].mxu0 %v3330
    %v3332 = vpop.f32.mrb[0].mxu0
    %v3333 = vadd.f32 %v3138, %v3332
    %v3334 = vpop.f32.mrb[0].mxu0
    %3335 = vmatprep.mubr.f32.mxu0 0.0
    %v3336 = vand.u32 %v2706, 4294901760
    %v3337 = vsub.f32 %v2706, %v3336
    %3338 = vmatmul.mubr.f32.gmra.mrb[0].mxu0 %v3337
    %v3339 = vpop.f32.mrb[0].mxu0
    %v3340 = vadd.f32 %v3144, %v3339
    %v3341 = vpop.f32.mrb[0].mxu0
    %3342 = vmatprep.mubr.f32.mxu0 0.0
    %v3343 = vand.u32 %v2707, 4294901760
    %v3344 = vsub.f32 %v2707, %v3343
    %3345 = vmatmul.mubr.f32.gmra.mrb[0].mxu0 %v3344
    %v3346 = vpop.f32.mrb[0].mxu0
    %v3347 = vadd.f32 %v3150, %v3346
    %v3348 = vpop.f32.mrb[0].mxu0
    %3349 = vmatprep.mubr.f32.mxu0 0.0
    %v3350 = vand.u32 %v2708, 4294901760
    %v3351 = vsub.f32 %v2708, %v3350
    %3352 = vmatmul.mubr.f32.gmra.mrb[0].mxu0 %v3351
    %v3353 = vpop.f32.mrb[0].mxu0
    %v3354 = vadd.f32 %v3156, %v3353
    %v3355 = vpop.f32.mrb[0].mxu0
    %3356 = vmatprep.mubr.f32.mxu0 0.0
    %v3357 = vand.u32 %v2709, 4294901760
    %v3358 = vsub.f32 %v2709, %v3357
    %3359 = vmatmul.mubr.f32.gmra.mrb[0].mxu0 %v3358
    %v3360 = vpop.f32.mrb[0].mxu0
    %v3361 = vadd.f32 %v3162, %v3360
    %v3362 = vpop.f32.mrb[0].mxu0
    %3363 = vmatprep.mubr.f32.mxu0 0.0
    %v3364 = vand.u32 %v2710, 4294901760
    %v3365 = vsub.f32 %v2710, %v3364
    %3366 = vmatmul.mubr.f32.gmra.mrb[0].mxu0 %v3365
    %v3367 = vpop.f32.mrb[0].mxu0
    %v3368 = vadd.f32 %v3168, %v3367
    %v3369 = vpop.f32.mrb[0].mxu0
    %3370 = vmatprep.mubr.f32.mxu0 0.0
    %v3371 = vand.u32 %v2711, 4294901760
    %v3372 = vsub.f32 %v2711, %v3371
    %3373 = vmatmul.mubr.f32.gmra.mrb[0].mxu0 %v3372
    %v3374 = vpop.f32.mrb[0].mxu0
    %v3375 = vadd.f32 %v3174, %v3374
    %v3376 = vpop.f32.mrb[0].mxu0
    %3377 = vmatprep.mubr.f32.mxu0 0.0
    %v3378 = vand.u32 %v2712, 4294901760
    %v3379 = vsub.f32 %v2712, %v3378
    %3380 = vmatmul.mubr.f32.gmra.mrb[0].mxu0 %v3379
    %v3381 = vpop.f32.mrb[0].mxu0
    %v3382 = vadd.f32 %v3180, %v3381
    %v3383 = vpop.f32.mrb[0].mxu0
    %3384 = vmatprep.mubr.f32.mxu0 0.0
    %v3385 = vand.u32 %v2713, 4294901760
    %v3386 = vsub.f32 %v2713, %v3385
    %3387 = vmatmul.mubr.f32.gmra.mrb[0].mxu0 %v3386
    %v3388 = vpop.f32.mrb[0].mxu0
    %v3389 = vadd.f32 %v3186, %v3388
    %v3390 = vpop.f32.mrb[0].mxu0
    %3391 = vmatprep.mubr.f32.mxu0 0.0
    %v3392 = vand.u32 %v2714, 4294901760
    %v3393 = vsub.f32 %v2714, %v3392
    %3394 = vmatmul.mubr.f32.gmra.mrb[0].mxu0 %v3393
    %v3395 = vpop.f32.mrb[0].mxu0
    %v3396 = vadd.f32 %v3192, %v3395
    %v3397 = vpop.f32.mrb[0].mxu0
    %3398 = vmatprep.mubr.f32.mxu0 0.0
    %v3399 = vand.u32 %v2715, 4294901760
    %v3400 = vsub.f32 %v2715, %v3399
    %3401 = vmatmul.mubr.f32.gmra.mrb[0].mxu0 %v3400
    %v3402 = vpop.f32.mrb[0].mxu0
    %v3403 = vadd.f32 %v3198, %v3402
    %v3404 = vpop.f32.mrb[0].mxu0
    %3405 = vmatprep.mubr.f32.mxu0 0.0
    %v3406 = vand.u32 %v2716, 4294901760
    %v3407 = vsub.f32 %v2716, %v3406
    %3408 = vmatmul.mubr.f32.gmra.mrb[0].mxu0 %v3407
    %v3409 = vpop.f32.mrb[0].mxu0
    %v3410 = vadd.f32 %v3204, %v3409
    %v3411 = vpop.f32.mrb[0].mxu0
    %3412 = vmatprep.mubr.f32.mxu0 0.0
    %v3413 = vand.u32 %v2717, 4294901760
    %v3414 = vsub.f32 %v2717, %v3413
    %3415 = vmatmul.mubr.f32.gmra.mrb[0].mxu0 %v3414
    %v3416 = vpop.f32.mrb[0].mxu0
    %v3417 = vadd.f32 %v3210, %v3416
    %v3418 = vpop.f32.mrb[0].mxu0
    %3419 = vmatprep.mubr.f32.mxu0 0.0
    %v3420 = vand.u32 %v2718, 4294901760
    %v3421 = vsub.f32 %v2718, %v3420
    %3422 = vmatmul.mubr.f32.gmra.mrb[0].mxu0 %v3421
    %v3423 = vpop.f32.mrb[0].mxu0
    %v3424 = vadd.f32 %v3216, %v3423
    %v3425 = vpop.f32.mrb[0].mxu0
    %3426 = vmatprep.mubr.f32.mxu0 0.0
    %v3427 = vand.u32 %v2719, 4294901760
    %v3428 = vsub.f32 %v2719, %v3427
    %3429 = vmatmul.mubr.f32.gmra.mrb[0].mxu0 %v3428
    %v3430 = vpop.f32.mrb[0].mxu0
    %v3431 = vadd.f32 %v3222, %v3430
    %v3432 = vpop.f32.mrb[0].mxu0
    %3433 = vdwg.mxu0
    %3434 = vmatprep.subr.mxu0 0.0
    %v3435 = vand.u32 %v2720, 4294901760
    %3436 = vmatpush1.msra.mxu0 %v3435
    %3437 = vmatprep.subr.mxu0 0.0
    %v3438 = vand.u32 %v2721, 4294901760
    %3439 = vmatpush1.msra.mxu0 %v3438
    %3440 = vmatprep.subr.mxu0 0.0
    %v3441 = vand.u32 %v2722, 4294901760
    %3442 = vmatpush1.msra.mxu0 %v3441
    %3443 = vmatprep.subr.mxu0 0.0
    %v3444 = vand.u32 %v2723, 4294901760
    %3445 = vmatpush1.msra.mxu0 %v3444
    %3446 = vmatprep.subr.mxu0 0.0
    %v3447 = vand.u32 %v2724, 4294901760
    %3448 = vmatpush1.msra.mxu0 %v3447
    %3449 = vmatprep.subr.mxu0 0.0
    %v3450 = vand.u32 %v2725, 4294901760
    %3451 = vmatpush1.msra.mxu0 %v3450
    %3452 = vmatprep.subr.mxu0 0.0
    %v3453 = vand.u32 %v2726, 4294901760
    %3454 = vmatpush1.msra.mxu0 %v3453
    %3455 = vmatprep.subr.mxu0 0.0
    %v3456 = vand.u32 %v2727, 4294901760
    %3457 = vmatpush1.msra.mxu0 %v3456
    %3458 = vmatprep.subr.mxu0 0.0
    %v3459 = vand.u32 %v2728, 4294901760
    %3460 = vmatpush1.msra.mxu0 %v3459
    %3461 = vmatprep.subr.mxu0 0.0
    %v3462 = vand.u32 %v2729, 4294901760
    %3463 = vmatpush1.msra.mxu0 %v3462
    %3464 = vmatprep.subr.mxu0 0.0
    %v3465 = vand.u32 %v2730, 4294901760
    %3466 = vmatpush1.msra.mxu0 %v3465
    %3467 = vmatprep.subr.mxu0 0.0
    %v3468 = vand.u32 %v2731, 4294901760
    %3469 = vmatpush1.msra.mxu0 %v3468
    %3470 = vmatprep.subr.mxu0 0.0
    %v3471 = vand.u32 %v2732, 4294901760
    %3472 = vmatpush1.msra.mxu0 %v3471
    %3473 = vmatprep.subr.mxu0 0.0
    %v3474 = vand.u32 %v2733, 4294901760
    %3475 = vmatpush1.msra.mxu0 %v3474
    %3476 = vmatprep.subr.mxu0 0.0
    %v3477 = vand.u32 %v2734, 4294901760
    %3478 = vmatpush1.msra.mxu0 %v3477
    %3479 = vmatprep.subr.mxu0 0.0
    %v3480 = vand.u32 %v2735, 4294901760
    %3481 = vmatpush1.msra.mxu0 %v3480
    %3482 = vmatprep.subr.mxu0 0.0
    %3483 = vmatpush1.msra.mxu0 0.0
    %3484 = vmatprep.subr.mxu0 0.0
    %3485 = vmatpush1.msra.mxu0 0.0
    %3486 = vmatprep.subr.mxu0 0.0
    %3487 = vmatpush1.msra.mxu0 0.0
    %3488 = vmatprep.subr.mxu0 0.0
    %3489 = vmatpush1.msra.mxu0 0.0
    %3490 = vmatprep.subr.mxu0 0.0
    %3491 = vmatpush1.msra.mxu0 0.0
    %3492 = vmatprep.subr.mxu0 0.0
    %3493 = vmatpush1.msra.mxu0 0.0
    %3494 = vmatprep.subr.mxu0 0.0
    %3495 = vmatpush1.msra.mxu0 0.0
    %3496 = vmatprep.subr.mxu0 0.0
    %3497 = vmatpush1.msra.mxu0 0.0
    %3498 = vmatprep.subr.mxu0 0.0
    %3499 = vmatpush1.msra.mxu0 0.0
    %3500 = vmatprep.subr.mxu0 0.0
    %3501 = vmatpush1.msra.mxu0 0.0
    %3502 = vmatprep.subr.mxu0 0.0
    %3503 = vmatpush1.msra.mxu0 0.0
    %3504 = vmatprep.subr.mxu0 0.0
    %3505 = vmatpush1.msra.mxu0 0.0
    %3506 = vmatprep.subr.mxu0 0.0
    %3507 = vmatpush1.msra.mxu0 0.0
    %3508 = vmatprep.subr.mxu0 0.0
    %3509 = vmatpush1.msra.mxu0 0.0
    %3510 = vmatprep.subr.mxu0 0.0
    %3511 = vmatpush1.msra.mxu0 0.0
    %3512 = vmatprep.subr.mxu0 0.0
    %3513 = vmatpush1.msra.mxu0 0.0
    %3514 = vmatprep.mubr.f32.mxu0 0.0
    %v3515 = vand.u32 %v2704, 4294901760
    %v3516 = vsub.f32 %v2704, %v3515
    %v3517 = vand.u32 %v3516, 4294901760
    %3518 = vmatmul.mubr.f32.gmra.mrb[0].mxu0 %v3517
    %v3519 = vpop.f32.mrb[0].mxu0
    %v3520 = vadd.f32 %v3326, %v3519
    %v3521 = vpop.f32.mrb[0].mxu0
    %3522 = vmatprep.mubr.f32.mxu0 0.0
    %v3523 = vand.u32 %v2705, 4294901760
    %v3524 = vsub.f32 %v2705, %v3523
    %v3525 = vand.u32 %v3524, 4294901760
    %3526 = vmatmul.mubr.f32.gmra.mrb[0].mxu0 %v3525
    %v3527 = vpop.f32.mrb[0].mxu0
    %v3528 = vadd.f32 %v3333, %v3527
    %v3529 = vpop.f32.mrb[0].mxu0
    %3530 = vmatprep.mubr.f32.mxu0 0.0
    %v3531 = vand.u32 %v2706, 4294901760
    %v3532 = vsub.f32 %v2706, %v3531
    %v3533 = vand.u32 %v3532, 4294901760
    %3534 = vmatmul.mubr.f32.gmra.mrb[0].mxu0 %v3533
    %v3535 = vpop.f32.mrb[0].mxu0
    %v3536 = vadd.f32 %v3340, %v3535
    %v3537 = vpop.f32.mrb[0].mxu0
    %3538 = vmatprep.mubr.f32.mxu0 0.0
    %v3539 = vand.u32 %v2707, 4294901760
    %v3540 = vsub.f32 %v2707, %v3539
    %v3541 = vand.u32 %v3540, 4294901760
    %3542 = vmatmul.mubr.f32.gmra.mrb[0].mxu0 %v3541
    %v3543 = vpop.f32.mrb[0].mxu0
    %v3544 = vadd.f32 %v3347, %v3543
    %v3545 = vpop.f32.mrb[0].mxu0
    %3546 = vmatprep.mubr.f32.mxu0 0.0
    %v3547 = vand.u32 %v2708, 4294901760
    %v3548 = vsub.f32 %v2708, %v3547
    %v3549 = vand.u32 %v3548, 4294901760
    %3550 = vmatmul.mubr.f32.gmra.mrb[0].mxu0 %v3549
    %v3551 = vpop.f32.mrb[0].mxu0
    %v3552 = vadd.f32 %v3354, %v3551
    %v3553 = vpop.f32.mrb[0].mxu0
    %3554 = vmatprep.mubr.f32.mxu0 0.0
    %v3555 = vand.u32 %v2709, 4294901760
    %v3556 = vsub.f32 %v2709, %v3555
    %v3557 = vand.u32 %v3556, 4294901760
    %3558 = vmatmul.mubr.f32.gmra.mrb[0].mxu0 %v3557
    %v3559 = vpop.f32.mrb[0].mxu0
    %v3560 = vadd.f32 %v3361, %v3559
    %v3561 = vpop.f32.mrb[0].mxu0
    %3562 = vmatprep.mubr.f32.mxu0 0.0
    %v3563 = vand.u32 %v2710, 4294901760
    %v3564 = vsub.f32 %v2710, %v3563
    %v3565 = vand.u32 %v3564, 4294901760
    %3566 = vmatmul.mubr.f32.gmra.mrb[0].mxu0 %v3565
    %v3567 = vpop.f32.mrb[0].mxu0
    %v3568 = vadd.f32 %v3368, %v3567
    %v3569 = vpop.f32.mrb[0].mxu0
    %3570 = vmatprep.mubr.f32.mxu0 0.0
    %v3571 = vand.u32 %v2711, 4294901760
    %v3572 = vsub.f32 %v2711, %v3571
    %v3573 = vand.u32 %v3572, 4294901760
    %3574 = vmatmul.mubr.f32.gmra.mrb[0].mxu0 %v3573
    %v3575 = vpop.f32.mrb[0].mxu0
    %v3576 = vadd.f32 %v3375, %v3575
    %v3577 = vpop.f32.mrb[0].mxu0
    %3578 = vmatprep.mubr.f32.mxu0 0.0
    %v3579 = vand.u32 %v2712, 4294901760
    %v3580 = vsub.f32 %v2712, %v3579
    %v3581 = vand.u32 %v3580, 4294901760
    %3582 = vmatmul.mubr.f32.gmra.mrb[0].mxu0 %v3581
    %v3583 = vpop.f32.mrb[0].mxu0
    %v3584 = vadd.f32 %v3382, %v3583
    %v3585 = vpop.f32.mrb[0].mxu0
    %3586 = vmatprep.mubr.f32.mxu0 0.0
    %v3587 = vand.u32 %v2713, 4294901760
    %v3588 = vsub.f32 %v2713, %v3587
    %v3589 = vand.u32 %v3588, 4294901760
    %3590 = vmatmul.mubr.f32.gmra.mrb[0].mxu0 %v3589
    %v3591 = vpop.f32.mrb[0].mxu0
    %v3592 = vadd.f32 %v3389, %v3591
    %v3593 = vpop.f32.mrb[0].mxu0
    %3594 = vmatprep.mubr.f32.mxu0 0.0
    %v3595 = vand.u32 %v2714, 4294901760
    %v3596 = vsub.f32 %v2714, %v3595
    %v3597 = vand.u32 %v3596, 4294901760
    %3598 = vmatmul.mubr.f32.gmra.mrb[0].mxu0 %v3597
    %v3599 = vpop.f32.mrb[0].mxu0
    %v3600 = vadd.f32 %v3396, %v3599
    %v3601 = vpop.f32.mrb[0].mxu0
    %3602 = vmatprep.mubr.f32.mxu0 0.0
    %v3603 = vand.u32 %v2715, 4294901760
    %v3604 = vsub.f32 %v2715, %v3603
    %v3605 = vand.u32 %v3604, 4294901760
    %3606 = vmatmul.mubr.f32.gmra.mrb[0].mxu0 %v3605
    %v3607 = vpop.f32.mrb[0].mxu0
    %v3608 = vadd.f32 %v3403, %v3607
    %v3609 = vpop.f32.mrb[0].mxu0
    %3610 = vmatprep.mubr.f32.mxu0 0.0
    %v3611 = vand.u32 %v2716, 4294901760
    %v3612 = vsub.f32 %v2716, %v3611
    %v3613 = vand.u32 %v3612, 4294901760
    %3614 = vmatmul.mubr.f32.gmra.mrb[0].mxu0 %v3613
    %v3615 = vpop.f32.mrb[0].mxu0
    %v3616 = vadd.f32 %v3410, %v3615
    %v3617 = vpop.f32.mrb[0].mxu0
    %3618 = vmatprep.mubr.f32.mxu0 0.0
    %v3619 = vand.u32 %v2717, 4294901760
    %v3620 = vsub.f32 %v2717, %v3619
    %v3621 = vand.u32 %v3620, 4294901760
    %3622 = vmatmul.mubr.f32.gmra.mrb[0].mxu0 %v3621
    %v3623 = vpop.f32.mrb[0].mxu0
    %v3624 = vadd.f32 %v3417, %v3623
    %v3625 = vpop.f32.mrb[0].mxu0
    %3626 = vmatprep.mubr.f32.mxu0 0.0
    %v3627 = vand.u32 %v2718, 4294901760
    %v3628 = vsub.f32 %v2718, %v3627
    %v3629 = vand.u32 %v3628, 4294901760
    %3630 = vmatmul.mubr.f32.gmra.mrb[0].mxu0 %v3629
    %v3631 = vpop.f32.mrb[0].mxu0
    %v3632 = vadd.f32 %v3424, %v3631
    %v3633 = vpop.f32.mrb[0].mxu0
    %3634 = vmatprep.mubr.f32.mxu0 0.0
    %v3635 = vand.u32 %v2719, 4294901760
    %v3636 = vsub.f32 %v2719, %v3635
    %v3637 = vand.u32 %v3636, 4294901760
    %3638 = vmatmul.mubr.f32.gmra.mrb[0].mxu0 %v3637
    %v3639 = vpop.f32.mrb[0].mxu0
    %v3640 = vadd.f32 %v3431, %v3639
    %v3641 = vpop.f32.mrb[0].mxu0
    %3642 = vdwg.mxu0
    %3643 = vmatprep.subr.mxu0 0.0
    %v3644 = vand.u32 %v2720, 4294901760
    %v3645 = vsub.f32 %v2720, %v3644
    %v3646 = vand.u32 %v3645, 4294901760
    %3647 = vmatpush1.msra.mxu0 %v3646
    %3648 = vmatprep.subr.mxu0 0.0
    %v3649 = vand.u32 %v2721, 4294901760
    %v3650 = vsub.f32 %v2721, %v3649
    %v3651 = vand.u32 %v3650, 4294901760
    %3652 = vmatpush1.msra.mxu0 %v3651
    %3653 = vmatprep.subr.mxu0 0.0
    %v3654 = vand.u32 %v2722, 4294901760
    %v3655 = vsub.f32 %v2722, %v3654
    %v3656 = vand.u32 %v3655, 4294901760
    %3657 = vmatpush1.msra.mxu0 %v3656
    %3658 = vmatprep.subr.mxu0 0.0
    %v3659 = vand.u32 %v2723, 4294901760
    %v3660 = vsub.f32 %v2723, %v3659
    %v3661 = vand.u32 %v3660, 4294901760
    %3662 = vmatpush1.msra.mxu0 %v3661
    %3663 = vmatprep.subr.mxu0 0.0
    %v3664 = vand.u32 %v2724, 4294901760
    %v3665 = vsub.f32 %v2724, %v3664
    %v3666 = vand.u32 %v3665, 4294901760
    %3667 = vmatpush1.msra.mxu0 %v3666
    %3668 = vmatprep.subr.mxu0 0.0
    %v3669 = vand.u32 %v2725, 4294901760
    %v3670 = vsub.f32 %v2725, %v3669
    %v3671 = vand.u32 %v3670, 4294901760
    %3672 = vmatpush1.msra.mxu0 %v3671
    %3673 = vmatprep.subr.mxu0 0.0
    %v3674 = vand.u32 %v2726, 4294901760
    %v3675 = vsub.f32 %v2726, %v3674
    %v3676 = vand.u32 %v3675, 4294901760
    %3677 = vmatpush1.msra.mxu0 %v3676
    %3678 = vmatprep.subr.mxu0 0.0
    %v3679 = vand.u32 %v2727, 4294901760
    %v3680 = vsub.f32 %v2727, %v3679
    %v3681 = vand.u32 %v3680, 4294901760
    %3682 = vmatpush1.msra.mxu0 %v3681
    %3683 = vmatprep.subr.mxu0 0.0
    %v3684 = vand.u32 %v2728, 4294901760
    %v3685 = vsub.f32 %v2728, %v3684
    %v3686 = vand.u32 %v3685, 4294901760
    %3687 = vmatpush1.msra.mxu0 %v3686
    %3688 = vmatprep.subr.mxu0 0.0
    %v3689 = vand.u32 %v2729, 4294901760
    %v3690 = vsub.f32 %v2729, %v3689
    %v3691 = vand.u32 %v3690, 4294901760
    %3692 = vmatpush1.msra.mxu0 %v3691
    %3693 = vmatprep.subr.mxu0 0.0
    %v3694 = vand.u32 %v2730, 4294901760
    %v3695 = vsub.f32 %v2730, %v3694
    %v3696 = vand.u32 %v3695, 4294901760
    %3697 = vmatpush1.msra.mxu0 %v3696
    %3698 = vmatprep.subr.mxu0 0.0
    %v3699 = vand.u32 %v2731, 4294901760
    %v3700 = vsub.f32 %v2731, %v3699
    %v3701 = vand.u32 %v3700, 4294901760
    %3702 = vmatpush1.msra.mxu0 %v3701
    %3703 = vmatprep.subr.mxu0 0.0
    %v3704 = vand.u32 %v2732, 4294901760
    %v3705 = vsub.f32 %v2732, %v3704
    %v3706 = vand.u32 %v3705, 4294901760
    %3707 = vmatpush1.msra.mxu0 %v3706
    %3708 = vmatprep.subr.mxu0 0.0
    %v3709 = vand.u32 %v2733, 4294901760
    %v3710 = vsub.f32 %v2733, %v3709
    %v3711 = vand.u32 %v3710, 4294901760
    %3712 = vmatpush1.msra.mxu0 %v3711
    %3713 = vmatprep.subr.mxu0 0.0
    %v3714 = vand.u32 %v2734, 4294901760
    %v3715 = vsub.f32 %v2734, %v3714
    %v3716 = vand.u32 %v3715, 4294901760
    %3717 = vmatpush1.msra.mxu0 %v3716
    %3718 = vmatprep.subr.mxu0 0.0
    %v3719 = vand.u32 %v2735, 4294901760
    %v3720 = vsub.f32 %v2735, %v3719
    %v3721 = vand.u32 %v3720, 4294901760
    %3722 = vmatpush1.msra.mxu0 %v3721
    %3723 = vmatprep.subr.mxu0 0.0
    %3724 = vmatpush1.msra.mxu0 0.0
    %3725 = vmatprep.subr.mxu0 0.0
    %3726 = vmatpush1.msra.mxu0 0.0
    %3727 = vmatprep.subr.mxu0 0.0
    %3728 = vmatpush1.msra.mxu0 0.0
    %3729 = vmatprep.subr.mxu0 0.0
    %3730 = vmatpush1.msra.mxu0 0.0
    %3731 = vmatprep.subr.mxu0 0.0
    %3732 = vmatpush1.msra.mxu0 0.0
    %3733 = vmatprep.subr.mxu0 0.0
    %3734 = vmatpush1.msra.mxu0 0.0
    %3735 = vmatprep.subr.mxu0 0.0
    %3736 = vmatpush1.msra.mxu0 0.0
    %3737 = vmatprep.subr.mxu0 0.0
    %3738 = vmatpush1.msra.mxu0 0.0
    %3739 = vmatprep.subr.mxu0 0.0
    %3740 = vmatpush1.msra.mxu0 0.0
    %3741 = vmatprep.subr.mxu0 0.0
    %3742 = vmatpush1.msra.mxu0 0.0
    %3743 = vmatprep.subr.mxu0 0.0
    %3744 = vmatpush1.msra.mxu0 0.0
    %3745 = vmatprep.subr.mxu0 0.0
    %3746 = vmatpush1.msra.mxu0 0.0
    %3747 = vmatprep.subr.mxu0 0.0
    %3748 = vmatpush1.msra.mxu0 0.0
    %3749 = vmatprep.subr.mxu0 0.0
    %3750 = vmatpush1.msra.mxu0 0.0
    %3751 = vmatprep.subr.mxu0 0.0
    %3752 = vmatpush1.msra.mxu0 0.0
    %3753 = vmatprep.subr.mxu0 0.0
    %3754 = vmatpush1.msra.mxu0 0.0
    %3755 = vmatprep.mubr.f32.mxu0 0.0
    %v3756 = vand.u32 %v2704, 4294901760
    %3757 = vmatmul.mubr.f32.gmra.mrb[0].mxu0 %v3756
    %v3758 = vpop.f32.mrb[0].mxu0
    %v3759 = vadd.f32 %v3520, %v3758
    %v3760 = vpop.f32.mrb[0].mxu0
    %3761 = vmatprep.mubr.f32.mxu0 0.0
    %v3762 = vand.u32 %v2705, 4294901760
    %3763 = vmatmul.mubr.f32.gmra.mrb[0].mxu0 %v3762
    %v3764 = vpop.f32.mrb[0].mxu0
    %v3765 = vadd.f32 %v3528, %v3764
    %v3766 = vpop.f32.mrb[0].mxu0
    %3767 = vmatprep.mubr.f32.mxu0 0.0
    %v3768 = vand.u32 %v2706, 4294901760
    %3769 = vmatmul.mubr.f32.gmra.mrb[0].mxu0 %v3768
    %v3770 = vpop.f32.mrb[0].mxu0
    %v3771 = vadd.f32 %v3536, %v3770
    %v3772 = vpop.f32.mrb[0].mxu0
    %3773 = vmatprep.mubr.f32.mxu0 0.0
    %v3774 = vand.u32 %v2707, 4294901760
    %3775 = vmatmul.mubr.f32.gmra.mrb[0].mxu0 %v3774
    %v3776 = vpop.f32.mrb[0].mxu0
    %v3777 = vadd.f32 %v3544, %v3776
    %v3778 = vpop.f32.mrb[0].mxu0
    %3779 = vmatprep.mubr.f32.mxu0 0.0
    %v3780 = vand.u32 %v2708, 4294901760
    %3781 = vmatmul.mubr.f32.gmra.mrb[0].mxu0 %v3780
    %v3782 = vpop.f32.mrb[0].mxu0
    %v3783 = vadd.f32 %v3552, %v3782
    %v3784 = vpop.f32.mrb[0].mxu0
    %3785 = vmatprep.mubr.f32.mxu0 0.0
    %v3786 = vand.u32 %v2709, 4294901760
    %3787 = vmatmul.mubr.f32.gmra.mrb[0].mxu0 %v3786
    %v3788 = vpop.f32.mrb[0].mxu0
    %v3789 = vadd.f32 %v3560, %v3788
    %v3790 = vpop.f32.mrb[0].mxu0
    %3791 = vmatprep.mubr.f32.mxu0 0.0
    %v3792 = vand.u32 %v2710, 4294901760
    %3793 = vmatmul.mubr.f32.gmra.mrb[0].mxu0 %v3792
    %v3794 = vpop.f32.mrb[0].mxu0
    %v3795 = vadd.f32 %v3568, %v3794
    %v3796 = vpop.f32.mrb[0].mxu0
    %3797 = vmatprep.mubr.f32.mxu0 0.0
    %v3798 = vand.u32 %v2711, 4294901760
    %3799 = vmatmul.mubr.f32.gmra.mrb[0].mxu0 %v3798
    %v3800 = vpop.f32.mrb[0].mxu0
    %v3801 = vadd.f32 %v3576, %v3800
    %v3802 = vpop.f32.mrb[0].mxu0
    %3803 = vmatprep.mubr.f32.mxu0 0.0
    %v3804 = vand.u32 %v2712, 4294901760
    %3805 = vmatmul.mubr.f32.gmra.mrb[0].mxu0 %v3804
    %v3806 = vpop.f32.mrb[0].mxu0
    %v3807 = vadd.f32 %v3584, %v3806
    %v3808 = vpop.f32.mrb[0].mxu0
    %3809 = vmatprep.mubr.f32.mxu0 0.0
    %v3810 = vand.u32 %v2713, 4294901760
    %3811 = vmatmul.mubr.f32.gmra.mrb[0].mxu0 %v3810
    %v3812 = vpop.f32.mrb[0].mxu0
    %v3813 = vadd.f32 %v3592, %v3812
    %v3814 = vpop.f32.mrb[0].mxu0
    %3815 = vmatprep.mubr.f32.mxu0 0.0
    %v3816 = vand.u32 %v2714, 4294901760
    %3817 = vmatmul.mubr.f32.gmra.mrb[0].mxu0 %v3816
    %v3818 = vpop.f32.mrb[0].mxu0
    %v3819 = vadd.f32 %v3600, %v3818
    %v3820 = vpop.f32.mrb[0].mxu0
    %3821 = vmatprep.mubr.f32.mxu0 0.0
    %v3822 = vand.u32 %v2715, 4294901760
    %3823 = vmatmul.mubr.f32.gmra.mrb[0].mxu0 %v3822
    %v3824 = vpop.f32.mrb[0].mxu0
    %v3825 = vadd.f32 %v3608, %v3824
    %v3826 = vpop.f32.mrb[0].mxu0
    %3827 = vmatprep.mubr.f32.mxu0 0.0
    %v3828 = vand.u32 %v2716, 4294901760
    %3829 = vmatmul.mubr.f32.gmra.mrb[0].mxu0 %v3828
    %v3830 = vpop.f32.mrb[0].mxu0
    %v3831 = vadd.f32 %v3616, %v3830
    %v3832 = vpop.f32.mrb[0].mxu0
    %3833 = vmatprep.mubr.f32.mxu0 0.0
    %v3834 = vand.u32 %v2717, 4294901760
    %3835 = vmatmul.mubr.f32.gmra.mrb[0].mxu0 %v3834
    %v3836 = vpop.f32.mrb[0].mxu0
    %v3837 = vadd.f32 %v3624, %v3836
    %v3838 = vpop.f32.mrb[0].mxu0
    %3839 = vmatprep.mubr.f32.mxu0 0.0
    %v3840 = vand.u32 %v2718, 4294901760
    %3841 = vmatmul.mubr.f32.gmra.mrb[0].mxu0 %v3840
    %v3842 = vpop.f32.mrb[0].mxu0
    %v3843 = vadd.f32 %v3632, %v3842
    %v3844 = vpop.f32.mrb[0].mxu0
    %3845 = vmatprep.mubr.f32.mxu0 0.0
    %v3846 = vand.u32 %v2719, 4294901760
    %3847 = vmatmul.mubr.f32.gmra.mrb[0].mxu0 %v3846
    %v3848 = vpop.f32.mrb[0].mxu0
    %v3849 = vadd.f32 %v3640, %v3848
    %v3850 = vpop.f32.mrb[0].mxu0
    %3851 = vdwg.mxu0
    %3852 = vmatprep.subr.mxu0 0.0
    %v3853 = vand.u32 %v2720, 4294901760
    %3854 = vmatpush1.msra.mxu0 %v3853
    %3855 = vmatprep.subr.mxu0 0.0
    %v3856 = vand.u32 %v2721, 4294901760
    %3857 = vmatpush1.msra.mxu0 %v3856
    %3858 = vmatprep.subr.mxu0 0.0
    %v3859 = vand.u32 %v2722, 4294901760
    %3860 = vmatpush1.msra.mxu0 %v3859
    %3861 = vmatprep.subr.mxu0 0.0
    %v3862 = vand.u32 %v2723, 4294901760
    %3863 = vmatpush1.msra.mxu0 %v3862
    %3864 = vmatprep.subr.mxu0 0.0
    %v3865 = vand.u32 %v2724, 4294901760
    %3866 = vmatpush1.msra.mxu0 %v3865
    %3867 = vmatprep.subr.mxu0 0.0
    %v3868 = vand.u32 %v2725, 4294901760
    %3869 = vmatpush1.msra.mxu0 %v3868
    %3870 = vmatprep.subr.mxu0 0.0
    %v3871 = vand.u32 %v2726, 4294901760
    %3872 = vmatpush1.msra.mxu0 %v3871
    %3873 = vmatprep.subr.mxu0 0.0
    %v3874 = vand.u32 %v2727, 4294901760
    %3875 = vmatpush1.msra.mxu0 %v3874
    %3876 = vmatprep.subr.mxu0 0.0
    %v3877 = vand.u32 %v2728, 4294901760
    %3878 = vmatpush1.msra.mxu0 %v3877
    %3879 = vmatprep.subr.mxu0 0.0
    %v3880 = vand.u32 %v2729, 4294901760
    %3881 = vmatpush1.msra.mxu0 %v3880
    %3882 = vmatprep.subr.mxu0 0.0
    %v3883 = vand.u32 %v2730, 4294901760
    %3884 = vmatpush1.msra.mxu0 %v3883
    %3885 = vmatprep.subr.mxu0 0.0
    %v3886 = vand.u32 %v2731, 4294901760
    %3887 = vmatpush1.msra.mxu0 %v3886
    %3888 = vmatprep.subr.mxu0 0.0
    %v3889 = vand.u32 %v2732, 4294901760
    %3890 = vmatpush1.msra.mxu0 %v3889
    %3891 = vmatprep.subr.mxu0 0.0
    %v3892 = vand.u32 %v2733, 4294901760
    %3893 = vmatpush1.msra.mxu0 %v3892
    %3894 = vmatprep.subr.mxu0 0.0
    %v3895 = vand.u32 %v2734, 4294901760
    %3896 = vmatpush1.msra.mxu0 %v3895
    %3897 = vmatprep.subr.mxu0 0.0
    %v3898 = vand.u32 %v2735, 4294901760
    %3899 = vmatpush1.msra.mxu0 %v3898
    %3900 = vmatprep.subr.mxu0 0.0
    %3901 = vmatpush1.msra.mxu0 0.0
    %3902 = vmatprep.subr.mxu0 0.0
    %3903 = vmatpush1.msra.mxu0 0.0
    %3904 = vmatprep.subr.mxu0 0.0
    %3905 = vmatpush1.msra.mxu0 0.0
    %3906 = vmatprep.subr.mxu0 0.0
    %3907 = vmatpush1.msra.mxu0 0.0
    %3908 = vmatprep.subr.mxu0 0.0
    %3909 = vmatpush1.msra.mxu0 0.0
    %3910 = vmatprep.subr.mxu0 0.0
    %3911 = vmatpush1.msra.mxu0 0.0
    %3912 = vmatprep.subr.mxu0 0.0
    %3913 = vmatpush1.msra.mxu0 0.0
    %3914 = vmatprep.subr.mxu0 0.0
    %3915 = vmatpush1.msra.mxu0 0.0
    %3916 = vmatprep.subr.mxu0 0.0
    %3917 = vmatpush1.msra.mxu0 0.0
    %3918 = vmatprep.subr.mxu0 0.0
    %3919 = vmatpush1.msra.mxu0 0.0
    %3920 = vmatprep.subr.mxu0 0.0
    %3921 = vmatpush1.msra.mxu0 0.0
    %3922 = vmatprep.subr.mxu0 0.0
    %3923 = vmatpush1.msra.mxu0 0.0
    %3924 = vmatprep.subr.mxu0 0.0
    %3925 = vmatpush1.msra.mxu0 0.0
    %3926 = vmatprep.subr.mxu0 0.0
    %3927 = vmatpush1.msra.mxu0 0.0
    %3928 = vmatprep.subr.mxu0 0.0
    %3929 = vmatpush1.msra.mxu0 0.0
    %3930 = vmatprep.subr.mxu0 0.0
    %3931 = vmatpush1.msra.mxu0 0.0
    %3932 = vmatprep.mubr.f32.mxu0 0.0
    %v3933 = vand.u32 %v2704, 4294901760
    %3934 = vmatmul.mubr.f32.gmra.mrb[0].mxu0 %v3933
    %v3935 = vpop.f32.mrb[0].mxu0
    %v3936 = vadd.f32 %v3759, %v3935
    %v3937 = vpop.f32.mrb[0].mxu0
    %3938 = vmatprep.mubr.f32.mxu0 0.0
    %v3939 = vand.u32 %v2705, 4294901760
    %3940 = vmatmul.mubr.f32.gmra.mrb[0].mxu0 %v3939
    %v3941 = vpop.f32.mrb[0].mxu0
    %v3942 = vadd.f32 %v3765, %v3941
    %v3943 = vpop.f32.mrb[0].mxu0
    %3944 = vmatprep.mubr.f32.mxu0 0.0
    %v3945 = vand.u32 %v2706, 4294901760
    %3946 = vmatmul.mubr.f32.gmra.mrb[0].mxu0 %v3945
    %v3947 = vpop.f32.mrb[0].mxu0
    %v3948 = vadd.f32 %v3771, %v3947
    %v3949 = vpop.f32.mrb[0].mxu0
    %3950 = vmatprep.mubr.f32.mxu0 0.0
    %v3951 = vand.u32 %v2707, 4294901760
    %3952 = vmatmul.mubr.f32.gmra.mrb[0].mxu0 %v3951
    %v3953 = vpop.f32.mrb[0].mxu0
    %v3954 = vadd.f32 %v3777, %v3953
    %v3955 = vpop.f32.mrb[0].mxu0
    %3956 = vmatprep.mubr.f32.mxu0 0.0
    %v3957 = vand.u32 %v2708, 4294901760
    %3958 = vmatmul.mubr.f32.gmra.mrb[0].mxu0 %v3957
    %v3959 = vpop.f32.mrb[0].mxu0
    %v3960 = vadd.f32 %v3783, %v3959
    %v3961 = vpop.f32.mrb[0].mxu0
    %3962 = vmatprep.mubr.f32.mxu0 0.0
    %v3963 = vand.u32 %v2709, 4294901760
    %3964 = vmatmul.mubr.f32.gmra.mrb[0].mxu0 %v3963
    %v3965 = vpop.f32.mrb[0].mxu0
    %v3966 = vadd.f32 %v3789, %v3965
    %v3967 = vpop.f32.mrb[0].mxu0
    %3968 = vmatprep.mubr.f32.mxu0 0.0
    %v3969 = vand.u32 %v2710, 4294901760
    %3970 = vmatmul.mubr.f32.gmra.mrb[0].mxu0 %v3969
    %v3971 = vpop.f32.mrb[0].mxu0
    %v3972 = vadd.f32 %v3795, %v3971
    %v3973 = vpop.f32.mrb[0].mxu0
    %3974 = vmatprep.mubr.f32.mxu0 0.0
    %v3975 = vand.u32 %v2711, 4294901760
    %3976 = vmatmul.mubr.f32.gmra.mrb[0].mxu0 %v3975
    %v3977 = vpop.f32.mrb[0].mxu0
    %v3978 = vadd.f32 %v3801, %v3977
    %v3979 = vpop.f32.mrb[0].mxu0
    %3980 = vmatprep.mubr.f32.mxu0 0.0
    %v3981 = vand.u32 %v2712, 4294901760
    %3982 = vmatmul.mubr.f32.gmra.mrb[0].mxu0 %v3981
    %v3983 = vpop.f32.mrb[0].mxu0
    %v3984 = vadd.f32 %v3807, %v3983
    %v3985 = vpop.f32.mrb[0].mxu0
    %3986 = vmatprep.mubr.f32.mxu0 0.0
    %v3987 = vand.u32 %v2713, 4294901760
    %3988 = vmatmul.mubr.f32.gmra.mrb[0].mxu0 %v3987
    %v3989 = vpop.f32.mrb[0].mxu0
    %v3990 = vadd.f32 %v3813, %v3989
    %v3991 = vpop.f32.mrb[0].mxu0
    %3992 = vmatprep.mubr.f32.mxu0 0.0
    %v3993 = vand.u32 %v2714, 4294901760
    %3994 = vmatmul.mubr.f32.gmra.mrb[0].mxu0 %v3993
    %v3995 = vpop.f32.mrb[0].mxu0
    %v3996 = vadd.f32 %v3819, %v3995
    %v3997 = vpop.f32.mrb[0].mxu0
    %3998 = vmatprep.mubr.f32.mxu0 0.0
    %v3999 = vand.u32 %v2715, 4294901760
    %4000 = vmatmul.mubr.f32.gmra.mrb[0].mxu0 %v3999
    %v4001 = vpop.f32.mrb[0].mxu0
    %v4002 = vadd.f32 %v3825, %v4001
    %v4003 = vpop.f32.mrb[0].mxu0
    %4004 = vmatprep.mubr.f32.mxu0 0.0
    %v4005 = vand.u32 %v2716, 4294901760
    %4006 = vmatmul.mubr.f32.gmra.mrb[0].mxu0 %v4005
    %v4007 = vpop.f32.mrb[0].mxu0
    %v4008 = vadd.f32 %v3831, %v4007
    %v4009 = vpop.f32.mrb[0].mxu0
    %4010 = vmatprep.mubr.f32.mxu0 0.0
    %v4011 = vand.u32 %v2717, 4294901760
    %4012 = vmatmul.mubr.f32.gmra.mrb[0].mxu0 %v4011
    %v4013 = vpop.f32.mrb[0].mxu0
    %v4014 = vadd.f32 %v3837, %v4013
    %v4015 = vpop.f32.mrb[0].mxu0
    %4016 = vmatprep.mubr.f32.mxu0 0.0
    %v4017 = vand.u32 %v2718, 4294901760
    %4018 = vmatmul.mubr.f32.gmra.mrb[0].mxu0 %v4017
    %v4019 = vpop.f32.mrb[0].mxu0
    %v4020 = vadd.f32 %v3843, %v4019
    %v4021 = vpop.f32.mrb[0].mxu0
    %4022 = vmatprep.mubr.f32.mxu0 0.0
    %v4023 = vand.u32 %v2719, 4294901760
    %4024 = vmatmul.mubr.f32.gmra.mrb[0].mxu0 %v4023
    %v4025 = vpop.f32.mrb[0].mxu0
    %v4026 = vadd.f32 %v3849, %v4025
    %v4027 = vpop.f32.mrb[0].mxu0
    %4028 = vdwg.mxu0
    %4029 = vst [vmem:[%s7] sm:$0xff] %v3936
    %4030 = vst [vmem:[%s7 + $0x8] sm:$0xff] %v3942
    %4031 = vst [vmem:[%s7 + $0x10] sm:$0xff] %v3948
    %4032 = vst [vmem:[%s7 + $0x18] sm:$0xff] %v3954
    %4033 = vst [vmem:[%s7 + $0x20] sm:$0xff] %v3960
    %4034 = vst [vmem:[%s7 + $0x28] sm:$0xff] %v3966
    %4035 = vst [vmem:[%s7 + $0x30] sm:$0xff] %v3972
    %4036 = vst [vmem:[%s7 + $0x38] sm:$0xff] %v3978
    %4037 = vst [vmem:[%s7 + $0x40] sm:$0xff] %v3984
    %4038 = vst [vmem:[%s7 + $0x48] sm:$0xff] %v3990
    %4039 = vst [vmem:[%s7 + $0x50] sm:$0xff] %v3996
    %4040 = vst [vmem:[%s7 + $0x58] sm:$0xff] %v4002
    %4041 = vst [vmem:[%s7 + $0x60] sm:$0xff] %v4008
    %4042 = vst [vmem:[%s7 + $0x68] sm:$0xff] %v4014
    %4043 = vst [vmem:[%s7 + $0x70] sm:$0xff] %v4020
    %4044 = vst [vmem:[%s7 + $0x78] sm:$0xff] %v4026
    // Predicated region
    $region38: #{den_forward_packed.1} parent=1 // pred_check
      _
    $region39: #{den_forward_packed.1} parent=1 // pred_check_branch
      %4046 = sbr.rel (0) target = $region41
    $region40: #{den_forward_packed.1} parent=1 // pred_region
      _
    $region41: #{den_forward_packed.1} parent=1 // pred_fallthru
      _
    // Predicated region
    $region42: #{den_forward_packed.1} parent=1 // pred_check
      _
    $region43: #{den_forward_packed.1} parent=1 // pred_check_branch
      %4048 = sbr.rel (0) target = $region45
    $region44: #{den_forward_packed.1} parent=1 // pred_region
      _
    $region45: #{den_forward_packed.1} parent=1 // pred_fallthru
      _
    %4049 = vsyncpa [#allocation3], 1
    %4050 = vsyncpa [#allocation5], 1

</llo_original>
